<compile_context>
chip_gen: v7x
topology: tpu7x:2x2x1
jax: 0.10.0
libtpu: 0.0.40
codegen_flags: <defaults>
</compile_context>

<pallas_src>
import jax
import jax.numpy as jnp
from jax import lax
from jax.experimental import pallas as pl
from jax.experimental.pallas import tpu as pltpu

HIDDEN = 128      # hidden_size
VOCAB = 256       # output_size


# ---------------------------------------------------------------------------
# Kernel: entire T-step decode in one grid step
# ---------------------------------------------------------------------------
def decoder_decode_kernel(tok_ref,                    # SMEM (T,) int32 [scalar prefetch]
                          h0_ref,                     # (1, H)   f32
                          emb_ref,                    # (V, H)   f32  (relu pre-applied)
                          wg_ref, bg_ref,             # (2H, 4H) bf16, (1, 4H) f32
                          wout_ref, bout_ref,         # (H, V)   bf16, (1, V)  f32
                          logp_ref, hout_ref,         # (T, V)   f32,  (1, H)  f32
                          hs_scratch):                # VMEM (T, H) f32
    H = hout_ref.shape[1]
    T = hs_scratch.shape[0]

    # ----- recurrent loop: gates only on the sequential critical path -------
    def step(t, h):                                   # h: (1, H) f32
        tok = tok_ref[t]
        # relu(embedding) was pre-applied at prep time; gather an MXU-ready row
        x_bf = emb_ref[pl.ds(tok, 1), :].astype(jnp.bfloat16)        # (1, H)
        xh = jnp.concatenate([x_bf, h.astype(jnp.bfloat16)], axis=1)  # (1, 2H)

        # single fused gate matmul -> [r_pre | z_pre | gi_n | gh_n]
        g = jnp.dot(xh, wg_ref[...],
                    preferred_element_type=jnp.float32) + bg_ref[...]  # (1, 4H)
        r = jax.nn.sigmoid(g[:, :H])
        z = jax.nn.sigmoid(g[:, H:2 * H])
        n = jnp.tanh(g[:, 2 * H:3 * H] + r * g[:, 3 * H:])
        h_new = (1.0 - z) * n + z * h                                  # (1, H) f32

        hs_scratch[pl.ds(t, 1), :] = h_new
        return h_new

    h_final = lax.fori_loop(0, T, step, h0_ref[...], unroll=True)
    hout_ref[...] = h_final

    # ----- deferred output projection + batched log_softmax -----------------
    logits = jnp.dot(hs_scratch[...].astype(jnp.bfloat16), wout_ref[...],
                     preferred_element_type=jnp.float32) + bout_ref[...]  # (T, V)
    m = jnp.max(logits, axis=1, keepdims=True)
    shifted = logits - m
    lse = jnp.log(jnp.sum(jnp.exp(shifted), axis=1, keepdims=True))
    logp_ref[...] = shifted - lse


# ---------------------------------------------------------------------------
# Wrappers
# ---------------------------------------------------------------------------
def decoder_rnn_decode(tokens, hidden, prep):
    """tokens: (T,) int32; hidden: (1,1,H) f32.
    Returns (log_probs (T, V) f32, hidden (1, 1, H) f32)."""
    T = int(tokens.shape[0])
    V, H = prep["emb"].shape
    h0 = hidden.reshape(1, H).astype(jnp.float32)
    # guard the VMEM row gather against out-of-range token ids
    tokens = jnp.clip(tokens.astype(jnp.int32), 0, V - 1)

    def const_spec(shape):
        zeros = (0,) * len(shape)
        return pl.BlockSpec(shape, lambda i, tok, _z=zeros: _z)

    grid_spec = pltpu.PrefetchScalarGridSpec(
        num_scalar_prefetch=1,                 # tokens -> SMEM
        grid=(1,),                             # whole decode = one grid step
        in_specs=[
            const_spec((1, H)),                # h0
            const_spec((V, H)),                # relu'd embedding table (f32)
            const_spec((2 * H, 4 * H)),        # fused gate weights (bf16)
            const_spec((1, 4 * H)),            # fused gate biases (f32)
            const_spec((H, V)),                # W_out^T (bf16)
            const_spec((1, V)),                # b_out (f32)
        ],
        out_specs=[
            pl.BlockSpec((T, V), lambda i, tok: (0, 0)),   # lane-dense logp slab
            pl.BlockSpec((1, H), lambda i, tok: (0, 0)),   # final hidden
        ],
        scratch_shapes=[pltpu.VMEM((T, H), jnp.float32)],  # per-step hidden states
    )

    logp, h_final = pl.pallas_call(
        decoder_decode_kernel,
        out_shape=(
            jax.ShapeDtypeStruct((T, V), jnp.float32),
            jax.ShapeDtypeStruct((1, H), jnp.float32),
        ),
        grid_spec=grid_spec,
        compiler_params=pltpu.CompilerParams(
            dimension_semantics=("arbitrary",)),
    )(tokens, h0,
      prep["emb"], prep["w_gates"], prep["b_gates"],
      prep["w_out"], prep["b_out"])
    return logp, h_final.reshape(1, 1, H)


def decoder_rnn_forward(token, hidden, prep):
    """Single-step API matching the PyTorch module's forward(input, hidden)."""
    tokens = jnp.reshape(jnp.asarray(token, jnp.int32), (1,))
    logp, h = decoder_rnn_decode(tokens, hidden, prep)
    return logp, h                               # (1, V), (1, 1, H)


# ---------------------------------------------------------------------------
# Parameters (PyTorch layout) + kernel-layout preparation
# ---------------------------------------------------------------------------
def init_params(key, hidden_size, output_size):
    ks = jax.random.split(key, 7)
    s = 0.1
    return {
        "embedding": s * jax.random.normal(ks[0], (output_size, hidden_size), jnp.float32),
        "w_ih": s * jax.random.normal(ks[1], (3 * hidden_size, hidden_size), jnp.float32),
        "w_hh": s * jax.random.normal(ks[2], (3 * hidden_size, hidden_size), jnp.float32),
        "b_ih": s * jax.random.normal(ks[3], (3 * hidden_size,), jnp.float32),
        "b_hh": s * jax.random.normal(ks[4], (3 * hidden_size,), jnp.float32),
        "w_out": s * jax.random.normal(ks[5], (output_size, hidden_size), jnp.float32),
        "b_out": s * jax.random.normal(ks[6], (output_size,), jnp.float32),
    }


def prepare_params(raw):
    """Fuse all GRU gates into one (2H,4H) matmul, fold r/z biases,
    pre-apply relu to the embedding table, cast weights to bf16."""
    H = raw["w_ih"].shape[1]
    w_ih_t = raw["w_ih"].T                      # (H, 3H), gate order [r, z, n]
    w_hh_t = raw["w_hh"].T                      # (H, 3H)
    zeros = jnp.zeros((H, H), jnp.float32)
    # rows that multiply x: [Wir^T | Wiz^T | Win^T | 0]
    top = jnp.concatenate([w_ih_t[:, :2 * H], w_ih_t[:, 2 * H:], zeros], axis=1)
    # rows that multiply h: [Whr^T | Whz^T | 0 | Whn^T]
    bot = jnp.concatenate([w_hh_t[:, :2 * H], zeros, w_hh_t[:, 2 * H:]], axis=1)
    w_gates = jnp.concatenate([top, bot], axis=0)                     # (2H, 4H)
    b_gates = jnp.concatenate([
        raw["b_ih"][:2 * H] + raw["b_hh"][:2 * H],                    # r, z folded
        raw["b_ih"][2 * H:],                                          # b_in
        raw["b_hh"][2 * H:],                                          # b_hn
    ]).reshape(1, 4 * H)
    return {
        # relu hoisted to prep time; f32 kept for robust dynamic row gather
        "emb": jnp.maximum(raw["embedding"], 0.0).astype(jnp.float32),
        "w_gates": w_gates.astype(jnp.bfloat16),
        "b_gates": b_gates.astype(jnp.float32),
        "w_out": raw["w_out"].T.astype(jnp.bfloat16),                 # (H, V)
        "b_out": raw["b_out"].reshape(1, -1).astype(jnp.float32),
    }


# ---------------------------------------------------------------------------
# Pure-JAX reference (same bf16 weight quantization, f32 elementwise math)
# ---------------------------------------------------------------------------
def reference_decode(tokens, hidden, prep):
    f32 = jnp.float32
    V, H = prep["emb"].shape
    emb = prep["emb"]                               # relu already applied
    wg = prep["w_gates"].astype(f32)
    bg = prep["b_gates"]
    wout = prep["w_out"].astype(f32)
    bout = prep["b_out"]

    h = hidden.reshape(1, H).astype(f32)
    hs = []
    for t in range(int(tokens.shape[0])):
        x_bf = emb[tokens[t]].reshape(1, H).astype(jnp.bfloat16).astype(f32)
        h_bf = h.astype(jnp.bfloat16).astype(f32)
        g = jnp.concatenate([x_bf, h_bf], axis=1) @ wg + bg
        r = jax.nn.sigmoid(g[:, :H])
        z = jax.nn.sigmoid(g[:, H:2 * H])
        n = jnp.tanh(g[:, 2 * H:3 * H] + r * g[:, 3 * H:])
        h = (1.0 - z) * n + z * h
        hs.append(h)
    hs = jnp.concatenate(hs, axis=0)
    logits = hs.astype(jnp.bfloat16).astype(f32) @ wout + bout
    return jax.nn.log_softmax(logits, axis=1), h.reshape(1, 1, H)


if __name__ == "__main__":
    key = jax.random.PRNGKey(0)
    pkey, hkey, tkey = jax.random.split(key, 3)
    raw = init_params(pkey, HIDDEN, VOCAB)
    prep = prepare_params(raw)

    T = 8                                                   # decode steps, one kernel call
    tokens = jax.random.randint(tkey, (T,), 0, VOCAB, dtype=jnp.int32)
    hidden = 0.1 * jax.random.normal(hkey, (1, 1, HIDDEN), jnp.float32)

    logp, h_final = decoder_rnn_decode(tokens, hidden, prep)
    jax.block_until_ready((logp, h_final))

    assert logp.shape == (T, VOCAB)
    assert h_final.shape == (1, 1, HIDDEN)

    # log_softmax rows sum to 1 in prob space
    row_sums = jnp.sum(jnp.exp(logp), axis=1)
    assert float(jnp.max(jnp.abs(row_sums - 1.0))) < 1e-2

    # numerical check vs pure-JAX reference with identical bf16 weights
    ref_logp, ref_h = reference_decode(tokens, hidden, prep)
    assert float(jnp.max(jnp.abs(logp - ref_logp))) < 5e-2
    assert float(jnp.max(jnp.abs(h_final - ref_h))) < 1e-2

    # single-step API equivalent to the PyTorch module's forward()
    step_logp, step_h = decoder_rnn_forward(tokens[0], hidden, prep)
    jax.block_until_ready((step_logp, step_h))
    assert step_logp.shape == (1, VOCAB) and step_h.shape == (1, 1, HIDDEN)
    assert float(jnp.max(jnp.abs(step_logp - ref_logp[:1]))) < 5e-2

    print("KERNEL_OK")
</pallas_src>

<mosaic_0001>
module attributes {stable_mosaic.version = 11 : i64} {
  func.func @decoder_decode_kernel(%arg0: i32, %arg1: memref<8xi32, #tpu.memory_space<smem>>, %arg2: memref<1x128xf32, #tpu.memory_space<vmem>>, %arg3: memref<256x128xf32, #tpu.memory_space<vmem>>, %arg4: memref<256x512xbf16, #tpu.memory_space<vmem>>, %arg5: memref<1x512xf32, #tpu.memory_space<vmem>>, %arg6: memref<128x256xbf16, #tpu.memory_space<vmem>>, %arg7: memref<1x256xf32, #tpu.memory_space<vmem>>, %arg8: memref<8x256xf32, #tpu.memory_space<vmem>>, %arg9: memref<1x128xf32, #tpu.memory_space<vmem>>, %arg10: memref<8x128xf32, #tpu.memory_space<vmem>>) attributes {dimension_semantics = [#tpu.dimension_semantics<arbitrary>], iteration_bounds = array<i64: 1>, scalar_prefetch = 1 : i64, scratch_operands = 1 : i64, tpu.core_type = #tpu.core_type<tc>, window_params = [{pipeline_mode = #tpu.pipeline_mode<synchronous>, transform_indices = @transform_0, window_bounds = array<i64: 1, 128>}, {pipeline_mode = #tpu.pipeline_mode<synchronous>, transform_indices = @transform_1, window_bounds = array<i64: 256, 128>}, {pipeline_mode = #tpu.pipeline_mode<synchronous>, transform_indices = @transform_2, window_bounds = array<i64: 256, 512>}, {pipeline_mode = #tpu.pipeline_mode<synchronous>, transform_indices = @transform_3, window_bounds = array<i64: 1, 512>}, {pipeline_mode = #tpu.pipeline_mode<synchronous>, transform_indices = @transform_4, window_bounds = array<i64: 128, 256>}, {pipeline_mode = #tpu.pipeline_mode<synchronous>, transform_indices = @transform_5, window_bounds = array<i64: 1, 256>}, {pipeline_mode = #tpu.pipeline_mode<synchronous>, transform_indices = @transform_6, window_bounds = array<i64: 8, 256>}, {pipeline_mode = #tpu.pipeline_mode<synchronous>, transform_indices = @transform_7, window_bounds = array<i64: 1, 128>}]} {
    %c0 = arith.constant 0 : index
    %c0_0 = arith.constant 0 : index
    %0 = vector.load %arg2[%c0, %c0_0] : memref<1x128xf32, #tpu.memory_space<vmem>>, vector<1x128xf32>
    %c0_i32 = arith.constant 0 : i32
    %1 = arith.index_cast %c0_i32 : i32 to index
    %2 = memref.load %arg1[%1] : memref<8xi32, #tpu.memory_space<smem>>
    %3 = arith.index_cast %2 : i32 to index
    %c0_1 = arith.constant 0 : index
    %4 = vector.load %arg3[%3, %c0_1] : memref<256x128xf32, #tpu.memory_space<vmem>>, vector<1x128xf32>
    %5 = arith.truncf %4 : vector<1x128xf32> to vector<1x128xbf16>
    %6 = arith.truncf %0 : vector<1x128xf32> to vector<1x128xbf16>
    %7 = tpu.concatenate %5, %6 in 1 : vector<1x128xbf16>, vector<1x128xbf16> -> vector<1x256xbf16>
    %c0_2 = arith.constant 0 : index
    %c0_3 = arith.constant 0 : index
    %8 = vector.load %arg4[%c0_2, %c0_3] : memref<256x512xbf16, #tpu.memory_space<vmem>>, vector<256x512xbf16>
    %cst = arith.constant dense<0.000000e+00> : vector<1x512xf32>
    %9 = tpu.matmul %7, %8, %cst {dimension_numbers = #tpu.dot_dimension_numbers<[1], [0], [0], [1], [0, 0, 1, 1], [], []>} : vector<1x256xbf16>, vector<256x512xbf16>, vector<1x512xf32> -> vector<1x512xf32>
    %c0_4 = arith.constant 0 : index
    %c0_5 = arith.constant 0 : index
    %10 = vector.load %arg5[%c0_4, %c0_5] : memref<1x512xf32, #tpu.memory_space<vmem>>, vector<1x512xf32>
    %11 = arith.addf %9, %10 : vector<1x512xf32>
    %12 = vector.extract_strided_slice %11 {offsets = [0, 0], sizes = [1, 128], strides = [1, 1]} : vector<1x512xf32> to vector<1x128xf32>
    %13 = arith.negf %12 : vector<1x128xf32>
    %14 = math.exp %13 : vector<1x128xf32>
    %cst_6 = arith.constant 1.000000e+00 : f32
    %15 = vector.broadcast %cst_6 : f32 to vector<1x128xf32>
    %16 = arith.addf %15, %14 : vector<1x128xf32>
    %17 = arith.divf %15, %16 : vector<1x128xf32>
    %18 = vector.extract_strided_slice %11 {offsets = [0, 128], sizes = [1, 128], strides = [1, 1]} : vector<1x512xf32> to vector<1x128xf32>
    %19 = arith.negf %18 : vector<1x128xf32>
    %20 = math.exp %19 : vector<1x128xf32>
    %cst_7 = arith.constant 1.000000e+00 : f32
    %21 = vector.broadcast %cst_7 : f32 to vector<1x128xf32>
    %22 = arith.addf %21, %20 : vector<1x128xf32>
    %23 = arith.divf %21, %22 : vector<1x128xf32>
    %24 = vector.extract_strided_slice %11 {offsets = [0, 256], sizes = [1, 128], strides = [1, 1]} : vector<1x512xf32> to vector<1x128xf32>
    %25 = vector.extract_strided_slice %11 {offsets = [0, 384], sizes = [1, 128], strides = [1, 1]} : vector<1x512xf32> to vector<1x128xf32>
    %26 = arith.mulf %17, %25 : vector<1x128xf32>
    %27 = arith.addf %24, %26 : vector<1x128xf32>
    %28 = math.tanh %27 : vector<1x128xf32>
    %cst_8 = arith.constant 1.000000e+00 : f32
    %29 = vector.broadcast %cst_8 : f32 to vector<1x128xf32>
    %30 = arith.subf %29, %23 : vector<1x128xf32>
    %31 = arith.mulf %30, %28 : vector<1x128xf32>
    %32 = arith.mulf %23, %0 : vector<1x128xf32>
    %33 = arith.addf %31, %32 : vector<1x128xf32>
    %34 = arith.index_cast %c0_i32 : i32 to index
    %c0_9 = arith.constant 0 : index
    %35 = vector.load %arg10[%34, %c0_9] : memref<8x128xf32, #tpu.memory_space<vmem>>, vector<1x128xf32>
    tpu.vector_store %arg10[%34, %c0_9], %33 {strides = array<i32>} : memref<8x128xf32, #tpu.memory_space<vmem>>, vector<1x128xf32>,
    %c1_i32 = arith.constant 1 : i32
    %36 = arith.index_cast %c1_i32 : i32 to index
    %37 = memref.load %arg1[%36] : memref<8xi32, #tpu.memory_space<smem>>
    %38 = arith.index_cast %37 : i32 to index
    %c0_10 = arith.constant 0 : index
    %39 = vector.load %arg3[%38, %c0_10] : memref<256x128xf32, #tpu.memory_space<vmem>>, vector<1x128xf32>
    %40 = arith.truncf %39 : vector<1x128xf32> to vector<1x128xbf16>
    %41 = arith.truncf %33 : vector<1x128xf32> to vector<1x128xbf16>
    %42 = tpu.concatenate %40, %41 in 1 : vector<1x128xbf16>, vector<1x128xbf16> -> vector<1x256xbf16>
    %c0_11 = arith.constant 0 : index
    %c0_12 = arith.constant 0 : index
    %43 = vector.load %arg4[%c0_11, %c0_12] : memref<256x512xbf16, #tpu.memory_space<vmem>>, vector<256x512xbf16>
    %cst_13 = arith.constant dense<0.000000e+00> : vector<1x512xf32>
    %44 = tpu.matmul %42, %43, %cst_13 {dimension_numbers = #tpu.dot_dimension_numbers<[1], [0], [0], [1], [0, 0, 1, 1], [], []>} : vector<1x256xbf16>, vector<256x512xbf16>, vector<1x512xf32> -> vector<1x512xf32>
    %c0_14 = arith.constant 0 : index
    %c0_15 = arith.constant 0 : index
    %45 = vector.load %arg5[%c0_14, %c0_15] : memref<1x512xf32, #tpu.memory_space<vmem>>, vector<1x512xf32>
    %46 = arith.addf %44, %45 : vector<1x512xf32>
    %47 = vector.extract_strided_slice %46 {offsets = [0, 0], sizes = [1, 128], strides = [1, 1]} : vector<1x512xf32> to vector<1x128xf32>
    %48 = arith.negf %47 : vector<1x128xf32>
    %49 = math.exp %48 : vector<1x128xf32>
    %cst_16 = arith.constant 1.000000e+00 : f32
    %50 = vector.broadcast %cst_16 : f32 to vector<1x128xf32>
    %51 = arith.addf %50, %49 : vector<1x128xf32>
    %52 = arith.divf %50, %51 : vector<1x128xf32>
    %53 = vector.extract_strided_slice %46 {offsets = [0, 128], sizes = [1, 128], strides = [1, 1]} : vector<1x512xf32> to vector<1x128xf32>
    %54 = arith.negf %53 : vector<1x128xf32>
    %55 = math.exp %54 : vector<1x128xf32>
    %cst_17 = arith.constant 1.000000e+00 : f32
    %56 = vector.broadcast %cst_17 : f32 to vector<1x128xf32>
    %57 = arith.addf %56, %55 : vector<1x128xf32>
    %58 = arith.divf %56, %57 : vector<1x128xf32>
    %59 = vector.extract_strided_slice %46 {offsets = [0, 256], sizes = [1, 128], strides = [1, 1]} : vector<1x512xf32> to vector<1x128xf32>
    %60 = vector.extract_strided_slice %46 {offsets = [0, 384], sizes = [1, 128], strides = [1, 1]} : vector<1x512xf32> to vector<1x128xf32>
    %61 = arith.mulf %52, %60 : vector<1x128xf32>
    %62 = arith.addf %59, %61 : vector<1x128xf32>
    %63 = math.tanh %62 : vector<1x128xf32>
    %cst_18 = arith.constant 1.000000e+00 : f32
    %64 = vector.broadcast %cst_18 : f32 to vector<1x128xf32>
    %65 = arith.subf %64, %58 : vector<1x128xf32>
    %66 = arith.mulf %65, %63 : vector<1x128xf32>
    %67 = arith.mulf %58, %33 : vector<1x128xf32>
    %68 = arith.addf %66, %67 : vector<1x128xf32>
    %69 = arith.index_cast %c1_i32 : i32 to index
    %c0_19 = arith.constant 0 : index
    %70 = vector.load %arg10[%69, %c0_19] : memref<8x128xf32, #tpu.memory_space<vmem>>, vector<1x128xf32>
    tpu.vector_store %arg10[%69, %c0_19], %68 {strides = array<i32>} : memref<8x128xf32, #tpu.memory_space<vmem>>, vector<1x128xf32>,
    %c2_i32 = arith.constant 2 : i32
    %71 = arith.index_cast %c2_i32 : i32 to index
    %72 = memref.load %arg1[%71] : memref<8xi32, #tpu.memory_space<smem>>
    %73 = arith.index_cast %72 : i32 to index
    %c0_20 = arith.constant 0 : index
    %74 = vector.load %arg3[%73, %c0_20] : memref<256x128xf32, #tpu.memory_space<vmem>>, vector<1x128xf32>
    %75 = arith.truncf %74 : vector<1x128xf32> to vector<1x128xbf16>
    %76 = arith.truncf %68 : vector<1x128xf32> to vector<1x128xbf16>
    %77 = tpu.concatenate %75, %76 in 1 : vector<1x128xbf16>, vector<1x128xbf16> -> vector<1x256xbf16>
    %c0_21 = arith.constant 0 : index
    %c0_22 = arith.constant 0 : index
    %78 = vector.load %arg4[%c0_21, %c0_22] : memref<256x512xbf16, #tpu.memory_space<vmem>>, vector<256x512xbf16>
    %cst_23 = arith.constant dense<0.000000e+00> : vector<1x512xf32>
    %79 = tpu.matmul %77, %78, %cst_23 {dimension_numbers = #tpu.dot_dimension_numbers<[1], [0], [0], [1], [0, 0, 1, 1], [], []>} : vector<1x256xbf16>, vector<256x512xbf16>, vector<1x512xf32> -> vector<1x512xf32>
    %c0_24 = arith.constant 0 : index
    %c0_25 = arith.constant 0 : index
    %80 = vector.load %arg5[%c0_24, %c0_25] : memref<1x512xf32, #tpu.memory_space<vmem>>, vector<1x512xf32>
    %81 = arith.addf %79, %80 : vector<1x512xf32>
    %82 = vector.extract_strided_slice %81 {offsets = [0, 0], sizes = [1, 128], strides = [1, 1]} : vector<1x512xf32> to vector<1x128xf32>
    %83 = arith.negf %82 : vector<1x128xf32>
    %84 = math.exp %83 : vector<1x128xf32>
    %cst_26 = arith.constant 1.000000e+00 : f32
    %85 = vector.broadcast %cst_26 : f32 to vector<1x128xf32>
    %86 = arith.addf %85, %84 : vector<1x128xf32>
    %87 = arith.divf %85, %86 : vector<1x128xf32>
    %88 = vector.extract_strided_slice %81 {offsets = [0, 128], sizes = [1, 128], strides = [1, 1]} : vector<1x512xf32> to vector<1x128xf32>
    %89 = arith.negf %88 : vector<1x128xf32>
    %90 = math.exp %89 : vector<1x128xf32>
    %cst_27 = arith.constant 1.000000e+00 : f32
    %91 = vector.broadcast %cst_27 : f32 to vector<1x128xf32>
    %92 = arith.addf %91, %90 : vector<1x128xf32>
    %93 = arith.divf %91, %92 : vector<1x128xf32>
    %94 = vector.extract_strided_slice %81 {offsets = [0, 256], sizes = [1, 128], strides = [1, 1]} : vector<1x512xf32> to vector<1x128xf32>
    %95 = vector.extract_strided_slice %81 {offsets = [0, 384], sizes = [1, 128], strides = [1, 1]} : vector<1x512xf32> to vector<1x128xf32>
    %96 = arith.mulf %87, %95 : vector<1x128xf32>
    %97 = arith.addf %94, %96 : vector<1x128xf32>
    %98 = math.tanh %97 : vector<1x128xf32>
    %cst_28 = arith.constant 1.000000e+00 : f32
    %99 = vector.broadcast %cst_28 : f32 to vector<1x128xf32>
    %100 = arith.subf %99, %93 : vector<1x128xf32>
    %101 = arith.mulf %100, %98 : vector<1x128xf32>
    %102 = arith.mulf %93, %68 : vector<1x128xf32>
    %103 = arith.addf %101, %102 : vector<1x128xf32>
    %104 = arith.index_cast %c2_i32 : i32 to index
    %c0_29 = arith.constant 0 : index
    %105 = vector.load %arg10[%104, %c0_29] : memref<8x128xf32, #tpu.memory_space<vmem>>, vector<1x128xf32>
    tpu.vector_store %arg10[%104, %c0_29], %103 {strides = array<i32>} : memref<8x128xf32, #tpu.memory_space<vmem>>, vector<1x128xf32>,
    %c3_i32 = arith.constant 3 : i32
    %106 = arith.index_cast %c3_i32 : i32 to index
    %107 = memref.load %arg1[%106] : memref<8xi32, #tpu.memory_space<smem>>
    %108 = arith.index_cast %107 : i32 to index
    %c0_30 = arith.constant 0 : index
    %109 = vector.load %arg3[%108, %c0_30] : memref<256x128xf32, #tpu.memory_space<vmem>>, vector<1x128xf32>
    %110 = arith.truncf %109 : vector<1x128xf32> to vector<1x128xbf16>
    %111 = arith.truncf %103 : vector<1x128xf32> to vector<1x128xbf16>
    %112 = tpu.concatenate %110, %111 in 1 : vector<1x128xbf16>, vector<1x128xbf16> -> vector<1x256xbf16>
    %c0_31 = arith.constant 0 : index
    %c0_32 = arith.constant 0 : index
    %113 = vector.load %arg4[%c0_31, %c0_32] : memref<256x512xbf16, #tpu.memory_space<vmem>>, vector<256x512xbf16>
    %cst_33 = arith.constant dense<0.000000e+00> : vector<1x512xf32>
    %114 = tpu.matmul %112, %113, %cst_33 {dimension_numbers = #tpu.dot_dimension_numbers<[1], [0], [0], [1], [0, 0, 1, 1], [], []>} : vector<1x256xbf16>, vector<256x512xbf16>, vector<1x512xf32> -> vector<1x512xf32>
    %c0_34 = arith.constant 0 : index
    %c0_35 = arith.constant 0 : index
    %115 = vector.load %arg5[%c0_34, %c0_35] : memref<1x512xf32, #tpu.memory_space<vmem>>, vector<1x512xf32>
    %116 = arith.addf %114, %115 : vector<1x512xf32>
    %117 = vector.extract_strided_slice %116 {offsets = [0, 0], sizes = [1, 128], strides = [1, 1]} : vector<1x512xf32> to vector<1x128xf32>
    %118 = arith.negf %117 : vector<1x128xf32>
    %119 = math.exp %118 : vector<1x128xf32>
    %cst_36 = arith.constant 1.000000e+00 : f32
    %120 = vector.broadcast %cst_36 : f32 to vector<1x128xf32>
    %121 = arith.addf %120, %119 : vector<1x128xf32>
    %122 = arith.divf %120, %121 : vector<1x128xf32>
    %123 = vector.extract_strided_slice %116 {offsets = [0, 128], sizes = [1, 128], strides = [1, 1]} : vector<1x512xf32> to vector<1x128xf32>
    %124 = arith.negf %123 : vector<1x128xf32>
    %125 = math.exp %124 : vector<1x128xf32>
    %cst_37 = arith.constant 1.000000e+00 : f32
    %126 = vector.broadcast %cst_37 : f32 to vector<1x128xf32>
    %127 = arith.addf %126, %125 : vector<1x128xf32>
    %128 = arith.divf %126, %127 : vector<1x128xf32>
    %129 = vector.extract_strided_slice %116 {offsets = [0, 256], sizes = [1, 128], strides = [1, 1]} : vector<1x512xf32> to vector<1x128xf32>
    %130 = vector.extract_strided_slice %116 {offsets = [0, 384], sizes = [1, 128], strides = [1, 1]} : vector<1x512xf32> to vector<1x128xf32>
    %131 = arith.mulf %122, %130 : vector<1x128xf32>
    %132 = arith.addf %129, %131 : vector<1x128xf32>
    %133 = math.tanh %132 : vector<1x128xf32>
    %cst_38 = arith.constant 1.000000e+00 : f32
    %134 = vector.broadcast %cst_38 : f32 to vector<1x128xf32>
    %135 = arith.subf %134, %128 : vector<1x128xf32>
    %136 = arith.mulf %135, %133 : vector<1x128xf32>
    %137 = arith.mulf %128, %103 : vector<1x128xf32>
    %138 = arith.addf %136, %137 : vector<1x128xf32>
    %139 = arith.index_cast %c3_i32 : i32 to index
    %c0_39 = arith.constant 0 : index
    %140 = vector.load %arg10[%139, %c0_39] : memref<8x128xf32, #tpu.memory_space<vmem>>, vector<1x128xf32>
    tpu.vector_store %arg10[%139, %c0_39], %138 {strides = array<i32>} : memref<8x128xf32, #tpu.memory_space<vmem>>, vector<1x128xf32>,
    %c4_i32 = arith.constant 4 : i32
    %141 = arith.index_cast %c4_i32 : i32 to index
    %142 = memref.load %arg1[%141] : memref<8xi32, #tpu.memory_space<smem>>
    %143 = arith.index_cast %142 : i32 to index
    %c0_40 = arith.constant 0 : index
    %144 = vector.load %arg3[%143, %c0_40] : memref<256x128xf32, #tpu.memory_space<vmem>>, vector<1x128xf32>
    %145 = arith.truncf %144 : vector<1x128xf32> to vector<1x128xbf16>
    %146 = arith.truncf %138 : vector<1x128xf32> to vector<1x128xbf16>
    %147 = tpu.concatenate %145, %146 in 1 : vector<1x128xbf16>, vector<1x128xbf16> -> vector<1x256xbf16>
    %c0_41 = arith.constant 0 : index
    %c0_42 = arith.constant 0 : index
    %148 = vector.load %arg4[%c0_41, %c0_42] : memref<256x512xbf16, #tpu.memory_space<vmem>>, vector<256x512xbf16>
    %cst_43 = arith.constant dense<0.000000e+00> : vector<1x512xf32>
    %149 = tpu.matmul %147, %148, %cst_43 {dimension_numbers = #tpu.dot_dimension_numbers<[1], [0], [0], [1], [0, 0, 1, 1], [], []>} : vector<1x256xbf16>, vector<256x512xbf16>, vector<1x512xf32> -> vector<1x512xf32>
    %c0_44 = arith.constant 0 : index
    %c0_45 = arith.constant 0 : index
    %150 = vector.load %arg5[%c0_44, %c0_45] : memref<1x512xf32, #tpu.memory_space<vmem>>, vector<1x512xf32>
    %151 = arith.addf %149, %150 : vector<1x512xf32>
    %152 = vector.extract_strided_slice %151 {offsets = [0, 0], sizes = [1, 128], strides = [1, 1]} : vector<1x512xf32> to vector<1x128xf32>
    %153 = arith.negf %152 : vector<1x128xf32>
    %154 = math.exp %153 : vector<1x128xf32>
    %cst_46 = arith.constant 1.000000e+00 : f32
    %155 = vector.broadcast %cst_46 : f32 to vector<1x128xf32>
    %156 = arith.addf %155, %154 : vector<1x128xf32>
    %157 = arith.divf %155, %156 : vector<1x128xf32>
    %158 = vector.extract_strided_slice %151 {offsets = [0, 128], sizes = [1, 128], strides = [1, 1]} : vector<1x512xf32> to vector<1x128xf32>
    %159 = arith.negf %158 : vector<1x128xf32>
    %160 = math.exp %159 : vector<1x128xf32>
    %cst_47 = arith.constant 1.000000e+00 : f32
    %161 = vector.broadcast %cst_47 : f32 to vector<1x128xf32>
    %162 = arith.addf %161, %160 : vector<1x128xf32>
    %163 = arith.divf %161, %162 : vector<1x128xf32>
    %164 = vector.extract_strided_slice %151 {offsets = [0, 256], sizes = [1, 128], strides = [1, 1]} : vector<1x512xf32> to vector<1x128xf32>
    %165 = vector.extract_strided_slice %151 {offsets = [0, 384], sizes = [1, 128], strides = [1, 1]} : vector<1x512xf32> to vector<1x128xf32>
    %166 = arith.mulf %157, %165 : vector<1x128xf32>
    %167 = arith.addf %164, %166 : vector<1x128xf32>
    %168 = math.tanh %167 : vector<1x128xf32>
    %cst_48 = arith.constant 1.000000e+00 : f32
    %169 = vector.broadcast %cst_48 : f32 to vector<1x128xf32>
    %170 = arith.subf %169, %163 : vector<1x128xf32>
    %171 = arith.mulf %170, %168 : vector<1x128xf32>
    %172 = arith.mulf %163, %138 : vector<1x128xf32>
    %173 = arith.addf %171, %172 : vector<1x128xf32>
    %174 = arith.index_cast %c4_i32 : i32 to index
    %c0_49 = arith.constant 0 : index
    %175 = vector.load %arg10[%174, %c0_49] : memref<8x128xf32, #tpu.memory_space<vmem>>, vector<1x128xf32>
    tpu.vector_store %arg10[%174, %c0_49], %173 {strides = array<i32>} : memref<8x128xf32, #tpu.memory_space<vmem>>, vector<1x128xf32>,
    %c5_i32 = arith.constant 5 : i32
    %176 = arith.index_cast %c5_i32 : i32 to index
    %177 = memref.load %arg1[%176] : memref<8xi32, #tpu.memory_space<smem>>
    %178 = arith.index_cast %177 : i32 to index
    %c0_50 = arith.constant 0 : index
    %179 = vector.load %arg3[%178, %c0_50] : memref<256x128xf32, #tpu.memory_space<vmem>>, vector<1x128xf32>
    %180 = arith.truncf %179 : vector<1x128xf32> to vector<1x128xbf16>
    %181 = arith.truncf %173 : vector<1x128xf32> to vector<1x128xbf16>
    %182 = tpu.concatenate %180, %181 in 1 : vector<1x128xbf16>, vector<1x128xbf16> -> vector<1x256xbf16>
    %c0_51 = arith.constant 0 : index
    %c0_52 = arith.constant 0 : index
    %183 = vector.load %arg4[%c0_51, %c0_52] : memref<256x512xbf16, #tpu.memory_space<vmem>>, vector<256x512xbf16>
    %cst_53 = arith.constant dense<0.000000e+00> : vector<1x512xf32>
    %184 = tpu.matmul %182, %183, %cst_53 {dimension_numbers = #tpu.dot_dimension_numbers<[1], [0], [0], [1], [0, 0, 1, 1], [], []>} : vector<1x256xbf16>, vector<256x512xbf16>, vector<1x512xf32> -> vector<1x512xf32>
    %c0_54 = arith.constant 0 : index
    %c0_55 = arith.constant 0 : index
    %185 = vector.load %arg5[%c0_54, %c0_55] : memref<1x512xf32, #tpu.memory_space<vmem>>, vector<1x512xf32>
    %186 = arith.addf %184, %185 : vector<1x512xf32>
    %187 = vector.extract_strided_slice %186 {offsets = [0, 0], sizes = [1, 128], strides = [1, 1]} : vector<1x512xf32> to vector<1x128xf32>
    %188 = arith.negf %187 : vector<1x128xf32>
    %189 = math.exp %188 : vector<1x128xf32>
    %cst_56 = arith.constant 1.000000e+00 : f32
    %190 = vector.broadcast %cst_56 : f32 to vector<1x128xf32>
    %191 = arith.addf %190, %189 : vector<1x128xf32>
    %192 = arith.divf %190, %191 : vector<1x128xf32>
    %193 = vector.extract_strided_slice %186 {offsets = [0, 128], sizes = [1, 128], strides = [1, 1]} : vector<1x512xf32> to vector<1x128xf32>
    %194 = arith.negf %193 : vector<1x128xf32>
    %195 = math.exp %194 : vector<1x128xf32>
    %cst_57 = arith.constant 1.000000e+00 : f32
    %196 = vector.broadcast %cst_57 : f32 to vector<1x128xf32>
    %197 = arith.addf %196, %195 : vector<1x128xf32>
    %198 = arith.divf %196, %197 : vector<1x128xf32>
    %199 = vector.extract_strided_slice %186 {offsets = [0, 256], sizes = [1, 128], strides = [1, 1]} : vector<1x512xf32> to vector<1x128xf32>
    %200 = vector.extract_strided_slice %186 {offsets = [0, 384], sizes = [1, 128], strides = [1, 1]} : vector<1x512xf32> to vector<1x128xf32>
    %201 = arith.mulf %192, %200 : vector<1x128xf32>
    %202 = arith.addf %199, %201 : vector<1x128xf32>
    %203 = math.tanh %202 : vector<1x128xf32>
    %cst_58 = arith.constant 1.000000e+00 : f32
    %204 = vector.broadcast %cst_58 : f32 to vector<1x128xf32>
    %205 = arith.subf %204, %198 : vector<1x128xf32>
    %206 = arith.mulf %205, %203 : vector<1x128xf32>
    %207 = arith.mulf %198, %173 : vector<1x128xf32>
    %208 = arith.addf %206, %207 : vector<1x128xf32>
    %209 = arith.index_cast %c5_i32 : i32 to index
    %c0_59 = arith.constant 0 : index
    %210 = vector.load %arg10[%209, %c0_59] : memref<8x128xf32, #tpu.memory_space<vmem>>, vector<1x128xf32>
    tpu.vector_store %arg10[%209, %c0_59], %208 {strides = array<i32>} : memref<8x128xf32, #tpu.memory_space<vmem>>, vector<1x128xf32>,
    %c6_i32 = arith.constant 6 : i32
    %211 = arith.index_cast %c6_i32 : i32 to index
    %212 = memref.load %arg1[%211] : memref<8xi32, #tpu.memory_space<smem>>
    %213 = arith.index_cast %212 : i32 to index
    %c0_60 = arith.constant 0 : index
    %214 = vector.load %arg3[%213, %c0_60] : memref<256x128xf32, #tpu.memory_space<vmem>>, vector<1x128xf32>
    %215 = arith.truncf %214 : vector<1x128xf32> to vector<1x128xbf16>
    %216 = arith.truncf %208 : vector<1x128xf32> to vector<1x128xbf16>
    %217 = tpu.concatenate %215, %216 in 1 : vector<1x128xbf16>, vector<1x128xbf16> -> vector<1x256xbf16>
    %c0_61 = arith.constant 0 : index
    %c0_62 = arith.constant 0 : index
    %218 = vector.load %arg4[%c0_61, %c0_62] : memref<256x512xbf16, #tpu.memory_space<vmem>>, vector<256x512xbf16>
    %cst_63 = arith.constant dense<0.000000e+00> : vector<1x512xf32>
    %219 = tpu.matmul %217, %218, %cst_63 {dimension_numbers = #tpu.dot_dimension_numbers<[1], [0], [0], [1], [0, 0, 1, 1], [], []>} : vector<1x256xbf16>, vector<256x512xbf16>, vector<1x512xf32> -> vector<1x512xf32>
    %c0_64 = arith.constant 0 : index
    %c0_65 = arith.constant 0 : index
    %220 = vector.load %arg5[%c0_64, %c0_65] : memref<1x512xf32, #tpu.memory_space<vmem>>, vector<1x512xf32>
    %221 = arith.addf %219, %220 : vector<1x512xf32>
    %222 = vector.extract_strided_slice %221 {offsets = [0, 0], sizes = [1, 128], strides = [1, 1]} : vector<1x512xf32> to vector<1x128xf32>
    %223 = arith.negf %222 : vector<1x128xf32>
    %224 = math.exp %223 : vector<1x128xf32>
    %cst_66 = arith.constant 1.000000e+00 : f32
    %225 = vector.broadcast %cst_66 : f32 to vector<1x128xf32>
    %226 = arith.addf %225, %224 : vector<1x128xf32>
    %227 = arith.divf %225, %226 : vector<1x128xf32>
    %228 = vector.extract_strided_slice %221 {offsets = [0, 128], sizes = [1, 128], strides = [1, 1]} : vector<1x512xf32> to vector<1x128xf32>
    %229 = arith.negf %228 : vector<1x128xf32>
    %230 = math.exp %229 : vector<1x128xf32>
    %cst_67 = arith.constant 1.000000e+00 : f32
    %231 = vector.broadcast %cst_67 : f32 to vector<1x128xf32>
    %232 = arith.addf %231, %230 : vector<1x128xf32>
    %233 = arith.divf %231, %232 : vector<1x128xf32>
    %234 = vector.extract_strided_slice %221 {offsets = [0, 256], sizes = [1, 128], strides = [1, 1]} : vector<1x512xf32> to vector<1x128xf32>
    %235 = vector.extract_strided_slice %221 {offsets = [0, 384], sizes = [1, 128], strides = [1, 1]} : vector<1x512xf32> to vector<1x128xf32>
    %236 = arith.mulf %227, %235 : vector<1x128xf32>
    %237 = arith.addf %234, %236 : vector<1x128xf32>
    %238 = math.tanh %237 : vector<1x128xf32>
    %cst_68 = arith.constant 1.000000e+00 : f32
    %239 = vector.broadcast %cst_68 : f32 to vector<1x128xf32>
    %240 = arith.subf %239, %233 : vector<1x128xf32>
    %241 = arith.mulf %240, %238 : vector<1x128xf32>
    %242 = arith.mulf %233, %208 : vector<1x128xf32>
    %243 = arith.addf %241, %242 : vector<1x128xf32>
    %244 = arith.index_cast %c6_i32 : i32 to index
    %c0_69 = arith.constant 0 : index
    %245 = vector.load %arg10[%244, %c0_69] : memref<8x128xf32, #tpu.memory_space<vmem>>, vector<1x128xf32>
    tpu.vector_store %arg10[%244, %c0_69], %243 {strides = array<i32>} : memref<8x128xf32, #tpu.memory_space<vmem>>, vector<1x128xf32>,
    %c7_i32 = arith.constant 7 : i32
    %246 = arith.index_cast %c7_i32 : i32 to index
    %247 = memref.load %arg1[%246] : memref<8xi32, #tpu.memory_space<smem>>
    %248 = arith.index_cast %247 : i32 to index
    %c0_70 = arith.constant 0 : index
    %249 = vector.load %arg3[%248, %c0_70] : memref<256x128xf32, #tpu.memory_space<vmem>>, vector<1x128xf32>
    %250 = arith.truncf %249 : vector<1x128xf32> to vector<1x128xbf16>
    %251 = arith.truncf %243 : vector<1x128xf32> to vector<1x128xbf16>
    %252 = tpu.concatenate %250, %251 in 1 : vector<1x128xbf16>, vector<1x128xbf16> -> vector<1x256xbf16>
    %c0_71 = arith.constant 0 : index
    %c0_72 = arith.constant 0 : index
    %253 = vector.load %arg4[%c0_71, %c0_72] : memref<256x512xbf16, #tpu.memory_space<vmem>>, vector<256x512xbf16>
    %cst_73 = arith.constant dense<0.000000e+00> : vector<1x512xf32>
    %254 = tpu.matmul %252, %253, %cst_73 {dimension_numbers = #tpu.dot_dimension_numbers<[1], [0], [0], [1], [0, 0, 1, 1], [], []>} : vector<1x256xbf16>, vector<256x512xbf16>, vector<1x512xf32> -> vector<1x512xf32>
    %c0_74 = arith.constant 0 : index
    %c0_75 = arith.constant 0 : index
    %255 = vector.load %arg5[%c0_74, %c0_75] : memref<1x512xf32, #tpu.memory_space<vmem>>, vector<1x512xf32>
    %256 = arith.addf %254, %255 : vector<1x512xf32>
    %257 = vector.extract_strided_slice %256 {offsets = [0, 0], sizes = [1, 128], strides = [1, 1]} : vector<1x512xf32> to vector<1x128xf32>
    %258 = arith.negf %257 : vector<1x128xf32>
    %259 = math.exp %258 : vector<1x128xf32>
    %cst_76 = arith.constant 1.000000e+00 : f32
    %260 = vector.broadcast %cst_76 : f32 to vector<1x128xf32>
    %261 = arith.addf %260, %259 : vector<1x128xf32>
    %262 = arith.divf %260, %261 : vector<1x128xf32>
    %263 = vector.extract_strided_slice %256 {offsets = [0, 128], sizes = [1, 128], strides = [1, 1]} : vector<1x512xf32> to vector<1x128xf32>
    %264 = arith.negf %263 : vector<1x128xf32>
    %265 = math.exp %264 : vector<1x128xf32>
    %cst_77 = arith.constant 1.000000e+00 : f32
    %266 = vector.broadcast %cst_77 : f32 to vector<1x128xf32>
    %267 = arith.addf %266, %265 : vector<1x128xf32>
    %268 = arith.divf %266, %267 : vector<1x128xf32>
    %269 = vector.extract_strided_slice %256 {offsets = [0, 256], sizes = [1, 128], strides = [1, 1]} : vector<1x512xf32> to vector<1x128xf32>
    %270 = vector.extract_strided_slice %256 {offsets = [0, 384], sizes = [1, 128], strides = [1, 1]} : vector<1x512xf32> to vector<1x128xf32>
    %271 = arith.mulf %262, %270 : vector<1x128xf32>
    %272 = arith.addf %269, %271 : vector<1x128xf32>
    %273 = math.tanh %272 : vector<1x128xf32>
    %cst_78 = arith.constant 1.000000e+00 : f32
    %274 = vector.broadcast %cst_78 : f32 to vector<1x128xf32>
    %275 = arith.subf %274, %268 : vector<1x128xf32>
    %276 = arith.mulf %275, %273 : vector<1x128xf32>
    %277 = arith.mulf %268, %243 : vector<1x128xf32>
    %278 = arith.addf %276, %277 : vector<1x128xf32>
    %279 = arith.index_cast %c7_i32 : i32 to index
    %c0_79 = arith.constant 0 : index
    %280 = vector.load %arg10[%279, %c0_79] : memref<8x128xf32, #tpu.memory_space<vmem>>, vector<1x128xf32>
    tpu.vector_store %arg10[%279, %c0_79], %278 {strides = array<i32>} : memref<8x128xf32, #tpu.memory_space<vmem>>, vector<1x128xf32>,
    %c8_i32 = arith.constant 8 : i32
    %c0_80 = arith.constant 0 : index
    %c0_81 = arith.constant 0 : index
    %281 = vector.load %arg9[%c0_80, %c0_81] : memref<1x128xf32, #tpu.memory_space<vmem>>, vector<1x128xf32>
    tpu.vector_store %arg9[%c0_80, %c0_81], %278 {strides = array<i32>} : memref<1x128xf32, #tpu.memory_space<vmem>>, vector<1x128xf32>,
    %c0_82 = arith.constant 0 : index
    %c0_83 = arith.constant 0 : index
    %282 = vector.load %arg10[%c0_82, %c0_83] : memref<8x128xf32, #tpu.memory_space<vmem>>, vector<8x128xf32>
    %283 = arith.truncf %282 : vector<8x128xf32> to vector<8x128xbf16>
    %c0_84 = arith.constant 0 : index
    %c0_85 = arith.constant 0 : index
    %284 = vector.load %arg6[%c0_84, %c0_85] : memref<128x256xbf16, #tpu.memory_space<vmem>>, vector<128x256xbf16>
    %cst_86 = arith.constant dense<0.000000e+00> : vector<8x256xf32>
    %285 = tpu.matmul %283, %284, %cst_86 {dimension_numbers = #tpu.dot_dimension_numbers<[1], [0], [0], [1], [0, 0, 1, 1], [], []>} : vector<8x128xbf16>, vector<128x256xbf16>, vector<8x256xf32> -> vector<8x256xf32>
    %c0_87 = arith.constant 0 : index
    %c0_88 = arith.constant 0 : index
    %286 = vector.load %arg7[%c0_87, %c0_88] : memref<1x256xf32, #tpu.memory_space<vmem>>, vector<1x256xf32>
    %287 = vector.broadcast %286 : vector<1x256xf32> to vector<8x256xf32>
    %288 = arith.addf %285, %287 : vector<8x256xf32>
    %cst_89 = arith.constant dense<0xFF800000> : vector<8xf32>
    %289 = vector.multi_reduction <maximumf>, %288, %cst_89 [1] : vector<8x256xf32> to vector<8xf32>
    %290 = vector.shape_cast %289 : vector<8xf32> to vector<8x1xf32>
    %291 = vector.broadcast %290 : vector<8x1xf32> to vector<8x256xf32>
    %292 = arith.subf %288, %291 : vector<8x256xf32>
    %293 = math.exp %292 : vector<8x256xf32>
    %cst_90 = arith.constant dense<0.000000e+00> : vector<8xf32>
    %294 = vector.multi_reduction <add>, %293, %cst_90 [1] : vector<8x256xf32> to vector<8xf32>
    %295 = vector.shape_cast %294 : vector<8xf32> to vector<8x1xf32>
    %296 = math.log %295 : vector<8x1xf32>
    %297 = vector.broadcast %296 : vector<8x1xf32> to vector<8x256xf32>
    %298 = arith.subf %292, %297 : vector<8x256xf32>
    %c0_91 = arith.constant 0 : index
    %c0_92 = arith.constant 0 : index
    %299 = vector.load %arg8[%c0_91, %c0_92] : memref<8x256xf32, #tpu.memory_space<vmem>>, vector<8x256xf32>
    tpu.vector_store %arg8[%c0_91, %c0_92], %298 {strides = array<i32>} : memref<8x256xf32, #tpu.memory_space<vmem>>, vector<8x256xf32>,
    return
  }
  func.func @transform_0(%arg0: i32, %arg1: memref<8xi32, #tpu.memory_space<smem>>) -> (i32, i32) {
    %c0_i32 = arith.constant 0 : i32
    %c0_i32_0 = arith.constant 0 : i32
    %c0_i32_1 = arith.constant 0 : i32
    return %c0_i32, %c0_i32_0 : i32, i32
  }
  func.func @transform_1(%arg0: i32, %arg1: memref<8xi32, #tpu.memory_space<smem>>) -> (i32, i32) {
    %c0_i32 = arith.constant 0 : i32
    %c0_i32_0 = arith.constant 0 : i32
    %c0_i32_1 = arith.constant 0 : i32
    return %c0_i32, %c0_i32_0 : i32, i32
  }
  func.func @transform_2(%arg0: i32, %arg1: memref<8xi32, #tpu.memory_space<smem>>) -> (i32, i32) {
    %c0_i32 = arith.constant 0 : i32
    %c0_i32_0 = arith.constant 0 : i32
    %c0_i32_1 = arith.constant 0 : i32
    return %c0_i32, %c0_i32_0 : i32, i32
  }
  func.func @transform_3(%arg0: i32, %arg1: memref<8xi32, #tpu.memory_space<smem>>) -> (i32, i32) {
    %c0_i32 = arith.constant 0 : i32
    %c0_i32_0 = arith.constant 0 : i32
    %c0_i32_1 = arith.constant 0 : i32
    return %c0_i32, %c0_i32_0 : i32, i32
  }
  func.func @transform_4(%arg0: i32, %arg1: memref<8xi32, #tpu.memory_space<smem>>) -> (i32, i32) {
    %c0_i32 = arith.constant 0 : i32
    %c0_i32_0 = arith.constant 0 : i32
    %c0_i32_1 = arith.constant 0 : i32
    return %c0_i32, %c0_i32_0 : i32, i32
  }
  func.func @transform_5(%arg0: i32, %arg1: memref<8xi32, #tpu.memory_space<smem>>) -> (i32, i32) {
    %c0_i32 = arith.constant 0 : i32
    %c0_i32_0 = arith.constant 0 : i32
    %c0_i32_1 = arith.constant 0 : i32
    return %c0_i32, %c0_i32_0 : i32, i32
  }
  func.func @transform_6(%arg0: i32, %arg1: memref<8xi32, #tpu.memory_space<smem>>) -> (i32, i32) {
    %c0_i32 = arith.constant 0 : i32
    %c0_i32_0 = arith.constant 0 : i32
    %c0_i32_1 = arith.constant 0 : i32
    return %c0_i32, %c0_i32_0 : i32, i32
  }
  func.func @transform_7(%arg0: i32, %arg1: memref<8xi32, #tpu.memory_space<smem>>) -> (i32, i32) {
    %c0_i32 = arith.constant 0 : i32
    %c0_i32_0 = arith.constant 0 : i32
    %c0_i32_1 = arith.constant 0 : i32
    return %c0_i32, %c0_i32_0 : i32, i32
  }
}

</mosaic_0001>

<llo_original>
// kernel: tpu_custom_call.1
$region0: #{tpu_custom_call.1}
  #allocation0 [shape = 'u32[]', space=smem, size = 0x4, offset = 0x4, fixed_abs, tag = 'smem constant byte address 0x4 - core index']
  #allocation1 [shape = 'u32[144,128]{1,0:T(1,128)}', space=vmem, size = 0x12000, scoped, tag = 'internal scratch']
  #allocation2 [shape = 'f32[8,128]{1,0:T(8,128)}', space=vmem, size = 0x1000, scoped, tag = 'scratch operand']
  #allocation3 [shape = 's32[1]{0}', space=sflag, size = 0x4, scoped, tag = 'scoped memory for tpu_custom_call.1']
  #allocation4 [shape = 'u8[512]{0}', space=smem, size = 0x200, scoped, tag = 'prefetched SMEM operand 0']
  %s0 = inlined_call_operand.hbm [shape: s32[8], index: 0, kind: input, shape index: {}]
  %s1 = inlined_call_operand.vmem [shape: f32[1,128], index: 1, kind: input, shape index: {}]
  %s2 = inlined_call_operand.hbm [shape: f32[256,128], index: 2, kind: input, shape index: {}]
  %s3 = inlined_call_operand.hbm [shape: bf16[256,512], index: 3, kind: input, shape index: {}]
  %s4 = inlined_call_operand.vmem [shape: f32[1,512], index: 4, kind: input, shape index: {}]
  %s5 = inlined_call_operand.hbm [shape: bf16[128,256], index: 5, kind: input, shape index: {}]
  %s6 = inlined_call_operand.vmem [shape: f32[1,256], index: 6, kind: input, shape index: {}]
  %s7 = inlined_call_operand.hbm [shape: f32[8,256], index: 7, kind: output, shape index: {0}]
  %s8 = inlined_call_operand.hbm [shape: f32[1,128], index: 8, kind: output, shape index: {1}]
  %9 = xla_tuple %s7, %s8
  %s10 = sld [smem:[#allocation0]]
  $region54: #{tpu_custom_call.1} parent=0
    _
  %s12 = ssub.s32 1, %s10
  %s13 = scalar_select 0, %s12, %s10
  %15 = dma.hbm_to_smem %s0, 16, [#allocation4], [#allocation3]
  %16 = dma.done [#allocation3], 16
  %17 = sfence
  $region1: #{tpu_custom_call.1} parent=0
    #allocation5 [shape = 'u8[131072]{0}', space=vmem, size = 0x20000, scoped, tag = 'input window, operand 2, single buffered']
    #allocation6 [shape = 's32[1]{0}', space=sflag, size = 0x4, scoped, tag = 'scoped memory for tpu_custom_call.1']
    #allocation7 [shape = 's32[1]{0}', space=sflag, size = 0x4, scoped, tag = 'scoped memory for tpu_custom_call.1']
    #allocation8 [shape = 'u8[262144]{0}', space=vmem, size = 0x40000, scoped, tag = 'input window, operand 3, single buffered']
    #allocation9 [shape = 's32[1]{0}', space=sflag, size = 0x4, scoped, tag = 'scoped memory for tpu_custom_call.1']
    #allocation10 [shape = 'u8[65536]{0}', space=vmem, size = 0x10000, scoped, tag = 'input window, operand 5, single buffered']
    #allocation11 [shape = 'u8[8192]{0}', space=vmem, size = 0x2000, scoped, tag = 'output window, operand 0, single buffered']
    #allocation12 [shape = 'u8[512]{0}', space=vmem, size = 0x400, scoped, tag = 'output window, operand 1, single buffered']
    #allocation13 [shape = 's32[1]{0}', space=sflag, size = 0x4, scoped, tag = 'scoped memory for tpu_custom_call.1']
    %18 = vsyncpa [#allocation6], 0
    %19 = vsyncpa [#allocation9], 0
    %20 = vsyncpa [#allocation7], 0
    %21 = vsyncpa [#allocation13], 0
    // Predicated region
    $region2: #{tpu_custom_call.1} parent=1 // pred_check
      _
    $region3: #{tpu_custom_call.1} parent=1 // pred_check_branch
      %23 = sbr.rel (0) target = $region5
    $region4: #{tpu_custom_call.1} parent=1 // pred_region
      _
    $region5: #{tpu_custom_call.1} parent=1 // pred_fallthru
      _
    // Predicated region
    $region6: #{tpu_custom_call.1} parent=1 // pred_check
      _
    $region7: #{tpu_custom_call.1} parent=1 // pred_check_branch
      %25 = sbr.rel (0) target = $region9
    $region8: #{tpu_custom_call.1} parent=1 // pred_region
      %s27 = ssub.s32 4096, 4096
      %28 = vsyncadd [#allocation6], %s27
      %s29 = sshll.u32 [#allocation5], 4
      %s30 = int_to_ptr.vmem [resolvable:$true] %s29
      %35 = dma.hbm_to_vmem [thread:$0]  %s2, 4096, %s30, [#allocation6], 128, 128, 8
    $region9: #{tpu_custom_call.1} parent=1 // pred_fallthru
      _
    // Predicated region
    $region10: #{tpu_custom_call.1} parent=1 // pred_check
      _
    $region11: #{tpu_custom_call.1} parent=1 // pred_check_branch
      %37 = sbr.rel (0) target = $region13
    $region12: #{tpu_custom_call.1} parent=1 // pred_region
      %s39 = ssub.s32 8192, 8192
      %40 = vsyncadd [#allocation9], %s39
      %s41 = sshll.u32 [#allocation8], 4
      %s42 = int_to_ptr.vmem [resolvable:$true] %s41
      %47 = dma.hbm_to_vmem [thread:$0]  %s3, 8192, %s42, [#allocation9], 256, 256, 16
    $region13: #{tpu_custom_call.1} parent=1 // pred_fallthru
      _
    // Predicated region
    $region14: #{tpu_custom_call.1} parent=1 // pred_check
      _
    $region15: #{tpu_custom_call.1} parent=1 // pred_check_branch
      %49 = sbr.rel (0) target = $region17
    $region16: #{tpu_custom_call.1} parent=1 // pred_region
      _
    $region17: #{tpu_custom_call.1} parent=1 // pred_fallthru
      _
    // Predicated region
    $region18: #{tpu_custom_call.1} parent=1 // pred_check
      _
    $region19: #{tpu_custom_call.1} parent=1 // pred_check_branch
      %51 = sbr.rel (0) target = $region21
    $region20: #{tpu_custom_call.1} parent=1 // pred_region
      %s53 = ssub.s32 2048, 2048
      %54 = vsyncadd [#allocation9], %s53
      %s55 = sshll.u32 [#allocation10], 4
      %s56 = int_to_ptr.vmem [resolvable:$true] %s55
      %61 = dma.hbm_to_vmem [thread:$0]  %s5, 2048, %s56, [#allocation9], 128, 128, 8
    $region21: #{tpu_custom_call.1} parent=1 // pred_fallthru
      _
    // Predicated region
    $region22: #{tpu_custom_call.1} parent=1 // pred_check
      _
    $region23: #{tpu_custom_call.1} parent=1 // pred_check_branch
      %63 = sbr.rel (0) target = $region25
    $region24: #{tpu_custom_call.1} parent=1 // pred_region
      _
    $region25: #{tpu_custom_call.1} parent=1 // pred_fallthru
      _
    // Predicated region
    $region26: #{tpu_custom_call.1} parent=1 // pred_check
      _
    $region27: #{tpu_custom_call.1} parent=1 // pred_check_branch
      %65 = sbr.rel (0) target = $region29
    $region28: #{tpu_custom_call.1} parent=1 // pred_region
      %66 = dma.done [#allocation6], 4096
    $region29: #{tpu_custom_call.1} parent=1 // pred_fallthru
      _
    // Predicated region
    $region30: #{tpu_custom_call.1} parent=1 // pred_check
      _
    $region31: #{tpu_custom_call.1} parent=1 // pred_check_branch
      %68 = sbr.rel (0) target = $region33
    $region32: #{tpu_custom_call.1} parent=1 // pred_region
      %69 = dma.done [#allocation9], 8192
    $region33: #{tpu_custom_call.1} parent=1 // pred_fallthru
      _
    // Predicated region
    $region34: #{tpu_custom_call.1} parent=1 // pred_check
      _
    $region35: #{tpu_custom_call.1} parent=1 // pred_check_branch
      %71 = sbr.rel (0) target = $region37
    $region36: #{tpu_custom_call.1} parent=1 // pred_region
      %72 = dma.done [#allocation9], 2048
    $region37: #{tpu_custom_call.1} parent=1 // pred_fallthru
      _
    %v74 = vld [vmem:[%s1] sm:$0x1]
    %s75 = sld [smem:[#allocation4]]
    %s76 = scalar_lea.vmem [#allocation5], %s75
    %v77 = vld [vmem:[%s76] sm:$0x1]
    %v78 = vpack.c.bf16 %v77, %v77
    %v79 = vpack.c.bf16 %v74, %v74
    %v80 = vld [vmem:[#allocation8] sm:$0xff]
    %v81 = vld [vmem:[#allocation8 + $0x8] sm:$0xff]
    %v82 = vld [vmem:[#allocation8 + $0x10] sm:$0xff]
    %v83 = vld [vmem:[#allocation8 + $0x18] sm:$0xff]
    %v84 = vld [vmem:[#allocation8 + $0x20] sm:$0xff]
    %v85 = vld [vmem:[#allocation8 + $0x28] sm:$0xff]
    %v86 = vld [vmem:[#allocation8 + $0x30] sm:$0xff]
    %v87 = vld [vmem:[#allocation8 + $0x38] sm:$0xff]
    %v88 = vld [vmem:[#allocation8 + $0x40] sm:$0xff]
    %v89 = vld [vmem:[#allocation8 + $0x48] sm:$0xff]
    %v90 = vld [vmem:[#allocation8 + $0x50] sm:$0xff]
    %v91 = vld [vmem:[#allocation8 + $0x58] sm:$0xff]
    %v92 = vld [vmem:[#allocation8 + $0x60] sm:$0xff]
    %v93 = vld [vmem:[#allocation8 + $0x68] sm:$0xff]
    %v94 = vld [vmem:[#allocation8 + $0x70] sm:$0xff]
    %v95 = vld [vmem:[#allocation8 + $0x78] sm:$0xff]
    %v96 = vld [vmem:[#allocation8 + $0x80] sm:$0xff]
    %v97 = vld [vmem:[#allocation8 + $0x88] sm:$0xff]
    %v98 = vld [vmem:[#allocation8 + $0x90] sm:$0xff]
    %v99 = vld [vmem:[#allocation8 + $0x98] sm:$0xff]
    %v100 = vld [vmem:[#allocation8 + $0xa0] sm:$0xff]
    %v101 = vld [vmem:[#allocation8 + $0xa8] sm:$0xff]
    %v102 = vld [vmem:[#allocation8 + $0xb0] sm:$0xff]
    %v103 = vld [vmem:[#allocation8 + $0xb8] sm:$0xff]
    %v104 = vld [vmem:[#allocation8 + $0xc0] sm:$0xff]
    %v105 = vld [vmem:[#allocation8 + $0xc8] sm:$0xff]
    %v106 = vld [vmem:[#allocation8 + $0xd0] sm:$0xff]
    %v107 = vld [vmem:[#allocation8 + $0xd8] sm:$0xff]
    %v108 = vld [vmem:[#allocation8 + $0xe0] sm:$0xff]
    %v109 = vld [vmem:[#allocation8 + $0xe8] sm:$0xff]
    %v110 = vld [vmem:[#allocation8 + $0xf0] sm:$0xff]
    %v111 = vld [vmem:[#allocation8 + $0xf8] sm:$0xff]
    %v112 = vld [vmem:[#allocation8 + $0x100] sm:$0xff]
    %v113 = vld [vmem:[#allocation8 + $0x108] sm:$0xff]
    %v114 = vld [vmem:[#allocation8 + $0x110] sm:$0xff]
    %v115 = vld [vmem:[#allocation8 + $0x118] sm:$0xff]
    %v116 = vld [vmem:[#allocation8 + $0x120] sm:$0xff]
    %v117 = vld [vmem:[#allocation8 + $0x128] sm:$0xff]
    %v118 = vld [vmem:[#allocation8 + $0x130] sm:$0xff]
    %v119 = vld [vmem:[#allocation8 + $0x138] sm:$0xff]
    %v120 = vld [vmem:[#allocation8 + $0x140] sm:$0xff]
    %v121 = vld [vmem:[#allocation8 + $0x148] sm:$0xff]
    %v122 = vld [vmem:[#allocation8 + $0x150] sm:$0xff]
    %v123 = vld [vmem:[#allocation8 + $0x158] sm:$0xff]
    %v124 = vld [vmem:[#allocation8 + $0x160] sm:$0xff]
    %v125 = vld [vmem:[#allocation8 + $0x168] sm:$0xff]
    %v126 = vld [vmem:[#allocation8 + $0x170] sm:$0xff]
    %v127 = vld [vmem:[#allocation8 + $0x178] sm:$0xff]
    %v128 = vld [vmem:[#allocation8 + $0x180] sm:$0xff]
    %v129 = vld [vmem:[#allocation8 + $0x188] sm:$0xff]
    %v130 = vld [vmem:[#allocation8 + $0x190] sm:$0xff]
    %v131 = vld [vmem:[#allocation8 + $0x198] sm:$0xff]
    %v132 = vld [vmem:[#allocation8 + $0x1a0] sm:$0xff]
    %v133 = vld [vmem:[#allocation8 + $0x1a8] sm:$0xff]
    %v134 = vld [vmem:[#allocation8 + $0x1b0] sm:$0xff]
    %v135 = vld [vmem:[#allocation8 + $0x1b8] sm:$0xff]
    %v136 = vld [vmem:[#allocation8 + $0x1c0] sm:$0xff]
    %v137 = vld [vmem:[#allocation8 + $0x1c8] sm:$0xff]
    %v138 = vld [vmem:[#allocation8 + $0x1d0] sm:$0xff]
    %v139 = vld [vmem:[#allocation8 + $0x1d8] sm:$0xff]
    %v140 = vld [vmem:[#allocation8 + $0x1e0] sm:$0xff]
    %v141 = vld [vmem:[#allocation8 + $0x1e8] sm:$0xff]
    %v142 = vld [vmem:[#allocation8 + $0x1f0] sm:$0xff]
    %v143 = vld [vmem:[#allocation8 + $0x1f8] sm:$0xff]
    %v144 = vld [vmem:[%s4] sm:$0xf]
    %v209 = vunpack.c.l.b16 %v80
    %v210 = vunpack.c.h.b16 %v80
    %v211 = vunpack.c.l.b16 %v81
    %v212 = vunpack.c.h.b16 %v81
    %v213 = vunpack.c.l.b16 %v82
    %v214 = vunpack.c.h.b16 %v82
    %v215 = vunpack.c.l.b16 %v83
    %v216 = vunpack.c.h.b16 %v83
    %v217 = vunpack.c.l.b16 %v84
    %v218 = vunpack.c.h.b16 %v84
    %v219 = vunpack.c.l.b16 %v85
    %v220 = vunpack.c.h.b16 %v85
    %v221 = vunpack.c.l.b16 %v86
    %v222 = vunpack.c.h.b16 %v86
    %v223 = vunpack.c.l.b16 %v87
    %v224 = vunpack.c.h.b16 %v87
    %v225 = vunpack.c.l.b16 %v88
    %v226 = vunpack.c.h.b16 %v88
    %v227 = vunpack.c.l.b16 %v89
    %v228 = vunpack.c.h.b16 %v89
    %v229 = vunpack.c.l.b16 %v90
    %v230 = vunpack.c.h.b16 %v90
    %v231 = vunpack.c.l.b16 %v91
    %v232 = vunpack.c.h.b16 %v91
    %v233 = vunpack.c.l.b16 %v92
    %v234 = vunpack.c.h.b16 %v92
    %v235 = vunpack.c.l.b16 %v93
    %v236 = vunpack.c.h.b16 %v93
    %v237 = vunpack.c.l.b16 %v94
    %v238 = vunpack.c.h.b16 %v94
    %v239 = vunpack.c.l.b16 %v95
    %v240 = vunpack.c.h.b16 %v95
    %v241 = vunpack.c.l.b16 %v96
    %v242 = vunpack.c.h.b16 %v96
    %v243 = vunpack.c.l.b16 %v97
    %v244 = vunpack.c.h.b16 %v97
    %v245 = vunpack.c.l.b16 %v98
    %v246 = vunpack.c.h.b16 %v98
    %v247 = vunpack.c.l.b16 %v99
    %v248 = vunpack.c.h.b16 %v99
    %v249 = vunpack.c.l.b16 %v100
    %v250 = vunpack.c.h.b16 %v100
    %v251 = vunpack.c.l.b16 %v101
    %v252 = vunpack.c.h.b16 %v101
    %v253 = vunpack.c.l.b16 %v102
    %v254 = vunpack.c.h.b16 %v102
    %v255 = vunpack.c.l.b16 %v103
    %v256 = vunpack.c.h.b16 %v103
    %v257 = vunpack.c.l.b16 %v104
    %v258 = vunpack.c.h.b16 %v104
    %v259 = vunpack.c.l.b16 %v105
    %v260 = vunpack.c.h.b16 %v105
    %v261 = vunpack.c.l.b16 %v106
    %v262 = vunpack.c.h.b16 %v106
    %v263 = vunpack.c.l.b16 %v107
    %v264 = vunpack.c.h.b16 %v107
    %v265 = vunpack.c.l.b16 %v108
    %v266 = vunpack.c.h.b16 %v108
    %v267 = vunpack.c.l.b16 %v109
    %v268 = vunpack.c.h.b16 %v109
    %v269 = vunpack.c.l.b16 %v110
    %v270 = vunpack.c.h.b16 %v110
    %v271 = vunpack.c.l.b16 %v111
    %v272 = vunpack.c.h.b16 %v111
    %v273 = vunpack.c.l.b16 %v112
    %v274 = vunpack.c.h.b16 %v112
    %v275 = vunpack.c.l.b16 %v113
    %v276 = vunpack.c.h.b16 %v113
    %v277 = vunpack.c.l.b16 %v114
    %v278 = vunpack.c.h.b16 %v114
    %v279 = vunpack.c.l.b16 %v115
    %v280 = vunpack.c.h.b16 %v115
    %v281 = vunpack.c.l.b16 %v116
    %v282 = vunpack.c.h.b16 %v116
    %v283 = vunpack.c.l.b16 %v117
    %v284 = vunpack.c.h.b16 %v117
    %v285 = vunpack.c.l.b16 %v118
    %v286 = vunpack.c.h.b16 %v118
    %v287 = vunpack.c.l.b16 %v119
    %v288 = vunpack.c.h.b16 %v119
    %v289 = vunpack.c.l.b16 %v120
    %v290 = vunpack.c.h.b16 %v120
    %v291 = vunpack.c.l.b16 %v121
    %v292 = vunpack.c.h.b16 %v121
    %v293 = vunpack.c.l.b16 %v122
    %v294 = vunpack.c.h.b16 %v122
    %v295 = vunpack.c.l.b16 %v123
    %v296 = vunpack.c.h.b16 %v123
    %v297 = vunpack.c.l.b16 %v124
    %v298 = vunpack.c.h.b16 %v124
    %v299 = vunpack.c.l.b16 %v125
    %v300 = vunpack.c.h.b16 %v125
    %v301 = vunpack.c.l.b16 %v126
    %v302 = vunpack.c.h.b16 %v126
    %v303 = vunpack.c.l.b16 %v127
    %v304 = vunpack.c.h.b16 %v127
    %v305 = vunpack.c.l.b16 %v128
    %v306 = vunpack.c.h.b16 %v128
    %v307 = vunpack.c.l.b16 %v129
    %v308 = vunpack.c.h.b16 %v129
    %v309 = vunpack.c.l.b16 %v130
    %v310 = vunpack.c.h.b16 %v130
    %v311 = vunpack.c.l.b16 %v131
    %v312 = vunpack.c.h.b16 %v131
    %v313 = vunpack.c.l.b16 %v132
    %v314 = vunpack.c.h.b16 %v132
    %v315 = vunpack.c.l.b16 %v133
    %v316 = vunpack.c.h.b16 %v133
    %v317 = vunpack.c.l.b16 %v134
    %v318 = vunpack.c.h.b16 %v134
    %v319 = vunpack.c.l.b16 %v135
    %v320 = vunpack.c.h.b16 %v135
    %v321 = vunpack.c.l.b16 %v136
    %v322 = vunpack.c.h.b16 %v136
    %v323 = vunpack.c.l.b16 %v137
    %v324 = vunpack.c.h.b16 %v137
    %v325 = vunpack.c.l.b16 %v138
    %v326 = vunpack.c.h.b16 %v138
    %v327 = vunpack.c.l.b16 %v139
    %v328 = vunpack.c.h.b16 %v139
    %v329 = vunpack.c.l.b16 %v140
    %v330 = vunpack.c.h.b16 %v140
    %v331 = vunpack.c.l.b16 %v141
    %v332 = vunpack.c.h.b16 %v141
    %v333 = vunpack.c.l.b16 %v142
    %v334 = vunpack.c.h.b16 %v142
    %v335 = vunpack.c.l.b16 %v143
    %v336 = vunpack.c.h.b16 %v143
    %v337 = vpack.c.b16 %v213, %v209
    %v338 = vpack.c.b16 %v214, %v210
    %v339 = vpack.c.b16 %v215, %v211
    %v340 = vpack.c.b16 %v216, %v212
    %v341 = vpack.c.b16 %v221, %v217
    %v342 = vpack.c.b16 %v222, %v218
    %v343 = vpack.c.b16 %v223, %v219
    %v344 = vpack.c.b16 %v224, %v220
    %v345 = vpack.c.b16 %v229, %v225
    %v346 = vpack.c.b16 %v230, %v226
    %v347 = vpack.c.b16 %v231, %v227
    %v348 = vpack.c.b16 %v232, %v228
    %v349 = vpack.c.b16 %v237, %v233
    %v350 = vpack.c.b16 %v238, %v234
    %v351 = vpack.c.b16 %v239, %v235
    %v352 = vpack.c.b16 %v240, %v236
    %v353 = vpack.c.b16 %v245, %v241
    %v354 = vpack.c.b16 %v246, %v242
    %v355 = vpack.c.b16 %v247, %v243
    %v356 = vpack.c.b16 %v248, %v244
    %v357 = vpack.c.b16 %v253, %v249
    %v358 = vpack.c.b16 %v254, %v250
    %v359 = vpack.c.b16 %v255, %v251
    %v360 = vpack.c.b16 %v256, %v252
    %v361 = vpack.c.b16 %v261, %v257
    %v362 = vpack.c.b16 %v262, %v258
    %v363 = vpack.c.b16 %v263, %v259
    %v364 = vpack.c.b16 %v264, %v260
    %v365 = vpack.c.b16 %v269, %v265
    %v366 = vpack.c.b16 %v270, %v266
    %v367 = vpack.c.b16 %v271, %v267
    %v368 = vpack.c.b16 %v272, %v268
    %v369 = vpack.c.b16 %v277, %v273
    %v370 = vpack.c.b16 %v278, %v274
    %v371 = vpack.c.b16 %v279, %v275
    %v372 = vpack.c.b16 %v280, %v276
    %v373 = vpack.c.b16 %v285, %v281
    %v374 = vpack.c.b16 %v286, %v282
    %v375 = vpack.c.b16 %v287, %v283
    %v376 = vpack.c.b16 %v288, %v284
    %v377 = vpack.c.b16 %v293, %v289
    %v378 = vpack.c.b16 %v294, %v290
    %v379 = vpack.c.b16 %v295, %v291
    %v380 = vpack.c.b16 %v296, %v292
    %v381 = vpack.c.b16 %v301, %v297
    %v382 = vpack.c.b16 %v302, %v298
    %v383 = vpack.c.b16 %v303, %v299
    %v384 = vpack.c.b16 %v304, %v300
    %v385 = vpack.c.b16 %v309, %v305
    %v386 = vpack.c.b16 %v310, %v306
    %v387 = vpack.c.b16 %v311, %v307
    %v388 = vpack.c.b16 %v312, %v308
    %v389 = vpack.c.b16 %v317, %v313
    %v390 = vpack.c.b16 %v318, %v314
    %v391 = vpack.c.b16 %v319, %v315
    %v392 = vpack.c.b16 %v320, %v316
    %v393 = vpack.c.b16 %v325, %v321
    %v394 = vpack.c.b16 %v326, %v322
    %v395 = vpack.c.b16 %v327, %v323
    %v396 = vpack.c.b16 %v328, %v324
    %v397 = vpack.c.b16 %v333, %v329
    %v398 = vpack.c.b16 %v334, %v330
    %v399 = vpack.c.b16 %v335, %v331
    %v400 = vpack.c.b16 %v336, %v332
    %v466 = vlaneseq
    %v467 = vshrl.u32 %v466, 7
    %v468 = vsub.s32 0, %v467
    %v469 = vrot.slane %v144, %v468
    %v470 = vlaneseq
    %v471 = vshrl.u32 %v470, 7
    %v472 = vsub.s32 1, %v471
    %v473 = vrot.slane %v144, %v472
    %v474 = vlaneseq
    %v475 = vshrl.u32 %v474, 7
    %v476 = vsub.s32 2, %v475
    %v477 = vrot.slane %v144, %v476
    %v478 = vlaneseq
    %v479 = vshrl.u32 %v478, 7
    %v480 = vsub.s32 3, %v479
    %v481 = vrot.slane %v144, %v480
    %486 = vmatprep.subr.bf16.mxu0 %v338
    %487 = vmatpush1.bf16.msra.mxu0 %v337
    %488 = vmatprep.subr.bf16.mxu0 %v342
    %489 = vmatpush1.bf16.msra.mxu0 %v341
    %490 = vmatprep.subr.bf16.mxu0 %v346
    %491 = vmatpush1.bf16.msra.mxu0 %v345
    %492 = vmatprep.subr.bf16.mxu0 %v350
    %493 = vmatpush1.bf16.msra.mxu0 %v349
    %494 = vmatprep.subr.bf16.mxu0 %v354
    %495 = vmatpush1.bf16.msra.mxu0 %v353
    %496 = vmatprep.subr.bf16.mxu0 %v358
    %497 = vmatpush1.bf16.msra.mxu0 %v357
    %498 = vmatprep.subr.bf16.mxu0 %v362
    %499 = vmatpush1.bf16.msra.mxu0 %v361
    %500 = vmatprep.subr.bf16.mxu0 %v366
    %501 = vmatpush1.bf16.msra.mxu0 %v365
    %502 = vmatprep.subr.bf16.mxu0 %v370
    %503 = vmatpush1.bf16.msra.mxu0 %v369
    %504 = vmatprep.subr.bf16.mxu0 %v374
    %505 = vmatpush1.bf16.msra.mxu0 %v373
    %506 = vmatprep.subr.bf16.mxu0 %v378
    %507 = vmatpush1.bf16.msra.mxu0 %v377
    %508 = vmatprep.subr.bf16.mxu0 %v382
    %509 = vmatpush1.bf16.msra.mxu0 %v381
    %510 = vmatprep.subr.bf16.mxu0 %v386
    %511 = vmatpush1.bf16.msra.mxu0 %v385
    %512 = vmatprep.subr.bf16.mxu0 %v390
    %513 = vmatpush1.bf16.msra.mxu0 %v389
    %514 = vmatprep.subr.bf16.mxu0 %v394
    %515 = vmatpush1.bf16.msra.mxu0 %v393
    %516 = vmatprep.subr.bf16.mxu0 %v398
    %517 = vmatpush1.bf16.msra.mxu0 %v397
    %518 = vmatprep.mubr.bf16.mxu0 %v79
    %519 = vmatmul.mubr.bf16.gmra.mrb[0].mxu0 %v78
    %v520 = vpop.f32.mrb[0].mxu0
    %v521 = vadd.f32 %v469, %v520
    %v522 = vpop.f32.mrb[0].mxu0
    %v523 = vadd.f32 %v473, %v522
    %v524 = vpop.f32.mrb[0].mxu0
    %v525 = vpop.f32.mrb[0].mxu0
    %526 = vdwg.mxu0
    %527 = vmatprep.subr.bf16.mxu0 %v340
    %528 = vmatpush1.bf16.msra.mxu0 %v339
    %529 = vmatprep.subr.bf16.mxu0 %v344
    %530 = vmatpush1.bf16.msra.mxu0 %v343
    %531 = vmatprep.subr.bf16.mxu0 %v348
    %532 = vmatpush1.bf16.msra.mxu0 %v347
    %533 = vmatprep.subr.bf16.mxu0 %v352
    %534 = vmatpush1.bf16.msra.mxu0 %v351
    %535 = vmatprep.subr.bf16.mxu0 %v356
    %536 = vmatpush1.bf16.msra.mxu0 %v355
    %537 = vmatprep.subr.bf16.mxu0 %v360
    %538 = vmatpush1.bf16.msra.mxu0 %v359
    %539 = vmatprep.subr.bf16.mxu0 %v364
    %540 = vmatpush1.bf16.msra.mxu0 %v363
    %541 = vmatprep.subr.bf16.mxu0 %v368
    %542 = vmatpush1.bf16.msra.mxu0 %v367
    %543 = vmatprep.subr.bf16.mxu0 %v372
    %544 = vmatpush1.bf16.msra.mxu0 %v371
    %545 = vmatprep.subr.bf16.mxu0 %v376
    %546 = vmatpush1.bf16.msra.mxu0 %v375
    %547 = vmatprep.subr.bf16.mxu0 %v380
    %548 = vmatpush1.bf16.msra.mxu0 %v379
    %549 = vmatprep.subr.bf16.mxu0 %v384
    %550 = vmatpush1.bf16.msra.mxu0 %v383
    %551 = vmatprep.subr.bf16.mxu0 %v388
    %552 = vmatpush1.bf16.msra.mxu0 %v387
    %553 = vmatprep.subr.bf16.mxu0 %v392
    %554 = vmatpush1.bf16.msra.mxu0 %v391
    %555 = vmatprep.subr.bf16.mxu0 %v396
    %556 = vmatpush1.bf16.msra.mxu0 %v395
    %557 = vmatprep.subr.bf16.mxu0 %v400
    %558 = vmatpush1.bf16.msra.mxu0 %v399
    %559 = vmatprep.mubr.bf16.mxu0 %v79
    %560 = vmatmul.mubr.bf16.gmra.mrb[0].mxu0 %v78
    %v561 = vpop.f32.mrb[0].mxu0
    %v562 = vadd.f32 %v477, %v561
    %v563 = vpop.f32.mrb[0].mxu0
    %v564 = vadd.f32 %v481, %v563
    %v565 = vpop.f32.mrb[0].mxu0
    %v566 = vpop.f32.mrb[0].mxu0
    %567 = vdwg.mxu0
    %v568 = vxor.u32 %v521, 2147483648
    %v569 = vmul.f32 %v568, 1.442695
    %v570 = vpow.pop %v569
    %v571 = vadd.f32 %v570, 1.0
    %v572 = vrcp.pop %v571
    %v573 = vmul.f32 1.0, %v572
    %v574 = vxor.u32 %v523, 2147483648
    %v575 = vmul.f32 %v574, 1.442695
    %v576 = vpow.pop %v575
    %v577 = vadd.f32 %v576, 1.0
    %v578 = vrcp.pop %v577
    %v579 = vmul.f32 1.0, %v578
    %v580 = vmul.f32 %v573, %v564
    %v581 = vadd.f32 %v562, %v580
    %v582 = vtanh.pop %v581
    %v583 = vsub.f32 1.0, %v579
    %v584 = vmul.f32 %v583, %v582
    %v585 = vmul.f32 %v579, %v74
    %v586 = vadd.f32 %v584, %v585
    %587 = vst [vmem:[#allocation2] sm:$0x1] %v586
    %s588 = sld [smem:[#allocation4 + $0x1]]
    %s589 = scalar_lea.vmem [#allocation5], %s588
    %v590 = vld [vmem:[%s589] sm:$0x1]
    %v591 = vpack.c.bf16 %v590, %v590
    %v592 = vpack.c.bf16 %v586, %v586
    %v593 = vld [vmem:[#allocation8] sm:$0xff]
    %v594 = vld [vmem:[#allocation8 + $0x8] sm:$0xff]
    %v595 = vld [vmem:[#allocation8 + $0x10] sm:$0xff]
    %v596 = vld [vmem:[#allocation8 + $0x18] sm:$0xff]
    %v597 = vld [vmem:[#allocation8 + $0x20] sm:$0xff]
    %v598 = vld [vmem:[#allocation8 + $0x28] sm:$0xff]
    %v599 = vld [vmem:[#allocation8 + $0x30] sm:$0xff]
    %v600 = vld [vmem:[#allocation8 + $0x38] sm:$0xff]
    %v601 = vld [vmem:[#allocation8 + $0x40] sm:$0xff]
    %v602 = vld [vmem:[#allocation8 + $0x48] sm:$0xff]
    %v603 = vld [vmem:[#allocation8 + $0x50] sm:$0xff]
    %v604 = vld [vmem:[#allocation8 + $0x58] sm:$0xff]
    %v605 = vld [vmem:[#allocation8 + $0x60] sm:$0xff]
    %v606 = vld [vmem:[#allocation8 + $0x68] sm:$0xff]
    %v607 = vld [vmem:[#allocation8 + $0x70] sm:$0xff]
    %v608 = vld [vmem:[#allocation8 + $0x78] sm:$0xff]
    %v609 = vld [vmem:[#allocation8 + $0x80] sm:$0xff]
    %v610 = vld [vmem:[#allocation8 + $0x88] sm:$0xff]
    %v611 = vld [vmem:[#allocation8 + $0x90] sm:$0xff]
    %v612 = vld [vmem:[#allocation8 + $0x98] sm:$0xff]
    %v613 = vld [vmem:[#allocation8 + $0xa0] sm:$0xff]
    %v614 = vld [vmem:[#allocation8 + $0xa8] sm:$0xff]
    %v615 = vld [vmem:[#allocation8 + $0xb0] sm:$0xff]
    %v616 = vld [vmem:[#allocation8 + $0xb8] sm:$0xff]
    %v617 = vld [vmem:[#allocation8 + $0xc0] sm:$0xff]
    %v618 = vld [vmem:[#allocation8 + $0xc8] sm:$0xff]
    %v619 = vld [vmem:[#allocation8 + $0xd0] sm:$0xff]
    %v620 = vld [vmem:[#allocation8 + $0xd8] sm:$0xff]
    %v621 = vld [vmem:[#allocation8 + $0xe0] sm:$0xff]
    %v622 = vld [vmem:[#allocation8 + $0xe8] sm:$0xff]
    %v623 = vld [vmem:[#allocation8 + $0xf0] sm:$0xff]
    %v624 = vld [vmem:[#allocation8 + $0xf8] sm:$0xff]
    %v625 = vld [vmem:[#allocation8 + $0x100] sm:$0xff]
    %v626 = vld [vmem:[#allocation8 + $0x108] sm:$0xff]
    %v627 = vld [vmem:[#allocation8 + $0x110] sm:$0xff]
    %v628 = vld [vmem:[#allocation8 + $0x118] sm:$0xff]
    %v629 = vld [vmem:[#allocation8 + $0x120] sm:$0xff]
    %v630 = vld [vmem:[#allocation8 + $0x128] sm:$0xff]
    %v631 = vld [vmem:[#allocation8 + $0x130] sm:$0xff]
    %v632 = vld [vmem:[#allocation8 + $0x138] sm:$0xff]
    %v633 = vld [vmem:[#allocation8 + $0x140] sm:$0xff]
    %v634 = vld [vmem:[#allocation8 + $0x148] sm:$0xff]
    %v635 = vld [vmem:[#allocation8 + $0x150] sm:$0xff]
    %v636 = vld [vmem:[#allocation8 + $0x158] sm:$0xff]
    %v637 = vld [vmem:[#allocation8 + $0x160] sm:$0xff]
    %v638 = vld [vmem:[#allocation8 + $0x168] sm:$0xff]
    %v639 = vld [vmem:[#allocation8 + $0x170] sm:$0xff]
    %v640 = vld [vmem:[#allocation8 + $0x178] sm:$0xff]
    %v641 = vld [vmem:[#allocation8 + $0x180] sm:$0xff]
    %v642 = vld [vmem:[#allocation8 + $0x188] sm:$0xff]
    %v643 = vld [vmem:[#allocation8 + $0x190] sm:$0xff]
    %v644 = vld [vmem:[#allocation8 + $0x198] sm:$0xff]
    %v645 = vld [vmem:[#allocation8 + $0x1a0] sm:$0xff]
    %v646 = vld [vmem:[#allocation8 + $0x1a8] sm:$0xff]
    %v647 = vld [vmem:[#allocation8 + $0x1b0] sm:$0xff]
    %v648 = vld [vmem:[#allocation8 + $0x1b8] sm:$0xff]
    %v649 = vld [vmem:[#allocation8 + $0x1c0] sm:$0xff]
    %v650 = vld [vmem:[#allocation8 + $0x1c8] sm:$0xff]
    %v651 = vld [vmem:[#allocation8 + $0x1d0] sm:$0xff]
    %v652 = vld [vmem:[#allocation8 + $0x1d8] sm:$0xff]
    %v653 = vld [vmem:[#allocation8 + $0x1e0] sm:$0xff]
    %v654 = vld [vmem:[#allocation8 + $0x1e8] sm:$0xff]
    %v655 = vld [vmem:[#allocation8 + $0x1f0] sm:$0xff]
    %v656 = vld [vmem:[#allocation8 + $0x1f8] sm:$0xff]
    %v657 = vld [vmem:[%s4] sm:$0xf]
    %v722 = vunpack.c.l.b16 %v593
    %v723 = vunpack.c.h.b16 %v593
    %v724 = vunpack.c.l.b16 %v594
    %v725 = vunpack.c.h.b16 %v594
    %v726 = vunpack.c.l.b16 %v595
    %v727 = vunpack.c.h.b16 %v595
    %v728 = vunpack.c.l.b16 %v596
    %v729 = vunpack.c.h.b16 %v596
    %v730 = vunpack.c.l.b16 %v597
    %v731 = vunpack.c.h.b16 %v597
    %v732 = vunpack.c.l.b16 %v598
    %v733 = vunpack.c.h.b16 %v598
    %v734 = vunpack.c.l.b16 %v599
    %v735 = vunpack.c.h.b16 %v599
    %v736 = vunpack.c.l.b16 %v600
    %v737 = vunpack.c.h.b16 %v600
    %v738 = vunpack.c.l.b16 %v601
    %v739 = vunpack.c.h.b16 %v601
    %v740 = vunpack.c.l.b16 %v602
    %v741 = vunpack.c.h.b16 %v602
    %v742 = vunpack.c.l.b16 %v603
    %v743 = vunpack.c.h.b16 %v603
    %v744 = vunpack.c.l.b16 %v604
    %v745 = vunpack.c.h.b16 %v604
    %v746 = vunpack.c.l.b16 %v605
    %v747 = vunpack.c.h.b16 %v605
    %v748 = vunpack.c.l.b16 %v606
    %v749 = vunpack.c.h.b16 %v606
    %v750 = vunpack.c.l.b16 %v607
    %v751 = vunpack.c.h.b16 %v607
    %v752 = vunpack.c.l.b16 %v608
    %v753 = vunpack.c.h.b16 %v608
    %v754 = vunpack.c.l.b16 %v609
    %v755 = vunpack.c.h.b16 %v609
    %v756 = vunpack.c.l.b16 %v610
    %v757 = vunpack.c.h.b16 %v610
    %v758 = vunpack.c.l.b16 %v611
    %v759 = vunpack.c.h.b16 %v611
    %v760 = vunpack.c.l.b16 %v612
    %v761 = vunpack.c.h.b16 %v612
    %v762 = vunpack.c.l.b16 %v613
    %v763 = vunpack.c.h.b16 %v613
    %v764 = vunpack.c.l.b16 %v614
    %v765 = vunpack.c.h.b16 %v614
    %v766 = vunpack.c.l.b16 %v615
    %v767 = vunpack.c.h.b16 %v615
    %v768 = vunpack.c.l.b16 %v616
    %v769 = vunpack.c.h.b16 %v616
    %v770 = vunpack.c.l.b16 %v617
    %v771 = vunpack.c.h.b16 %v617
    %v772 = vunpack.c.l.b16 %v618
    %v773 = vunpack.c.h.b16 %v618
    %v774 = vunpack.c.l.b16 %v619
    %v775 = vunpack.c.h.b16 %v619
    %v776 = vunpack.c.l.b16 %v620
    %v777 = vunpack.c.h.b16 %v620
    %v778 = vunpack.c.l.b16 %v621
    %v779 = vunpack.c.h.b16 %v621
    %v780 = vunpack.c.l.b16 %v622
    %v781 = vunpack.c.h.b16 %v622
    %v782 = vunpack.c.l.b16 %v623
    %v783 = vunpack.c.h.b16 %v623
    %v784 = vunpack.c.l.b16 %v624
    %v785 = vunpack.c.h.b16 %v624
    %v786 = vunpack.c.l.b16 %v625
    %v787 = vunpack.c.h.b16 %v625
    %v788 = vunpack.c.l.b16 %v626
    %v789 = vunpack.c.h.b16 %v626
    %v790 = vunpack.c.l.b16 %v627
    %v791 = vunpack.c.h.b16 %v627
    %v792 = vunpack.c.l.b16 %v628
    %v793 = vunpack.c.h.b16 %v628
    %v794 = vunpack.c.l.b16 %v629
    %v795 = vunpack.c.h.b16 %v629
    %v796 = vunpack.c.l.b16 %v630
    %v797 = vunpack.c.h.b16 %v630
    %v798 = vunpack.c.l.b16 %v631
    %v799 = vunpack.c.h.b16 %v631
    %v800 = vunpack.c.l.b16 %v632
    %v801 = vunpack.c.h.b16 %v632
    %v802 = vunpack.c.l.b16 %v633
    %v803 = vunpack.c.h.b16 %v633
    %v804 = vunpack.c.l.b16 %v634
    %v805 = vunpack.c.h.b16 %v634
    %v806 = vunpack.c.l.b16 %v635
    %v807 = vunpack.c.h.b16 %v635
    %v808 = vunpack.c.l.b16 %v636
    %v809 = vunpack.c.h.b16 %v636
    %v810 = vunpack.c.l.b16 %v637
    %v811 = vunpack.c.h.b16 %v637
    %v812 = vunpack.c.l.b16 %v638
    %v813 = vunpack.c.h.b16 %v638
    %v814 = vunpack.c.l.b16 %v639
    %v815 = vunpack.c.h.b16 %v639
    %v816 = vunpack.c.l.b16 %v640
    %v817 = vunpack.c.h.b16 %v640
    %v818 = vunpack.c.l.b16 %v641
    %v819 = vunpack.c.h.b16 %v641
    %v820 = vunpack.c.l.b16 %v642
    %v821 = vunpack.c.h.b16 %v642
    %v822 = vunpack.c.l.b16 %v643
    %v823 = vunpack.c.h.b16 %v643
    %v824 = vunpack.c.l.b16 %v644
    %v825 = vunpack.c.h.b16 %v644
    %v826 = vunpack.c.l.b16 %v645
    %v827 = vunpack.c.h.b16 %v645
    %v828 = vunpack.c.l.b16 %v646
    %v829 = vunpack.c.h.b16 %v646
    %v830 = vunpack.c.l.b16 %v647
    %v831 = vunpack.c.h.b16 %v647
    %v832 = vunpack.c.l.b16 %v648
    %v833 = vunpack.c.h.b16 %v648
    %v834 = vunpack.c.l.b16 %v649
    %v835 = vunpack.c.h.b16 %v649
    %v836 = vunpack.c.l.b16 %v650
    %v837 = vunpack.c.h.b16 %v650
    %v838 = vunpack.c.l.b16 %v651
    %v839 = vunpack.c.h.b16 %v651
    %v840 = vunpack.c.l.b16 %v652
    %v841 = vunpack.c.h.b16 %v652
    %v842 = vunpack.c.l.b16 %v653
    %v843 = vunpack.c.h.b16 %v653
    %v844 = vunpack.c.l.b16 %v654
    %v845 = vunpack.c.h.b16 %v654
    %v846 = vunpack.c.l.b16 %v655
    %v847 = vunpack.c.h.b16 %v655
    %v848 = vunpack.c.l.b16 %v656
    %v849 = vunpack.c.h.b16 %v656
    %v850 = vpack.c.b16 %v726, %v722
    %v851 = vpack.c.b16 %v727, %v723
    %v852 = vpack.c.b16 %v728, %v724
    %v853 = vpack.c.b16 %v729, %v725
    %v854 = vpack.c.b16 %v734, %v730
    %v855 = vpack.c.b16 %v735, %v731
    %v856 = vpack.c.b16 %v736, %v732
    %v857 = vpack.c.b16 %v737, %v733
    %v858 = vpack.c.b16 %v742, %v738
    %v859 = vpack.c.b16 %v743, %v739
    %v860 = vpack.c.b16 %v744, %v740
    %v861 = vpack.c.b16 %v745, %v741
    %v862 = vpack.c.b16 %v750, %v746
    %v863 = vpack.c.b16 %v751, %v747
    %v864 = vpack.c.b16 %v752, %v748
    %v865 = vpack.c.b16 %v753, %v749
    %v866 = vpack.c.b16 %v758, %v754
    %v867 = vpack.c.b16 %v759, %v755
    %v868 = vpack.c.b16 %v760, %v756
    %v869 = vpack.c.b16 %v761, %v757
    %v870 = vpack.c.b16 %v766, %v762
    %v871 = vpack.c.b16 %v767, %v763
    %v872 = vpack.c.b16 %v768, %v764
    %v873 = vpack.c.b16 %v769, %v765
    %v874 = vpack.c.b16 %v774, %v770
    %v875 = vpack.c.b16 %v775, %v771
    %v876 = vpack.c.b16 %v776, %v772
    %v877 = vpack.c.b16 %v777, %v773
    %v878 = vpack.c.b16 %v782, %v778
    %v879 = vpack.c.b16 %v783, %v779
    %v880 = vpack.c.b16 %v784, %v780
    %v881 = vpack.c.b16 %v785, %v781
    %v882 = vpack.c.b16 %v790, %v786
    %v883 = vpack.c.b16 %v791, %v787
    %v884 = vpack.c.b16 %v792, %v788
    %v885 = vpack.c.b16 %v793, %v789
    %v886 = vpack.c.b16 %v798, %v794
    %v887 = vpack.c.b16 %v799, %v795
    %v888 = vpack.c.b16 %v800, %v796
    %v889 = vpack.c.b16 %v801, %v797
    %v890 = vpack.c.b16 %v806, %v802
    %v891 = vpack.c.b16 %v807, %v803
    %v892 = vpack.c.b16 %v808, %v804
    %v893 = vpack.c.b16 %v809, %v805
    %v894 = vpack.c.b16 %v814, %v810
    %v895 = vpack.c.b16 %v815, %v811
    %v896 = vpack.c.b16 %v816, %v812
    %v897 = vpack.c.b16 %v817, %v813
    %v898 = vpack.c.b16 %v822, %v818
    %v899 = vpack.c.b16 %v823, %v819
    %v900 = vpack.c.b16 %v824, %v820
    %v901 = vpack.c.b16 %v825, %v821
    %v902 = vpack.c.b16 %v830, %v826
    %v903 = vpack.c.b16 %v831, %v827
    %v904 = vpack.c.b16 %v832, %v828
    %v905 = vpack.c.b16 %v833, %v829
    %v906 = vpack.c.b16 %v838, %v834
    %v907 = vpack.c.b16 %v839, %v835
    %v908 = vpack.c.b16 %v840, %v836
    %v909 = vpack.c.b16 %v841, %v837
    %v910 = vpack.c.b16 %v846, %v842
    %v911 = vpack.c.b16 %v847, %v843
    %v912 = vpack.c.b16 %v848, %v844
    %v913 = vpack.c.b16 %v849, %v845
    %v979 = vlaneseq
    %v980 = vshrl.u32 %v979, 7
    %v981 = vsub.s32 0, %v980
    %v982 = vrot.slane %v657, %v981
    %v983 = vlaneseq
    %v984 = vshrl.u32 %v983, 7
    %v985 = vsub.s32 1, %v984
    %v986 = vrot.slane %v657, %v985
    %v987 = vlaneseq
    %v988 = vshrl.u32 %v987, 7
    %v989 = vsub.s32 2, %v988
    %v990 = vrot.slane %v657, %v989
    %v991 = vlaneseq
    %v992 = vshrl.u32 %v991, 7
    %v993 = vsub.s32 3, %v992
    %v994 = vrot.slane %v657, %v993
    %999 = vmatprep.subr.bf16.mxu0 %v851
    %1000 = vmatpush1.bf16.msra.mxu0 %v850
    %1001 = vmatprep.subr.bf16.mxu0 %v855
    %1002 = vmatpush1.bf16.msra.mxu0 %v854
    %1003 = vmatprep.subr.bf16.mxu0 %v859
    %1004 = vmatpush1.bf16.msra.mxu0 %v858
    %1005 = vmatprep.subr.bf16.mxu0 %v863
    %1006 = vmatpush1.bf16.msra.mxu0 %v862
    %1007 = vmatprep.subr.bf16.mxu0 %v867
    %1008 = vmatpush1.bf16.msra.mxu0 %v866
    %1009 = vmatprep.subr.bf16.mxu0 %v871
    %1010 = vmatpush1.bf16.msra.mxu0 %v870
    %1011 = vmatprep.subr.bf16.mxu0 %v875
    %1012 = vmatpush1.bf16.msra.mxu0 %v874
    %1013 = vmatprep.subr.bf16.mxu0 %v879
    %1014 = vmatpush1.bf16.msra.mxu0 %v878
    %1015 = vmatprep.subr.bf16.mxu0 %v883
    %1016 = vmatpush1.bf16.msra.mxu0 %v882
    %1017 = vmatprep.subr.bf16.mxu0 %v887
    %1018 = vmatpush1.bf16.msra.mxu0 %v886
    %1019 = vmatprep.subr.bf16.mxu0 %v891
    %1020 = vmatpush1.bf16.msra.mxu0 %v890
    %1021 = vmatprep.subr.bf16.mxu0 %v895
    %1022 = vmatpush1.bf16.msra.mxu0 %v894
    %1023 = vmatprep.subr.bf16.mxu0 %v899
    %1024 = vmatpush1.bf16.msra.mxu0 %v898
    %1025 = vmatprep.subr.bf16.mxu0 %v903
    %1026 = vmatpush1.bf16.msra.mxu0 %v902
    %1027 = vmatprep.subr.bf16.mxu0 %v907
    %1028 = vmatpush1.bf16.msra.mxu0 %v906
    %1029 = vmatprep.subr.bf16.mxu0 %v911
    %1030 = vmatpush1.bf16.msra.mxu0 %v910
    %1031 = vmatprep.mubr.bf16.mxu0 %v592
    %1032 = vmatmul.mubr.bf16.gmra.mrb[0].mxu0 %v591
    %v1033 = vpop.f32.mrb[0].mxu0
    %v1034 = vadd.f32 %v982, %v1033
    %v1035 = vpop.f32.mrb[0].mxu0
    %v1036 = vadd.f32 %v986, %v1035
    %v1037 = vpop.f32.mrb[0].mxu0
    %v1038 = vpop.f32.mrb[0].mxu0
    %1039 = vdwg.mxu0
    %1040 = vmatprep.subr.bf16.mxu0 %v853
    %1041 = vmatpush1.bf16.msra.mxu0 %v852
    %1042 = vmatprep.subr.bf16.mxu0 %v857
    %1043 = vmatpush1.bf16.msra.mxu0 %v856
    %1044 = vmatprep.subr.bf16.mxu0 %v861
    %1045 = vmatpush1.bf16.msra.mxu0 %v860
    %1046 = vmatprep.subr.bf16.mxu0 %v865
    %1047 = vmatpush1.bf16.msra.mxu0 %v864
    %1048 = vmatprep.subr.bf16.mxu0 %v869
    %1049 = vmatpush1.bf16.msra.mxu0 %v868
    %1050 = vmatprep.subr.bf16.mxu0 %v873
    %1051 = vmatpush1.bf16.msra.mxu0 %v872
    %1052 = vmatprep.subr.bf16.mxu0 %v877
    %1053 = vmatpush1.bf16.msra.mxu0 %v876
    %1054 = vmatprep.subr.bf16.mxu0 %v881
    %1055 = vmatpush1.bf16.msra.mxu0 %v880
    %1056 = vmatprep.subr.bf16.mxu0 %v885
    %1057 = vmatpush1.bf16.msra.mxu0 %v884
    %1058 = vmatprep.subr.bf16.mxu0 %v889
    %1059 = vmatpush1.bf16.msra.mxu0 %v888
    %1060 = vmatprep.subr.bf16.mxu0 %v893
    %1061 = vmatpush1.bf16.msra.mxu0 %v892
    %1062 = vmatprep.subr.bf16.mxu0 %v897
    %1063 = vmatpush1.bf16.msra.mxu0 %v896
    %1064 = vmatprep.subr.bf16.mxu0 %v901
    %1065 = vmatpush1.bf16.msra.mxu0 %v900
    %1066 = vmatprep.subr.bf16.mxu0 %v905
    %1067 = vmatpush1.bf16.msra.mxu0 %v904
    %1068 = vmatprep.subr.bf16.mxu0 %v909
    %1069 = vmatpush1.bf16.msra.mxu0 %v908
    %1070 = vmatprep.subr.bf16.mxu0 %v913
    %1071 = vmatpush1.bf16.msra.mxu0 %v912
    %1072 = vmatprep.mubr.bf16.mxu0 %v592
    %1073 = vmatmul.mubr.bf16.gmra.mrb[0].mxu0 %v591
    %v1074 = vpop.f32.mrb[0].mxu0
    %v1075 = vadd.f32 %v990, %v1074
    %v1076 = vpop.f32.mrb[0].mxu0
    %v1077 = vadd.f32 %v994, %v1076
    %v1078 = vpop.f32.mrb[0].mxu0
    %v1079 = vpop.f32.mrb[0].mxu0
    %1080 = vdwg.mxu0
    %v1081 = vxor.u32 %v1034, 2147483648
    %v1082 = vmul.f32 %v1081, 1.442695
    %v1083 = vpow.pop %v1082
    %v1084 = vadd.f32 %v1083, 1.0
    %v1085 = vrcp.pop %v1084
    %v1086 = vmul.f32 1.0, %v1085
    %v1087 = vxor.u32 %v1036, 2147483648
    %v1088 = vmul.f32 %v1087, 1.442695
    %v1089 = vpow.pop %v1088
    %v1090 = vadd.f32 %v1089, 1.0
    %v1091 = vrcp.pop %v1090
    %v1092 = vmul.f32 1.0, %v1091
    %v1093 = vmul.f32 %v1086, %v1077
    %v1094 = vadd.f32 %v1075, %v1093
    %v1095 = vtanh.pop %v1094
    %v1096 = vsub.f32 1.0, %v1092
    %v1097 = vmul.f32 %v1096, %v1095
    %v1098 = vmul.f32 %v1092, %v586
    %v1099 = vadd.f32 %v1097, %v1098
    %1100 = vst [vmem:[#allocation2 + $0x1] sm:$0x1] %v1099
    %s1101 = sld [smem:[#allocation4 + $0x2]]
    %s1102 = scalar_lea.vmem [#allocation5], %s1101
    %v1103 = vld [vmem:[%s1102] sm:$0x1]
    %v1104 = vpack.c.bf16 %v1103, %v1103
    %v1105 = vpack.c.bf16 %v1099, %v1099
    %v1106 = vld [vmem:[#allocation8] sm:$0xff]
    %v1107 = vld [vmem:[#allocation8 + $0x8] sm:$0xff]
    %v1108 = vld [vmem:[#allocation8 + $0x10] sm:$0xff]
    %v1109 = vld [vmem:[#allocation8 + $0x18] sm:$0xff]
    %v1110 = vld [vmem:[#allocation8 + $0x20] sm:$0xff]
    %v1111 = vld [vmem:[#allocation8 + $0x28] sm:$0xff]
    %v1112 = vld [vmem:[#allocation8 + $0x30] sm:$0xff]
    %v1113 = vld [vmem:[#allocation8 + $0x38] sm:$0xff]
    %v1114 = vld [vmem:[#allocation8 + $0x40] sm:$0xff]
    %v1115 = vld [vmem:[#allocation8 + $0x48] sm:$0xff]
    %v1116 = vld [vmem:[#allocation8 + $0x50] sm:$0xff]
    %v1117 = vld [vmem:[#allocation8 + $0x58] sm:$0xff]
    %v1118 = vld [vmem:[#allocation8 + $0x60] sm:$0xff]
    %v1119 = vld [vmem:[#allocation8 + $0x68] sm:$0xff]
    %v1120 = vld [vmem:[#allocation8 + $0x70] sm:$0xff]
    %v1121 = vld [vmem:[#allocation8 + $0x78] sm:$0xff]
    %v1122 = vld [vmem:[#allocation8 + $0x80] sm:$0xff]
    %v1123 = vld [vmem:[#allocation8 + $0x88] sm:$0xff]
    %v1124 = vld [vmem:[#allocation8 + $0x90] sm:$0xff]
    %v1125 = vld [vmem:[#allocation8 + $0x98] sm:$0xff]
    %v1126 = vld [vmem:[#allocation8 + $0xa0] sm:$0xff]
    %v1127 = vld [vmem:[#allocation8 + $0xa8] sm:$0xff]
    %v1128 = vld [vmem:[#allocation8 + $0xb0] sm:$0xff]
    %v1129 = vld [vmem:[#allocation8 + $0xb8] sm:$0xff]
    %v1130 = vld [vmem:[#allocation8 + $0xc0] sm:$0xff]
    %v1131 = vld [vmem:[#allocation8 + $0xc8] sm:$0xff]
    %v1132 = vld [vmem:[#allocation8 + $0xd0] sm:$0xff]
    %v1133 = vld [vmem:[#allocation8 + $0xd8] sm:$0xff]
    %v1134 = vld [vmem:[#allocation8 + $0xe0] sm:$0xff]
    %v1135 = vld [vmem:[#allocation8 + $0xe8] sm:$0xff]
    %v1136 = vld [vmem:[#allocation8 + $0xf0] sm:$0xff]
    %v1137 = vld [vmem:[#allocation8 + $0xf8] sm:$0xff]
    %v1138 = vld [vmem:[#allocation8 + $0x100] sm:$0xff]
    %v1139 = vld [vmem:[#allocation8 + $0x108] sm:$0xff]
    %v1140 = vld [vmem:[#allocation8 + $0x110] sm:$0xff]
    %v1141 = vld [vmem:[#allocation8 + $0x118] sm:$0xff]
    %v1142 = vld [vmem:[#allocation8 + $0x120] sm:$0xff]
    %v1143 = vld [vmem:[#allocation8 + $0x128] sm:$0xff]
    %v1144 = vld [vmem:[#allocation8 + $0x130] sm:$0xff]
    %v1145 = vld [vmem:[#allocation8 + $0x138] sm:$0xff]
    %v1146 = vld [vmem:[#allocation8 + $0x140] sm:$0xff]
    %v1147 = vld [vmem:[#allocation8 + $0x148] sm:$0xff]
    %v1148 = vld [vmem:[#allocation8 + $0x150] sm:$0xff]
    %v1149 = vld [vmem:[#allocation8 + $0x158] sm:$0xff]
    %v1150 = vld [vmem:[#allocation8 + $0x160] sm:$0xff]
    %v1151 = vld [vmem:[#allocation8 + $0x168] sm:$0xff]
    %v1152 = vld [vmem:[#allocation8 + $0x170] sm:$0xff]
    %v1153 = vld [vmem:[#allocation8 + $0x178] sm:$0xff]
    %v1154 = vld [vmem:[#allocation8 + $0x180] sm:$0xff]
    %v1155 = vld [vmem:[#allocation8 + $0x188] sm:$0xff]
    %v1156 = vld [vmem:[#allocation8 + $0x190] sm:$0xff]
    %v1157 = vld [vmem:[#allocation8 + $0x198] sm:$0xff]
    %v1158 = vld [vmem:[#allocation8 + $0x1a0] sm:$0xff]
    %v1159 = vld [vmem:[#allocation8 + $0x1a8] sm:$0xff]
    %v1160 = vld [vmem:[#allocation8 + $0x1b0] sm:$0xff]
    %v1161 = vld [vmem:[#allocation8 + $0x1b8] sm:$0xff]
    %v1162 = vld [vmem:[#allocation8 + $0x1c0] sm:$0xff]
    %v1163 = vld [vmem:[#allocation8 + $0x1c8] sm:$0xff]
    %v1164 = vld [vmem:[#allocation8 + $0x1d0] sm:$0xff]
    %v1165 = vld [vmem:[#allocation8 + $0x1d8] sm:$0xff]
    %v1166 = vld [vmem:[#allocation8 + $0x1e0] sm:$0xff]
    %v1167 = vld [vmem:[#allocation8 + $0x1e8] sm:$0xff]
    %v1168 = vld [vmem:[#allocation8 + $0x1f0] sm:$0xff]
    %v1169 = vld [vmem:[#allocation8 + $0x1f8] sm:$0xff]
    %v1170 = vld [vmem:[%s4] sm:$0xf]
    %v1235 = vunpack.c.l.b16 %v1106
    %v1236 = vunpack.c.h.b16 %v1106
    %v1237 = vunpack.c.l.b16 %v1107
    %v1238 = vunpack.c.h.b16 %v1107
    %v1239 = vunpack.c.l.b16 %v1108
    %v1240 = vunpack.c.h.b16 %v1108
    %v1241 = vunpack.c.l.b16 %v1109
    %v1242 = vunpack.c.h.b16 %v1109
    %v1243 = vunpack.c.l.b16 %v1110
    %v1244 = vunpack.c.h.b16 %v1110
    %v1245 = vunpack.c.l.b16 %v1111
    %v1246 = vunpack.c.h.b16 %v1111
    %v1247 = vunpack.c.l.b16 %v1112
    %v1248 = vunpack.c.h.b16 %v1112
    %v1249 = vunpack.c.l.b16 %v1113
    %v1250 = vunpack.c.h.b16 %v1113
    %v1251 = vunpack.c.l.b16 %v1114
    %v1252 = vunpack.c.h.b16 %v1114
    %v1253 = vunpack.c.l.b16 %v1115
    %v1254 = vunpack.c.h.b16 %v1115
    %v1255 = vunpack.c.l.b16 %v1116
    %v1256 = vunpack.c.h.b16 %v1116
    %v1257 = vunpack.c.l.b16 %v1117
    %v1258 = vunpack.c.h.b16 %v1117
    %v1259 = vunpack.c.l.b16 %v1118
    %v1260 = vunpack.c.h.b16 %v1118
    %v1261 = vunpack.c.l.b16 %v1119
    %v1262 = vunpack.c.h.b16 %v1119
    %v1263 = vunpack.c.l.b16 %v1120
    %v1264 = vunpack.c.h.b16 %v1120
    %v1265 = vunpack.c.l.b16 %v1121
    %v1266 = vunpack.c.h.b16 %v1121
    %v1267 = vunpack.c.l.b16 %v1122
    %v1268 = vunpack.c.h.b16 %v1122
    %v1269 = vunpack.c.l.b16 %v1123
    %v1270 = vunpack.c.h.b16 %v1123
    %v1271 = vunpack.c.l.b16 %v1124
    %v1272 = vunpack.c.h.b16 %v1124
    %v1273 = vunpack.c.l.b16 %v1125
    %v1274 = vunpack.c.h.b16 %v1125
    %v1275 = vunpack.c.l.b16 %v1126
    %v1276 = vunpack.c.h.b16 %v1126
    %v1277 = vunpack.c.l.b16 %v1127
    %v1278 = vunpack.c.h.b16 %v1127
    %v1279 = vunpack.c.l.b16 %v1128
    %v1280 = vunpack.c.h.b16 %v1128
    %v1281 = vunpack.c.l.b16 %v1129
    %v1282 = vunpack.c.h.b16 %v1129
    %v1283 = vunpack.c.l.b16 %v1130
    %v1284 = vunpack.c.h.b16 %v1130
    %v1285 = vunpack.c.l.b16 %v1131
    %v1286 = vunpack.c.h.b16 %v1131
    %v1287 = vunpack.c.l.b16 %v1132
    %v1288 = vunpack.c.h.b16 %v1132
    %v1289 = vunpack.c.l.b16 %v1133
    %v1290 = vunpack.c.h.b16 %v1133
    %v1291 = vunpack.c.l.b16 %v1134
    %v1292 = vunpack.c.h.b16 %v1134
    %v1293 = vunpack.c.l.b16 %v1135
    %v1294 = vunpack.c.h.b16 %v1135
    %v1295 = vunpack.c.l.b16 %v1136
    %v1296 = vunpack.c.h.b16 %v1136
    %v1297 = vunpack.c.l.b16 %v1137
    %v1298 = vunpack.c.h.b16 %v1137
    %v1299 = vunpack.c.l.b16 %v1138
    %v1300 = vunpack.c.h.b16 %v1138
    %v1301 = vunpack.c.l.b16 %v1139
    %v1302 = vunpack.c.h.b16 %v1139
    %v1303 = vunpack.c.l.b16 %v1140
    %v1304 = vunpack.c.h.b16 %v1140
    %v1305 = vunpack.c.l.b16 %v1141
    %v1306 = vunpack.c.h.b16 %v1141
    %v1307 = vunpack.c.l.b16 %v1142
    %v1308 = vunpack.c.h.b16 %v1142
    %v1309 = vunpack.c.l.b16 %v1143
    %v1310 = vunpack.c.h.b16 %v1143
    %v1311 = vunpack.c.l.b16 %v1144
    %v1312 = vunpack.c.h.b16 %v1144
    %v1313 = vunpack.c.l.b16 %v1145
    %v1314 = vunpack.c.h.b16 %v1145
    %v1315 = vunpack.c.l.b16 %v1146
    %v1316 = vunpack.c.h.b16 %v1146
    %v1317 = vunpack.c.l.b16 %v1147
    %v1318 = vunpack.c.h.b16 %v1147
    %v1319 = vunpack.c.l.b16 %v1148
    %v1320 = vunpack.c.h.b16 %v1148
    %v1321 = vunpack.c.l.b16 %v1149
    %v1322 = vunpack.c.h.b16 %v1149
    %v1323 = vunpack.c.l.b16 %v1150
    %v1324 = vunpack.c.h.b16 %v1150
    %v1325 = vunpack.c.l.b16 %v1151
    %v1326 = vunpack.c.h.b16 %v1151
    %v1327 = vunpack.c.l.b16 %v1152
    %v1328 = vunpack.c.h.b16 %v1152
    %v1329 = vunpack.c.l.b16 %v1153
    %v1330 = vunpack.c.h.b16 %v1153
    %v1331 = vunpack.c.l.b16 %v1154
    %v1332 = vunpack.c.h.b16 %v1154
    %v1333 = vunpack.c.l.b16 %v1155
    %v1334 = vunpack.c.h.b16 %v1155
    %v1335 = vunpack.c.l.b16 %v1156
    %v1336 = vunpack.c.h.b16 %v1156
    %v1337 = vunpack.c.l.b16 %v1157
    %v1338 = vunpack.c.h.b16 %v1157
    %v1339 = vunpack.c.l.b16 %v1158
    %v1340 = vunpack.c.h.b16 %v1158
    %v1341 = vunpack.c.l.b16 %v1159
    %v1342 = vunpack.c.h.b16 %v1159
    %v1343 = vunpack.c.l.b16 %v1160
    %v1344 = vunpack.c.h.b16 %v1160
    %v1345 = vunpack.c.l.b16 %v1161
    %v1346 = vunpack.c.h.b16 %v1161
    %v1347 = vunpack.c.l.b16 %v1162
    %v1348 = vunpack.c.h.b16 %v1162
    %v1349 = vunpack.c.l.b16 %v1163
    %v1350 = vunpack.c.h.b16 %v1163
    %v1351 = vunpack.c.l.b16 %v1164
    %v1352 = vunpack.c.h.b16 %v1164
    %v1353 = vunpack.c.l.b16 %v1165
    %v1354 = vunpack.c.h.b16 %v1165
    %v1355 = vunpack.c.l.b16 %v1166
    %v1356 = vunpack.c.h.b16 %v1166
    %v1357 = vunpack.c.l.b16 %v1167
    %v1358 = vunpack.c.h.b16 %v1167
    %v1359 = vunpack.c.l.b16 %v1168
    %v1360 = vunpack.c.h.b16 %v1168
    %v1361 = vunpack.c.l.b16 %v1169
    %v1362 = vunpack.c.h.b16 %v1169
    %v1363 = vpack.c.b16 %v1239, %v1235
    %v1364 = vpack.c.b16 %v1240, %v1236
    %v1365 = vpack.c.b16 %v1241, %v1237
    %v1366 = vpack.c.b16 %v1242, %v1238
    %v1367 = vpack.c.b16 %v1247, %v1243
    %v1368 = vpack.c.b16 %v1248, %v1244
    %v1369 = vpack.c.b16 %v1249, %v1245
    %v1370 = vpack.c.b16 %v1250, %v1246
    %v1371 = vpack.c.b16 %v1255, %v1251
    %v1372 = vpack.c.b16 %v1256, %v1252
    %v1373 = vpack.c.b16 %v1257, %v1253
    %v1374 = vpack.c.b16 %v1258, %v1254
    %v1375 = vpack.c.b16 %v1263, %v1259
    %v1376 = vpack.c.b16 %v1264, %v1260
    %v1377 = vpack.c.b16 %v1265, %v1261
    %v1378 = vpack.c.b16 %v1266, %v1262
    %v1379 = vpack.c.b16 %v1271, %v1267
    %v1380 = vpack.c.b16 %v1272, %v1268
    %v1381 = vpack.c.b16 %v1273, %v1269
    %v1382 = vpack.c.b16 %v1274, %v1270
    %v1383 = vpack.c.b16 %v1279, %v1275
    %v1384 = vpack.c.b16 %v1280, %v1276
    %v1385 = vpack.c.b16 %v1281, %v1277
    %v1386 = vpack.c.b16 %v1282, %v1278
    %v1387 = vpack.c.b16 %v1287, %v1283
    %v1388 = vpack.c.b16 %v1288, %v1284
    %v1389 = vpack.c.b16 %v1289, %v1285
    %v1390 = vpack.c.b16 %v1290, %v1286
    %v1391 = vpack.c.b16 %v1295, %v1291
    %v1392 = vpack.c.b16 %v1296, %v1292
    %v1393 = vpack.c.b16 %v1297, %v1293
    %v1394 = vpack.c.b16 %v1298, %v1294
    %v1395 = vpack.c.b16 %v1303, %v1299
    %v1396 = vpack.c.b16 %v1304, %v1300
    %v1397 = vpack.c.b16 %v1305, %v1301
    %v1398 = vpack.c.b16 %v1306, %v1302
    %v1399 = vpack.c.b16 %v1311, %v1307
    %v1400 = vpack.c.b16 %v1312, %v1308
    %v1401 = vpack.c.b16 %v1313, %v1309
    %v1402 = vpack.c.b16 %v1314, %v1310
    %v1403 = vpack.c.b16 %v1319, %v1315
    %v1404 = vpack.c.b16 %v1320, %v1316
    %v1405 = vpack.c.b16 %v1321, %v1317
    %v1406 = vpack.c.b16 %v1322, %v1318
    %v1407 = vpack.c.b16 %v1327, %v1323
    %v1408 = vpack.c.b16 %v1328, %v1324
    %v1409 = vpack.c.b16 %v1329, %v1325
    %v1410 = vpack.c.b16 %v1330, %v1326
    %v1411 = vpack.c.b16 %v1335, %v1331
    %v1412 = vpack.c.b16 %v1336, %v1332
    %v1413 = vpack.c.b16 %v1337, %v1333
    %v1414 = vpack.c.b16 %v1338, %v1334
    %v1415 = vpack.c.b16 %v1343, %v1339
    %v1416 = vpack.c.b16 %v1344, %v1340
    %v1417 = vpack.c.b16 %v1345, %v1341
    %v1418 = vpack.c.b16 %v1346, %v1342
    %v1419 = vpack.c.b16 %v1351, %v1347
    %v1420 = vpack.c.b16 %v1352, %v1348
    %v1421 = vpack.c.b16 %v1353, %v1349
    %v1422 = vpack.c.b16 %v1354, %v1350
    %v1423 = vpack.c.b16 %v1359, %v1355
    %v1424 = vpack.c.b16 %v1360, %v1356
    %v1425 = vpack.c.b16 %v1361, %v1357
    %v1426 = vpack.c.b16 %v1362, %v1358
    %v1492 = vlaneseq
    %v1493 = vshrl.u32 %v1492, 7
    %v1494 = vsub.s32 0, %v1493
    %v1495 = vrot.slane %v1170, %v1494
    %v1496 = vlaneseq
    %v1497 = vshrl.u32 %v1496, 7
    %v1498 = vsub.s32 1, %v1497
    %v1499 = vrot.slane %v1170, %v1498
    %v1500 = vlaneseq
    %v1501 = vshrl.u32 %v1500, 7
    %v1502 = vsub.s32 2, %v1501
    %v1503 = vrot.slane %v1170, %v1502
    %v1504 = vlaneseq
    %v1505 = vshrl.u32 %v1504, 7
    %v1506 = vsub.s32 3, %v1505
    %v1507 = vrot.slane %v1170, %v1506
    %1512 = vmatprep.subr.bf16.mxu0 %v1364
    %1513 = vmatpush1.bf16.msra.mxu0 %v1363
    %1514 = vmatprep.subr.bf16.mxu0 %v1368
    %1515 = vmatpush1.bf16.msra.mxu0 %v1367
    %1516 = vmatprep.subr.bf16.mxu0 %v1372
    %1517 = vmatpush1.bf16.msra.mxu0 %v1371
    %1518 = vmatprep.subr.bf16.mxu0 %v1376
    %1519 = vmatpush1.bf16.msra.mxu0 %v1375
    %1520 = vmatprep.subr.bf16.mxu0 %v1380
    %1521 = vmatpush1.bf16.msra.mxu0 %v1379
    %1522 = vmatprep.subr.bf16.mxu0 %v1384
    %1523 = vmatpush1.bf16.msra.mxu0 %v1383
    %1524 = vmatprep.subr.bf16.mxu0 %v1388
    %1525 = vmatpush1.bf16.msra.mxu0 %v1387
    %1526 = vmatprep.subr.bf16.mxu0 %v1392
    %1527 = vmatpush1.bf16.msra.mxu0 %v1391
    %1528 = vmatprep.subr.bf16.mxu0 %v1396
    %1529 = vmatpush1.bf16.msra.mxu0 %v1395
    %1530 = vmatprep.subr.bf16.mxu0 %v1400
    %1531 = vmatpush1.bf16.msra.mxu0 %v1399
    %1532 = vmatprep.subr.bf16.mxu0 %v1404
    %1533 = vmatpush1.bf16.msra.mxu0 %v1403
    %1534 = vmatprep.subr.bf16.mxu0 %v1408
    %1535 = vmatpush1.bf16.msra.mxu0 %v1407
    %1536 = vmatprep.subr.bf16.mxu0 %v1412
    %1537 = vmatpush1.bf16.msra.mxu0 %v1411
    %1538 = vmatprep.subr.bf16.mxu0 %v1416
    %1539 = vmatpush1.bf16.msra.mxu0 %v1415
    %1540 = vmatprep.subr.bf16.mxu0 %v1420
    %1541 = vmatpush1.bf16.msra.mxu0 %v1419
    %1542 = vmatprep.subr.bf16.mxu0 %v1424
    %1543 = vmatpush1.bf16.msra.mxu0 %v1423
    %1544 = vmatprep.mubr.bf16.mxu0 %v1105
    %1545 = vmatmul.mubr.bf16.gmra.mrb[0].mxu0 %v1104
    %v1546 = vpop.f32.mrb[0].mxu0
    %v1547 = vadd.f32 %v1495, %v1546
    %v1548 = vpop.f32.mrb[0].mxu0
    %v1549 = vadd.f32 %v1499, %v1548
    %v1550 = vpop.f32.mrb[0].mxu0
    %v1551 = vpop.f32.mrb[0].mxu0
    %1552 = vdwg.mxu0
    %1553 = vmatprep.subr.bf16.mxu0 %v1366
    %1554 = vmatpush1.bf16.msra.mxu0 %v1365
    %1555 = vmatprep.subr.bf16.mxu0 %v1370
    %1556 = vmatpush1.bf16.msra.mxu0 %v1369
    %1557 = vmatprep.subr.bf16.mxu0 %v1374
    %1558 = vmatpush1.bf16.msra.mxu0 %v1373
    %1559 = vmatprep.subr.bf16.mxu0 %v1378
    %1560 = vmatpush1.bf16.msra.mxu0 %v1377
    %1561 = vmatprep.subr.bf16.mxu0 %v1382
    %1562 = vmatpush1.bf16.msra.mxu0 %v1381
    %1563 = vmatprep.subr.bf16.mxu0 %v1386
    %1564 = vmatpush1.bf16.msra.mxu0 %v1385
    %1565 = vmatprep.subr.bf16.mxu0 %v1390
    %1566 = vmatpush1.bf16.msra.mxu0 %v1389
    %1567 = vmatprep.subr.bf16.mxu0 %v1394
    %1568 = vmatpush1.bf16.msra.mxu0 %v1393
    %1569 = vmatprep.subr.bf16.mxu0 %v1398
    %1570 = vmatpush1.bf16.msra.mxu0 %v1397
    %1571 = vmatprep.subr.bf16.mxu0 %v1402
    %1572 = vmatpush1.bf16.msra.mxu0 %v1401
    %1573 = vmatprep.subr.bf16.mxu0 %v1406
    %1574 = vmatpush1.bf16.msra.mxu0 %v1405
    %1575 = vmatprep.subr.bf16.mxu0 %v1410
    %1576 = vmatpush1.bf16.msra.mxu0 %v1409
    %1577 = vmatprep.subr.bf16.mxu0 %v1414
    %1578 = vmatpush1.bf16.msra.mxu0 %v1413
    %1579 = vmatprep.subr.bf16.mxu0 %v1418
    %1580 = vmatpush1.bf16.msra.mxu0 %v1417
    %1581 = vmatprep.subr.bf16.mxu0 %v1422
    %1582 = vmatpush1.bf16.msra.mxu0 %v1421
    %1583 = vmatprep.subr.bf16.mxu0 %v1426
    %1584 = vmatpush1.bf16.msra.mxu0 %v1425
    %1585 = vmatprep.mubr.bf16.mxu0 %v1105
    %1586 = vmatmul.mubr.bf16.gmra.mrb[0].mxu0 %v1104
    %v1587 = vpop.f32.mrb[0].mxu0
    %v1588 = vadd.f32 %v1503, %v1587
    %v1589 = vpop.f32.mrb[0].mxu0
    %v1590 = vadd.f32 %v1507, %v1589
    %v1591 = vpop.f32.mrb[0].mxu0
    %v1592 = vpop.f32.mrb[0].mxu0
    %1593 = vdwg.mxu0
    %v1594 = vxor.u32 %v1547, 2147483648
    %v1595 = vmul.f32 %v1594, 1.442695
    %v1596 = vpow.pop %v1595
    %v1597 = vadd.f32 %v1596, 1.0
    %v1598 = vrcp.pop %v1597
    %v1599 = vmul.f32 1.0, %v1598
    %v1600 = vxor.u32 %v1549, 2147483648
    %v1601 = vmul.f32 %v1600, 1.442695
    %v1602 = vpow.pop %v1601
    %v1603 = vadd.f32 %v1602, 1.0
    %v1604 = vrcp.pop %v1603
    %v1605 = vmul.f32 1.0, %v1604
    %v1606 = vmul.f32 %v1599, %v1590
    %v1607 = vadd.f32 %v1588, %v1606
    %v1608 = vtanh.pop %v1607
    %v1609 = vsub.f32 1.0, %v1605
    %v1610 = vmul.f32 %v1609, %v1608
    %v1611 = vmul.f32 %v1605, %v1099
    %v1612 = vadd.f32 %v1610, %v1611
    %1613 = vst [vmem:[#allocation2 + $0x2] sm:$0x1] %v1612
    %s1614 = sld [smem:[#allocation4 + $0x3]]
    %s1615 = scalar_lea.vmem [#allocation5], %s1614
    %v1616 = vld [vmem:[%s1615] sm:$0x1]
    %v1617 = vpack.c.bf16 %v1616, %v1616
    %v1618 = vpack.c.bf16 %v1612, %v1612
    %v1619 = vld [vmem:[#allocation8] sm:$0xff]
    %v1620 = vld [vmem:[#allocation8 + $0x8] sm:$0xff]
    %v1621 = vld [vmem:[#allocation8 + $0x10] sm:$0xff]
    %v1622 = vld [vmem:[#allocation8 + $0x18] sm:$0xff]
    %v1623 = vld [vmem:[#allocation8 + $0x20] sm:$0xff]
    %v1624 = vld [vmem:[#allocation8 + $0x28] sm:$0xff]
    %v1625 = vld [vmem:[#allocation8 + $0x30] sm:$0xff]
    %v1626 = vld [vmem:[#allocation8 + $0x38] sm:$0xff]
    %v1627 = vld [vmem:[#allocation8 + $0x40] sm:$0xff]
    %v1628 = vld [vmem:[#allocation8 + $0x48] sm:$0xff]
    %v1629 = vld [vmem:[#allocation8 + $0x50] sm:$0xff]
    %v1630 = vld [vmem:[#allocation8 + $0x58] sm:$0xff]
    %v1631 = vld [vmem:[#allocation8 + $0x60] sm:$0xff]
    %v1632 = vld [vmem:[#allocation8 + $0x68] sm:$0xff]
    %v1633 = vld [vmem:[#allocation8 + $0x70] sm:$0xff]
    %v1634 = vld [vmem:[#allocation8 + $0x78] sm:$0xff]
    %v1635 = vld [vmem:[#allocation8 + $0x80] sm:$0xff]
    %v1636 = vld [vmem:[#allocation8 + $0x88] sm:$0xff]
    %v1637 = vld [vmem:[#allocation8 + $0x90] sm:$0xff]
    %v1638 = vld [vmem:[#allocation8 + $0x98] sm:$0xff]
    %v1639 = vld [vmem:[#allocation8 + $0xa0] sm:$0xff]
    %v1640 = vld [vmem:[#allocation8 + $0xa8] sm:$0xff]
    %v1641 = vld [vmem:[#allocation8 + $0xb0] sm:$0xff]
    %v1642 = vld [vmem:[#allocation8 + $0xb8] sm:$0xff]
    %v1643 = vld [vmem:[#allocation8 + $0xc0] sm:$0xff]
    %v1644 = vld [vmem:[#allocation8 + $0xc8] sm:$0xff]
    %v1645 = vld [vmem:[#allocation8 + $0xd0] sm:$0xff]
    %v1646 = vld [vmem:[#allocation8 + $0xd8] sm:$0xff]
    %v1647 = vld [vmem:[#allocation8 + $0xe0] sm:$0xff]
    %v1648 = vld [vmem:[#allocation8 + $0xe8] sm:$0xff]
    %v1649 = vld [vmem:[#allocation8 + $0xf0] sm:$0xff]
    %v1650 = vld [vmem:[#allocation8 + $0xf8] sm:$0xff]
    %v1651 = vld [vmem:[#allocation8 + $0x100] sm:$0xff]
    %v1652 = vld [vmem:[#allocation8 + $0x108] sm:$0xff]
    %v1653 = vld [vmem:[#allocation8 + $0x110] sm:$0xff]
    %v1654 = vld [vmem:[#allocation8 + $0x118] sm:$0xff]
    %v1655 = vld [vmem:[#allocation8 + $0x120] sm:$0xff]
    %v1656 = vld [vmem:[#allocation8 + $0x128] sm:$0xff]
    %v1657 = vld [vmem:[#allocation8 + $0x130] sm:$0xff]
    %v1658 = vld [vmem:[#allocation8 + $0x138] sm:$0xff]
    %v1659 = vld [vmem:[#allocation8 + $0x140] sm:$0xff]
    %v1660 = vld [vmem:[#allocation8 + $0x148] sm:$0xff]
    %v1661 = vld [vmem:[#allocation8 + $0x150] sm:$0xff]
    %v1662 = vld [vmem:[#allocation8 + $0x158] sm:$0xff]
    %v1663 = vld [vmem:[#allocation8 + $0x160] sm:$0xff]
    %v1664 = vld [vmem:[#allocation8 + $0x168] sm:$0xff]
    %v1665 = vld [vmem:[#allocation8 + $0x170] sm:$0xff]
    %v1666 = vld [vmem:[#allocation8 + $0x178] sm:$0xff]
    %v1667 = vld [vmem:[#allocation8 + $0x180] sm:$0xff]
    %v1668 = vld [vmem:[#allocation8 + $0x188] sm:$0xff]
    %v1669 = vld [vmem:[#allocation8 + $0x190] sm:$0xff]
    %v1670 = vld [vmem:[#allocation8 + $0x198] sm:$0xff]
    %v1671 = vld [vmem:[#allocation8 + $0x1a0] sm:$0xff]
    %v1672 = vld [vmem:[#allocation8 + $0x1a8] sm:$0xff]
    %v1673 = vld [vmem:[#allocation8 + $0x1b0] sm:$0xff]
    %v1674 = vld [vmem:[#allocation8 + $0x1b8] sm:$0xff]
    %v1675 = vld [vmem:[#allocation8 + $0x1c0] sm:$0xff]
    %v1676 = vld [vmem:[#allocation8 + $0x1c8] sm:$0xff]
    %v1677 = vld [vmem:[#allocation8 + $0x1d0] sm:$0xff]
    %v1678 = vld [vmem:[#allocation8 + $0x1d8] sm:$0xff]
    %v1679 = vld [vmem:[#allocation8 + $0x1e0] sm:$0xff]
    %v1680 = vld [vmem:[#allocation8 + $0x1e8] sm:$0xff]
    %v1681 = vld [vmem:[#allocation8 + $0x1f0] sm:$0xff]
    %v1682 = vld [vmem:[#allocation8 + $0x1f8] sm:$0xff]
    %v1683 = vld [vmem:[%s4] sm:$0xf]
    %v1748 = vunpack.c.l.b16 %v1619
    %v1749 = vunpack.c.h.b16 %v1619
    %v1750 = vunpack.c.l.b16 %v1620
    %v1751 = vunpack.c.h.b16 %v1620
    %v1752 = vunpack.c.l.b16 %v1621
    %v1753 = vunpack.c.h.b16 %v1621
    %v1754 = vunpack.c.l.b16 %v1622
    %v1755 = vunpack.c.h.b16 %v1622
    %v1756 = vunpack.c.l.b16 %v1623
    %v1757 = vunpack.c.h.b16 %v1623
    %v1758 = vunpack.c.l.b16 %v1624
    %v1759 = vunpack.c.h.b16 %v1624
    %v1760 = vunpack.c.l.b16 %v1625
    %v1761 = vunpack.c.h.b16 %v1625
    %v1762 = vunpack.c.l.b16 %v1626
    %v1763 = vunpack.c.h.b16 %v1626
    %v1764 = vunpack.c.l.b16 %v1627
    %v1765 = vunpack.c.h.b16 %v1627
    %v1766 = vunpack.c.l.b16 %v1628
    %v1767 = vunpack.c.h.b16 %v1628
    %v1768 = vunpack.c.l.b16 %v1629
    %v1769 = vunpack.c.h.b16 %v1629
    %v1770 = vunpack.c.l.b16 %v1630
    %v1771 = vunpack.c.h.b16 %v1630
    %v1772 = vunpack.c.l.b16 %v1631
    %v1773 = vunpack.c.h.b16 %v1631
    %v1774 = vunpack.c.l.b16 %v1632
    %v1775 = vunpack.c.h.b16 %v1632
    %v1776 = vunpack.c.l.b16 %v1633
    %v1777 = vunpack.c.h.b16 %v1633
    %v1778 = vunpack.c.l.b16 %v1634
    %v1779 = vunpack.c.h.b16 %v1634
    %v1780 = vunpack.c.l.b16 %v1635
    %v1781 = vunpack.c.h.b16 %v1635
    %v1782 = vunpack.c.l.b16 %v1636
    %v1783 = vunpack.c.h.b16 %v1636
    %v1784 = vunpack.c.l.b16 %v1637
    %v1785 = vunpack.c.h.b16 %v1637
    %v1786 = vunpack.c.l.b16 %v1638
    %v1787 = vunpack.c.h.b16 %v1638
    %v1788 = vunpack.c.l.b16 %v1639
    %v1789 = vunpack.c.h.b16 %v1639
    %v1790 = vunpack.c.l.b16 %v1640
    %v1791 = vunpack.c.h.b16 %v1640
    %v1792 = vunpack.c.l.b16 %v1641
    %v1793 = vunpack.c.h.b16 %v1641
    %v1794 = vunpack.c.l.b16 %v1642
    %v1795 = vunpack.c.h.b16 %v1642
    %v1796 = vunpack.c.l.b16 %v1643
    %v1797 = vunpack.c.h.b16 %v1643
    %v1798 = vunpack.c.l.b16 %v1644
    %v1799 = vunpack.c.h.b16 %v1644
    %v1800 = vunpack.c.l.b16 %v1645
    %v1801 = vunpack.c.h.b16 %v1645
    %v1802 = vunpack.c.l.b16 %v1646
    %v1803 = vunpack.c.h.b16 %v1646
    %v1804 = vunpack.c.l.b16 %v1647
    %v1805 = vunpack.c.h.b16 %v1647
    %v1806 = vunpack.c.l.b16 %v1648
    %v1807 = vunpack.c.h.b16 %v1648
    %v1808 = vunpack.c.l.b16 %v1649
    %v1809 = vunpack.c.h.b16 %v1649
    %v1810 = vunpack.c.l.b16 %v1650
    %v1811 = vunpack.c.h.b16 %v1650
    %v1812 = vunpack.c.l.b16 %v1651
    %v1813 = vunpack.c.h.b16 %v1651
    %v1814 = vunpack.c.l.b16 %v1652
    %v1815 = vunpack.c.h.b16 %v1652
    %v1816 = vunpack.c.l.b16 %v1653
    %v1817 = vunpack.c.h.b16 %v1653
    %v1818 = vunpack.c.l.b16 %v1654
    %v1819 = vunpack.c.h.b16 %v1654
    %v1820 = vunpack.c.l.b16 %v1655
    %v1821 = vunpack.c.h.b16 %v1655
    %v1822 = vunpack.c.l.b16 %v1656
    %v1823 = vunpack.c.h.b16 %v1656
    %v1824 = vunpack.c.l.b16 %v1657
    %v1825 = vunpack.c.h.b16 %v1657
    %v1826 = vunpack.c.l.b16 %v1658
    %v1827 = vunpack.c.h.b16 %v1658
    %v1828 = vunpack.c.l.b16 %v1659
    %v1829 = vunpack.c.h.b16 %v1659
    %v1830 = vunpack.c.l.b16 %v1660
    %v1831 = vunpack.c.h.b16 %v1660
    %v1832 = vunpack.c.l.b16 %v1661
    %v1833 = vunpack.c.h.b16 %v1661
    %v1834 = vunpack.c.l.b16 %v1662
    %v1835 = vunpack.c.h.b16 %v1662
    %v1836 = vunpack.c.l.b16 %v1663
    %v1837 = vunpack.c.h.b16 %v1663
    %v1838 = vunpack.c.l.b16 %v1664
    %v1839 = vunpack.c.h.b16 %v1664
    %v1840 = vunpack.c.l.b16 %v1665
    %v1841 = vunpack.c.h.b16 %v1665
    %v1842 = vunpack.c.l.b16 %v1666
    %v1843 = vunpack.c.h.b16 %v1666
    %v1844 = vunpack.c.l.b16 %v1667
    %v1845 = vunpack.c.h.b16 %v1667
    %v1846 = vunpack.c.l.b16 %v1668
    %v1847 = vunpack.c.h.b16 %v1668
    %v1848 = vunpack.c.l.b16 %v1669
    %v1849 = vunpack.c.h.b16 %v1669
    %v1850 = vunpack.c.l.b16 %v1670
    %v1851 = vunpack.c.h.b16 %v1670
    %v1852 = vunpack.c.l.b16 %v1671
    %v1853 = vunpack.c.h.b16 %v1671
    %v1854 = vunpack.c.l.b16 %v1672
    %v1855 = vunpack.c.h.b16 %v1672
    %v1856 = vunpack.c.l.b16 %v1673
    %v1857 = vunpack.c.h.b16 %v1673
    %v1858 = vunpack.c.l.b16 %v1674
    %v1859 = vunpack.c.h.b16 %v1674
    %v1860 = vunpack.c.l.b16 %v1675
    %v1861 = vunpack.c.h.b16 %v1675
    %v1862 = vunpack.c.l.b16 %v1676
    %v1863 = vunpack.c.h.b16 %v1676
    %v1864 = vunpack.c.l.b16 %v1677
    %v1865 = vunpack.c.h.b16 %v1677
    %v1866 = vunpack.c.l.b16 %v1678
    %v1867 = vunpack.c.h.b16 %v1678
    %v1868 = vunpack.c.l.b16 %v1679
    %v1869 = vunpack.c.h.b16 %v1679
    %v1870 = vunpack.c.l.b16 %v1680
    %v1871 = vunpack.c.h.b16 %v1680
    %v1872 = vunpack.c.l.b16 %v1681
    %v1873 = vunpack.c.h.b16 %v1681
    %v1874 = vunpack.c.l.b16 %v1682
    %v1875 = vunpack.c.h.b16 %v1682
    %v1876 = vpack.c.b16 %v1752, %v1748
    %v1877 = vpack.c.b16 %v1753, %v1749
    %v1878 = vpack.c.b16 %v1754, %v1750
    %v1879 = vpack.c.b16 %v1755, %v1751
    %v1880 = vpack.c.b16 %v1760, %v1756
    %v1881 = vpack.c.b16 %v1761, %v1757
    %v1882 = vpack.c.b16 %v1762, %v1758
    %v1883 = vpack.c.b16 %v1763, %v1759
    %v1884 = vpack.c.b16 %v1768, %v1764
    %v1885 = vpack.c.b16 %v1769, %v1765
    %v1886 = vpack.c.b16 %v1770, %v1766
    %v1887 = vpack.c.b16 %v1771, %v1767
    %v1888 = vpack.c.b16 %v1776, %v1772
    %v1889 = vpack.c.b16 %v1777, %v1773
    %v1890 = vpack.c.b16 %v1778, %v1774
    %v1891 = vpack.c.b16 %v1779, %v1775
    %v1892 = vpack.c.b16 %v1784, %v1780
    %v1893 = vpack.c.b16 %v1785, %v1781
    %v1894 = vpack.c.b16 %v1786, %v1782
    %v1895 = vpack.c.b16 %v1787, %v1783
    %v1896 = vpack.c.b16 %v1792, %v1788
    %v1897 = vpack.c.b16 %v1793, %v1789
    %v1898 = vpack.c.b16 %v1794, %v1790
    %v1899 = vpack.c.b16 %v1795, %v1791
    %v1900 = vpack.c.b16 %v1800, %v1796
    %v1901 = vpack.c.b16 %v1801, %v1797
    %v1902 = vpack.c.b16 %v1802, %v1798
    %v1903 = vpack.c.b16 %v1803, %v1799
    %v1904 = vpack.c.b16 %v1808, %v1804
    %v1905 = vpack.c.b16 %v1809, %v1805
    %v1906 = vpack.c.b16 %v1810, %v1806
    %v1907 = vpack.c.b16 %v1811, %v1807
    %v1908 = vpack.c.b16 %v1816, %v1812
    %v1909 = vpack.c.b16 %v1817, %v1813
    %v1910 = vpack.c.b16 %v1818, %v1814
    %v1911 = vpack.c.b16 %v1819, %v1815
    %v1912 = vpack.c.b16 %v1824, %v1820
    %v1913 = vpack.c.b16 %v1825, %v1821
    %v1914 = vpack.c.b16 %v1826, %v1822
    %v1915 = vpack.c.b16 %v1827, %v1823
    %v1916 = vpack.c.b16 %v1832, %v1828
    %v1917 = vpack.c.b16 %v1833, %v1829
    %v1918 = vpack.c.b16 %v1834, %v1830
    %v1919 = vpack.c.b16 %v1835, %v1831
    %v1920 = vpack.c.b16 %v1840, %v1836
    %v1921 = vpack.c.b16 %v1841, %v1837
    %v1922 = vpack.c.b16 %v1842, %v1838
    %v1923 = vpack.c.b16 %v1843, %v1839
    %v1924 = vpack.c.b16 %v1848, %v1844
    %v1925 = vpack.c.b16 %v1849, %v1845
    %v1926 = vpack.c.b16 %v1850, %v1846
    %v1927 = vpack.c.b16 %v1851, %v1847
    %v1928 = vpack.c.b16 %v1856, %v1852
    %v1929 = vpack.c.b16 %v1857, %v1853
    %v1930 = vpack.c.b16 %v1858, %v1854
    %v1931 = vpack.c.b16 %v1859, %v1855
    %v1932 = vpack.c.b16 %v1864, %v1860
    %v1933 = vpack.c.b16 %v1865, %v1861
    %v1934 = vpack.c.b16 %v1866, %v1862
    %v1935 = vpack.c.b16 %v1867, %v1863
    %v1936 = vpack.c.b16 %v1872, %v1868
    %v1937 = vpack.c.b16 %v1873, %v1869
    %v1938 = vpack.c.b16 %v1874, %v1870
    %v1939 = vpack.c.b16 %v1875, %v1871
    %v2005 = vlaneseq
    %v2006 = vshrl.u32 %v2005, 7
    %v2007 = vsub.s32 0, %v2006
    %v2008 = vrot.slane %v1683, %v2007
    %v2009 = vlaneseq
    %v2010 = vshrl.u32 %v2009, 7
    %v2011 = vsub.s32 1, %v2010
    %v2012 = vrot.slane %v1683, %v2011
    %v2013 = vlaneseq
    %v2014 = vshrl.u32 %v2013, 7
    %v2015 = vsub.s32 2, %v2014
    %v2016 = vrot.slane %v1683, %v2015
    %v2017 = vlaneseq
    %v2018 = vshrl.u32 %v2017, 7
    %v2019 = vsub.s32 3, %v2018
    %v2020 = vrot.slane %v1683, %v2019
    %2025 = vmatprep.subr.bf16.mxu0 %v1877
    %2026 = vmatpush1.bf16.msra.mxu0 %v1876
    %2027 = vmatprep.subr.bf16.mxu0 %v1881
    %2028 = vmatpush1.bf16.msra.mxu0 %v1880
    %2029 = vmatprep.subr.bf16.mxu0 %v1885
    %2030 = vmatpush1.bf16.msra.mxu0 %v1884
    %2031 = vmatprep.subr.bf16.mxu0 %v1889
    %2032 = vmatpush1.bf16.msra.mxu0 %v1888
    %2033 = vmatprep.subr.bf16.mxu0 %v1893
    %2034 = vmatpush1.bf16.msra.mxu0 %v1892
    %2035 = vmatprep.subr.bf16.mxu0 %v1897
    %2036 = vmatpush1.bf16.msra.mxu0 %v1896
    %2037 = vmatprep.subr.bf16.mxu0 %v1901
    %2038 = vmatpush1.bf16.msra.mxu0 %v1900
    %2039 = vmatprep.subr.bf16.mxu0 %v1905
    %2040 = vmatpush1.bf16.msra.mxu0 %v1904
    %2041 = vmatprep.subr.bf16.mxu0 %v1909
    %2042 = vmatpush1.bf16.msra.mxu0 %v1908
    %2043 = vmatprep.subr.bf16.mxu0 %v1913
    %2044 = vmatpush1.bf16.msra.mxu0 %v1912
    %2045 = vmatprep.subr.bf16.mxu0 %v1917
    %2046 = vmatpush1.bf16.msra.mxu0 %v1916
    %2047 = vmatprep.subr.bf16.mxu0 %v1921
    %2048 = vmatpush1.bf16.msra.mxu0 %v1920
    %2049 = vmatprep.subr.bf16.mxu0 %v1925
    %2050 = vmatpush1.bf16.msra.mxu0 %v1924
    %2051 = vmatprep.subr.bf16.mxu0 %v1929
    %2052 = vmatpush1.bf16.msra.mxu0 %v1928
    %2053 = vmatprep.subr.bf16.mxu0 %v1933
    %2054 = vmatpush1.bf16.msra.mxu0 %v1932
    %2055 = vmatprep.subr.bf16.mxu0 %v1937
    %2056 = vmatpush1.bf16.msra.mxu0 %v1936
    %2057 = vmatprep.mubr.bf16.mxu0 %v1618
    %2058 = vmatmul.mubr.bf16.gmra.mrb[0].mxu0 %v1617
    %v2059 = vpop.f32.mrb[0].mxu0
    %v2060 = vadd.f32 %v2008, %v2059
    %v2061 = vpop.f32.mrb[0].mxu0
    %v2062 = vadd.f32 %v2012, %v2061
    %v2063 = vpop.f32.mrb[0].mxu0
    %v2064 = vpop.f32.mrb[0].mxu0
    %2065 = vdwg.mxu0
    %2066 = vmatprep.subr.bf16.mxu0 %v1879
    %2067 = vmatpush1.bf16.msra.mxu0 %v1878
    %2068 = vmatprep.subr.bf16.mxu0 %v1883
    %2069 = vmatpush1.bf16.msra.mxu0 %v1882
    %2070 = vmatprep.subr.bf16.mxu0 %v1887
    %2071 = vmatpush1.bf16.msra.mxu0 %v1886
    %2072 = vmatprep.subr.bf16.mxu0 %v1891
    %2073 = vmatpush1.bf16.msra.mxu0 %v1890
    %2074 = vmatprep.subr.bf16.mxu0 %v1895
    %2075 = vmatpush1.bf16.msra.mxu0 %v1894
    %2076 = vmatprep.subr.bf16.mxu0 %v1899
    %2077 = vmatpush1.bf16.msra.mxu0 %v1898
    %2078 = vmatprep.subr.bf16.mxu0 %v1903
    %2079 = vmatpush1.bf16.msra.mxu0 %v1902
    %2080 = vmatprep.subr.bf16.mxu0 %v1907
    %2081 = vmatpush1.bf16.msra.mxu0 %v1906
    %2082 = vmatprep.subr.bf16.mxu0 %v1911
    %2083 = vmatpush1.bf16.msra.mxu0 %v1910
    %2084 = vmatprep.subr.bf16.mxu0 %v1915
    %2085 = vmatpush1.bf16.msra.mxu0 %v1914
    %2086 = vmatprep.subr.bf16.mxu0 %v1919
    %2087 = vmatpush1.bf16.msra.mxu0 %v1918
    %2088 = vmatprep.subr.bf16.mxu0 %v1923
    %2089 = vmatpush1.bf16.msra.mxu0 %v1922
    %2090 = vmatprep.subr.bf16.mxu0 %v1927
    %2091 = vmatpush1.bf16.msra.mxu0 %v1926
    %2092 = vmatprep.subr.bf16.mxu0 %v1931
    %2093 = vmatpush1.bf16.msra.mxu0 %v1930
    %2094 = vmatprep.subr.bf16.mxu0 %v1935
    %2095 = vmatpush1.bf16.msra.mxu0 %v1934
    %2096 = vmatprep.subr.bf16.mxu0 %v1939
    %2097 = vmatpush1.bf16.msra.mxu0 %v1938
    %2098 = vmatprep.mubr.bf16.mxu0 %v1618
    %2099 = vmatmul.mubr.bf16.gmra.mrb[0].mxu0 %v1617
    %v2100 = vpop.f32.mrb[0].mxu0
    %v2101 = vadd.f32 %v2016, %v2100
    %v2102 = vpop.f32.mrb[0].mxu0
    %v2103 = vadd.f32 %v2020, %v2102
    %v2104 = vpop.f32.mrb[0].mxu0
    %v2105 = vpop.f32.mrb[0].mxu0
    %2106 = vdwg.mxu0
    %v2107 = vxor.u32 %v2060, 2147483648
    %v2108 = vmul.f32 %v2107, 1.442695
    %v2109 = vpow.pop %v2108
    %v2110 = vadd.f32 %v2109, 1.0
    %v2111 = vrcp.pop %v2110
    %v2112 = vmul.f32 1.0, %v2111
    %v2113 = vxor.u32 %v2062, 2147483648
    %v2114 = vmul.f32 %v2113, 1.442695
    %v2115 = vpow.pop %v2114
    %v2116 = vadd.f32 %v2115, 1.0
    %v2117 = vrcp.pop %v2116
    %v2118 = vmul.f32 1.0, %v2117
    %v2119 = vmul.f32 %v2112, %v2103
    %v2120 = vadd.f32 %v2101, %v2119
    %v2121 = vtanh.pop %v2120
    %v2122 = vsub.f32 1.0, %v2118
    %v2123 = vmul.f32 %v2122, %v2121
    %v2124 = vmul.f32 %v2118, %v1612
    %v2125 = vadd.f32 %v2123, %v2124
    %2126 = vst [vmem:[#allocation2 + $0x3] sm:$0x1] %v2125
    %s2127 = sld [smem:[#allocation4 + $0x4]]
    %s2128 = scalar_lea.vmem [#allocation5], %s2127
    %v2129 = vld [vmem:[%s2128] sm:$0x1]
    %v2130 = vpack.c.bf16 %v2129, %v2129
    %v2131 = vpack.c.bf16 %v2125, %v2125
    %v2132 = vld [vmem:[#allocation8] sm:$0xff]
    %v2133 = vld [vmem:[#allocation8 + $0x8] sm:$0xff]
    %v2134 = vld [vmem:[#allocation8 + $0x10] sm:$0xff]
    %v2135 = vld [vmem:[#allocation8 + $0x18] sm:$0xff]
    %v2136 = vld [vmem:[#allocation8 + $0x20] sm:$0xff]
    %v2137 = vld [vmem:[#allocation8 + $0x28] sm:$0xff]
    %v2138 = vld [vmem:[#allocation8 + $0x30] sm:$0xff]
    %v2139 = vld [vmem:[#allocation8 + $0x38] sm:$0xff]
    %v2140 = vld [vmem:[#allocation8 + $0x40] sm:$0xff]
    %v2141 = vld [vmem:[#allocation8 + $0x48] sm:$0xff]
    %v2142 = vld [vmem:[#allocation8 + $0x50] sm:$0xff]
    %v2143 = vld [vmem:[#allocation8 + $0x58] sm:$0xff]
    %v2144 = vld [vmem:[#allocation8 + $0x60] sm:$0xff]
    %v2145 = vld [vmem:[#allocation8 + $0x68] sm:$0xff]
    %v2146 = vld [vmem:[#allocation8 + $0x70] sm:$0xff]
    %v2147 = vld [vmem:[#allocation8 + $0x78] sm:$0xff]
    %v2148 = vld [vmem:[#allocation8 + $0x80] sm:$0xff]
    %v2149 = vld [vmem:[#allocation8 + $0x88] sm:$0xff]
    %v2150 = vld [vmem:[#allocation8 + $0x90] sm:$0xff]
    %v2151 = vld [vmem:[#allocation8 + $0x98] sm:$0xff]
    %v2152 = vld [vmem:[#allocation8 + $0xa0] sm:$0xff]
    %v2153 = vld [vmem:[#allocation8 + $0xa8] sm:$0xff]
    %v2154 = vld [vmem:[#allocation8 + $0xb0] sm:$0xff]
    %v2155 = vld [vmem:[#allocation8 + $0xb8] sm:$0xff]
    %v2156 = vld [vmem:[#allocation8 + $0xc0] sm:$0xff]
    %v2157 = vld [vmem:[#allocation8 + $0xc8] sm:$0xff]
    %v2158 = vld [vmem:[#allocation8 + $0xd0] sm:$0xff]
    %v2159 = vld [vmem:[#allocation8 + $0xd8] sm:$0xff]
    %v2160 = vld [vmem:[#allocation8 + $0xe0] sm:$0xff]
    %v2161 = vld [vmem:[#allocation8 + $0xe8] sm:$0xff]
    %v2162 = vld [vmem:[#allocation8 + $0xf0] sm:$0xff]
    %v2163 = vld [vmem:[#allocation8 + $0xf8] sm:$0xff]
    %v2164 = vld [vmem:[#allocation8 + $0x100] sm:$0xff]
    %v2165 = vld [vmem:[#allocation8 + $0x108] sm:$0xff]
    %v2166 = vld [vmem:[#allocation8 + $0x110] sm:$0xff]
    %v2167 = vld [vmem:[#allocation8 + $0x118] sm:$0xff]
    %v2168 = vld [vmem:[#allocation8 + $0x120] sm:$0xff]
    %v2169 = vld [vmem:[#allocation8 + $0x128] sm:$0xff]
    %v2170 = vld [vmem:[#allocation8 + $0x130] sm:$0xff]
    %v2171 = vld [vmem:[#allocation8 + $0x138] sm:$0xff]
    %v2172 = vld [vmem:[#allocation8 + $0x140] sm:$0xff]
    %v2173 = vld [vmem:[#allocation8 + $0x148] sm:$0xff]
    %v2174 = vld [vmem:[#allocation8 + $0x150] sm:$0xff]
    %v2175 = vld [vmem:[#allocation8 + $0x158] sm:$0xff]
    %v2176 = vld [vmem:[#allocation8 + $0x160] sm:$0xff]
    %v2177 = vld [vmem:[#allocation8 + $0x168] sm:$0xff]
    %v2178 = vld [vmem:[#allocation8 + $0x170] sm:$0xff]
    %v2179 = vld [vmem:[#allocation8 + $0x178] sm:$0xff]
    %v2180 = vld [vmem:[#allocation8 + $0x180] sm:$0xff]
    %v2181 = vld [vmem:[#allocation8 + $0x188] sm:$0xff]
    %v2182 = vld [vmem:[#allocation8 + $0x190] sm:$0xff]
    %v2183 = vld [vmem:[#allocation8 + $0x198] sm:$0xff]
    %v2184 = vld [vmem:[#allocation8 + $0x1a0] sm:$0xff]
    %v2185 = vld [vmem:[#allocation8 + $0x1a8] sm:$0xff]
    %v2186 = vld [vmem:[#allocation8 + $0x1b0] sm:$0xff]
    %v2187 = vld [vmem:[#allocation8 + $0x1b8] sm:$0xff]
    %v2188 = vld [vmem:[#allocation8 + $0x1c0] sm:$0xff]
    %v2189 = vld [vmem:[#allocation8 + $0x1c8] sm:$0xff]
    %v2190 = vld [vmem:[#allocation8 + $0x1d0] sm:$0xff]
    %v2191 = vld [vmem:[#allocation8 + $0x1d8] sm:$0xff]
    %v2192 = vld [vmem:[#allocation8 + $0x1e0] sm:$0xff]
    %v2193 = vld [vmem:[#allocation8 + $0x1e8] sm:$0xff]
    %v2194 = vld [vmem:[#allocation8 + $0x1f0] sm:$0xff]
    %v2195 = vld [vmem:[#allocation8 + $0x1f8] sm:$0xff]
    %v2196 = vld [vmem:[%s4] sm:$0xf]
    %v2261 = vunpack.c.l.b16 %v2132
    %v2262 = vunpack.c.h.b16 %v2132
    %v2263 = vunpack.c.l.b16 %v2133
    %v2264 = vunpack.c.h.b16 %v2133
    %v2265 = vunpack.c.l.b16 %v2134
    %v2266 = vunpack.c.h.b16 %v2134
    %v2267 = vunpack.c.l.b16 %v2135
    %v2268 = vunpack.c.h.b16 %v2135
    %v2269 = vunpack.c.l.b16 %v2136
    %v2270 = vunpack.c.h.b16 %v2136
    %v2271 = vunpack.c.l.b16 %v2137
    %v2272 = vunpack.c.h.b16 %v2137
    %v2273 = vunpack.c.l.b16 %v2138
    %v2274 = vunpack.c.h.b16 %v2138
    %v2275 = vunpack.c.l.b16 %v2139
    %v2276 = vunpack.c.h.b16 %v2139
    %v2277 = vunpack.c.l.b16 %v2140
    %v2278 = vunpack.c.h.b16 %v2140
    %v2279 = vunpack.c.l.b16 %v2141
    %v2280 = vunpack.c.h.b16 %v2141
    %v2281 = vunpack.c.l.b16 %v2142
    %v2282 = vunpack.c.h.b16 %v2142
    %v2283 = vunpack.c.l.b16 %v2143
    %v2284 = vunpack.c.h.b16 %v2143
    %v2285 = vunpack.c.l.b16 %v2144
    %v2286 = vunpack.c.h.b16 %v2144
    %v2287 = vunpack.c.l.b16 %v2145
    %v2288 = vunpack.c.h.b16 %v2145
    %v2289 = vunpack.c.l.b16 %v2146
    %v2290 = vunpack.c.h.b16 %v2146
    %v2291 = vunpack.c.l.b16 %v2147
    %v2292 = vunpack.c.h.b16 %v2147
    %v2293 = vunpack.c.l.b16 %v2148
    %v2294 = vunpack.c.h.b16 %v2148
    %v2295 = vunpack.c.l.b16 %v2149
    %v2296 = vunpack.c.h.b16 %v2149
    %v2297 = vunpack.c.l.b16 %v2150
    %v2298 = vunpack.c.h.b16 %v2150
    %v2299 = vunpack.c.l.b16 %v2151
    %v2300 = vunpack.c.h.b16 %v2151
    %v2301 = vunpack.c.l.b16 %v2152
    %v2302 = vunpack.c.h.b16 %v2152
    %v2303 = vunpack.c.l.b16 %v2153
    %v2304 = vunpack.c.h.b16 %v2153
    %v2305 = vunpack.c.l.b16 %v2154
    %v2306 = vunpack.c.h.b16 %v2154
    %v2307 = vunpack.c.l.b16 %v2155
    %v2308 = vunpack.c.h.b16 %v2155
    %v2309 = vunpack.c.l.b16 %v2156
    %v2310 = vunpack.c.h.b16 %v2156
    %v2311 = vunpack.c.l.b16 %v2157
    %v2312 = vunpack.c.h.b16 %v2157
    %v2313 = vunpack.c.l.b16 %v2158
    %v2314 = vunpack.c.h.b16 %v2158
    %v2315 = vunpack.c.l.b16 %v2159
    %v2316 = vunpack.c.h.b16 %v2159
    %v2317 = vunpack.c.l.b16 %v2160
    %v2318 = vunpack.c.h.b16 %v2160
    %v2319 = vunpack.c.l.b16 %v2161
    %v2320 = vunpack.c.h.b16 %v2161
    %v2321 = vunpack.c.l.b16 %v2162
    %v2322 = vunpack.c.h.b16 %v2162
    %v2323 = vunpack.c.l.b16 %v2163
    %v2324 = vunpack.c.h.b16 %v2163
    %v2325 = vunpack.c.l.b16 %v2164
    %v2326 = vunpack.c.h.b16 %v2164
    %v2327 = vunpack.c.l.b16 %v2165
    %v2328 = vunpack.c.h.b16 %v2165
    %v2329 = vunpack.c.l.b16 %v2166
    %v2330 = vunpack.c.h.b16 %v2166
    %v2331 = vunpack.c.l.b16 %v2167
    %v2332 = vunpack.c.h.b16 %v2167
    %v2333 = vunpack.c.l.b16 %v2168
    %v2334 = vunpack.c.h.b16 %v2168
    %v2335 = vunpack.c.l.b16 %v2169
    %v2336 = vunpack.c.h.b16 %v2169
    %v2337 = vunpack.c.l.b16 %v2170
    %v2338 = vunpack.c.h.b16 %v2170
    %v2339 = vunpack.c.l.b16 %v2171
    %v2340 = vunpack.c.h.b16 %v2171
    %v2341 = vunpack.c.l.b16 %v2172
    %v2342 = vunpack.c.h.b16 %v2172
    %v2343 = vunpack.c.l.b16 %v2173
    %v2344 = vunpack.c.h.b16 %v2173
    %v2345 = vunpack.c.l.b16 %v2174
    %v2346 = vunpack.c.h.b16 %v2174
    %v2347 = vunpack.c.l.b16 %v2175
    %v2348 = vunpack.c.h.b16 %v2175
    %v2349 = vunpack.c.l.b16 %v2176
    %v2350 = vunpack.c.h.b16 %v2176
    %v2351 = vunpack.c.l.b16 %v2177
    %v2352 = vunpack.c.h.b16 %v2177
    %v2353 = vunpack.c.l.b16 %v2178
    %v2354 = vunpack.c.h.b16 %v2178
    %v2355 = vunpack.c.l.b16 %v2179
    %v2356 = vunpack.c.h.b16 %v2179
    %v2357 = vunpack.c.l.b16 %v2180
    %v2358 = vunpack.c.h.b16 %v2180
    %v2359 = vunpack.c.l.b16 %v2181
    %v2360 = vunpack.c.h.b16 %v2181
    %v2361 = vunpack.c.l.b16 %v2182
    %v2362 = vunpack.c.h.b16 %v2182
    %v2363 = vunpack.c.l.b16 %v2183
    %v2364 = vunpack.c.h.b16 %v2183
    %v2365 = vunpack.c.l.b16 %v2184
    %v2366 = vunpack.c.h.b16 %v2184
    %v2367 = vunpack.c.l.b16 %v2185
    %v2368 = vunpack.c.h.b16 %v2185
    %v2369 = vunpack.c.l.b16 %v2186
    %v2370 = vunpack.c.h.b16 %v2186
    %v2371 = vunpack.c.l.b16 %v2187
    %v2372 = vunpack.c.h.b16 %v2187
    %v2373 = vunpack.c.l.b16 %v2188
    %v2374 = vunpack.c.h.b16 %v2188
    %v2375 = vunpack.c.l.b16 %v2189
    %v2376 = vunpack.c.h.b16 %v2189
    %v2377 = vunpack.c.l.b16 %v2190
    %v2378 = vunpack.c.h.b16 %v2190
    %v2379 = vunpack.c.l.b16 %v2191
    %v2380 = vunpack.c.h.b16 %v2191
    %v2381 = vunpack.c.l.b16 %v2192
    %v2382 = vunpack.c.h.b16 %v2192
    %v2383 = vunpack.c.l.b16 %v2193
    %v2384 = vunpack.c.h.b16 %v2193
    %v2385 = vunpack.c.l.b16 %v2194
    %v2386 = vunpack.c.h.b16 %v2194
    %v2387 = vunpack.c.l.b16 %v2195
    %v2388 = vunpack.c.h.b16 %v2195
    %v2389 = vpack.c.b16 %v2265, %v2261
    %v2390 = vpack.c.b16 %v2266, %v2262
    %v2391 = vpack.c.b16 %v2267, %v2263
    %v2392 = vpack.c.b16 %v2268, %v2264
    %v2393 = vpack.c.b16 %v2273, %v2269
    %v2394 = vpack.c.b16 %v2274, %v2270
    %v2395 = vpack.c.b16 %v2275, %v2271
    %v2396 = vpack.c.b16 %v2276, %v2272
    %v2397 = vpack.c.b16 %v2281, %v2277
    %v2398 = vpack.c.b16 %v2282, %v2278
    %v2399 = vpack.c.b16 %v2283, %v2279
    %v2400 = vpack.c.b16 %v2284, %v2280
    %v2401 = vpack.c.b16 %v2289, %v2285
    %v2402 = vpack.c.b16 %v2290, %v2286
    %v2403 = vpack.c.b16 %v2291, %v2287
    %v2404 = vpack.c.b16 %v2292, %v2288
    %v2405 = vpack.c.b16 %v2297, %v2293
    %v2406 = vpack.c.b16 %v2298, %v2294
    %v2407 = vpack.c.b16 %v2299, %v2295
    %v2408 = vpack.c.b16 %v2300, %v2296
    %v2409 = vpack.c.b16 %v2305, %v2301
    %v2410 = vpack.c.b16 %v2306, %v2302
    %v2411 = vpack.c.b16 %v2307, %v2303
    %v2412 = vpack.c.b16 %v2308, %v2304
    %v2413 = vpack.c.b16 %v2313, %v2309
    %v2414 = vpack.c.b16 %v2314, %v2310
    %v2415 = vpack.c.b16 %v2315, %v2311
    %v2416 = vpack.c.b16 %v2316, %v2312
    %v2417 = vpack.c.b16 %v2321, %v2317
    %v2418 = vpack.c.b16 %v2322, %v2318
    %v2419 = vpack.c.b16 %v2323, %v2319
    %v2420 = vpack.c.b16 %v2324, %v2320
    %v2421 = vpack.c.b16 %v2329, %v2325
    %v2422 = vpack.c.b16 %v2330, %v2326
    %v2423 = vpack.c.b16 %v2331, %v2327
    %v2424 = vpack.c.b16 %v2332, %v2328
    %v2425 = vpack.c.b16 %v2337, %v2333
    %v2426 = vpack.c.b16 %v2338, %v2334
    %v2427 = vpack.c.b16 %v2339, %v2335
    %v2428 = vpack.c.b16 %v2340, %v2336
    %v2429 = vpack.c.b16 %v2345, %v2341
    %v2430 = vpack.c.b16 %v2346, %v2342
    %v2431 = vpack.c.b16 %v2347, %v2343
    %v2432 = vpack.c.b16 %v2348, %v2344
    %v2433 = vpack.c.b16 %v2353, %v2349
    %v2434 = vpack.c.b16 %v2354, %v2350
    %v2435 = vpack.c.b16 %v2355, %v2351
    %v2436 = vpack.c.b16 %v2356, %v2352
    %v2437 = vpack.c.b16 %v2361, %v2357
    %v2438 = vpack.c.b16 %v2362, %v2358
    %v2439 = vpack.c.b16 %v2363, %v2359
    %v2440 = vpack.c.b16 %v2364, %v2360
    %v2441 = vpack.c.b16 %v2369, %v2365
    %v2442 = vpack.c.b16 %v2370, %v2366
    %v2443 = vpack.c.b16 %v2371, %v2367
    %v2444 = vpack.c.b16 %v2372, %v2368
    %v2445 = vpack.c.b16 %v2377, %v2373
    %v2446 = vpack.c.b16 %v2378, %v2374
    %v2447 = vpack.c.b16 %v2379, %v2375
    %v2448 = vpack.c.b16 %v2380, %v2376
    %v2449 = vpack.c.b16 %v2385, %v2381
    %v2450 = vpack.c.b16 %v2386, %v2382
    %v2451 = vpack.c.b16 %v2387, %v2383
    %v2452 = vpack.c.b16 %v2388, %v2384
    %v2518 = vlaneseq
    %v2519 = vshrl.u32 %v2518, 7
    %v2520 = vsub.s32 0, %v2519
    %v2521 = vrot.slane %v2196, %v2520
    %v2522 = vlaneseq
    %v2523 = vshrl.u32 %v2522, 7
    %v2524 = vsub.s32 1, %v2523
    %v2525 = vrot.slane %v2196, %v2524
    %v2526 = vlaneseq
    %v2527 = vshrl.u32 %v2526, 7
    %v2528 = vsub.s32 2, %v2527
    %v2529 = vrot.slane %v2196, %v2528
    %v2530 = vlaneseq
    %v2531 = vshrl.u32 %v2530, 7
    %v2532 = vsub.s32 3, %v2531
    %v2533 = vrot.slane %v2196, %v2532
    %2538 = vmatprep.subr.bf16.mxu0 %v2390
    %2539 = vmatpush1.bf16.msra.mxu0 %v2389
    %2540 = vmatprep.subr.bf16.mxu0 %v2394
    %2541 = vmatpush1.bf16.msra.mxu0 %v2393
    %2542 = vmatprep.subr.bf16.mxu0 %v2398
    %2543 = vmatpush1.bf16.msra.mxu0 %v2397
    %2544 = vmatprep.subr.bf16.mxu0 %v2402
    %2545 = vmatpush1.bf16.msra.mxu0 %v2401
    %2546 = vmatprep.subr.bf16.mxu0 %v2406
    %2547 = vmatpush1.bf16.msra.mxu0 %v2405
    %2548 = vmatprep.subr.bf16.mxu0 %v2410
    %2549 = vmatpush1.bf16.msra.mxu0 %v2409
    %2550 = vmatprep.subr.bf16.mxu0 %v2414
    %2551 = vmatpush1.bf16.msra.mxu0 %v2413
    %2552 = vmatprep.subr.bf16.mxu0 %v2418
    %2553 = vmatpush1.bf16.msra.mxu0 %v2417
    %2554 = vmatprep.subr.bf16.mxu0 %v2422
    %2555 = vmatpush1.bf16.msra.mxu0 %v2421
    %2556 = vmatprep.subr.bf16.mxu0 %v2426
    %2557 = vmatpush1.bf16.msra.mxu0 %v2425
    %2558 = vmatprep.subr.bf16.mxu0 %v2430
    %2559 = vmatpush1.bf16.msra.mxu0 %v2429
    %2560 = vmatprep.subr.bf16.mxu0 %v2434
    %2561 = vmatpush1.bf16.msra.mxu0 %v2433
    %2562 = vmatprep.subr.bf16.mxu0 %v2438
    %2563 = vmatpush1.bf16.msra.mxu0 %v2437
    %2564 = vmatprep.subr.bf16.mxu0 %v2442
    %2565 = vmatpush1.bf16.msra.mxu0 %v2441
    %2566 = vmatprep.subr.bf16.mxu0 %v2446
    %2567 = vmatpush1.bf16.msra.mxu0 %v2445
    %2568 = vmatprep.subr.bf16.mxu0 %v2450
    %2569 = vmatpush1.bf16.msra.mxu0 %v2449
    %2570 = vmatprep.mubr.bf16.mxu0 %v2131
    %2571 = vmatmul.mubr.bf16.gmra.mrb[0].mxu0 %v2130
    %v2572 = vpop.f32.mrb[0].mxu0
    %v2573 = vadd.f32 %v2521, %v2572
    %v2574 = vpop.f32.mrb[0].mxu0
    %v2575 = vadd.f32 %v2525, %v2574
    %v2576 = vpop.f32.mrb[0].mxu0
    %v2577 = vpop.f32.mrb[0].mxu0
    %2578 = vdwg.mxu0
    %2579 = vmatprep.subr.bf16.mxu0 %v2392
    %2580 = vmatpush1.bf16.msra.mxu0 %v2391
    %2581 = vmatprep.subr.bf16.mxu0 %v2396
    %2582 = vmatpush1.bf16.msra.mxu0 %v2395
    %2583 = vmatprep.subr.bf16.mxu0 %v2400
    %2584 = vmatpush1.bf16.msra.mxu0 %v2399
    %2585 = vmatprep.subr.bf16.mxu0 %v2404
    %2586 = vmatpush1.bf16.msra.mxu0 %v2403
    %2587 = vmatprep.subr.bf16.mxu0 %v2408
    %2588 = vmatpush1.bf16.msra.mxu0 %v2407
    %2589 = vmatprep.subr.bf16.mxu0 %v2412
    %2590 = vmatpush1.bf16.msra.mxu0 %v2411
    %2591 = vmatprep.subr.bf16.mxu0 %v2416
    %2592 = vmatpush1.bf16.msra.mxu0 %v2415
    %2593 = vmatprep.subr.bf16.mxu0 %v2420
    %2594 = vmatpush1.bf16.msra.mxu0 %v2419
    %2595 = vmatprep.subr.bf16.mxu0 %v2424
    %2596 = vmatpush1.bf16.msra.mxu0 %v2423
    %2597 = vmatprep.subr.bf16.mxu0 %v2428
    %2598 = vmatpush1.bf16.msra.mxu0 %v2427
    %2599 = vmatprep.subr.bf16.mxu0 %v2432
    %2600 = vmatpush1.bf16.msra.mxu0 %v2431
    %2601 = vmatprep.subr.bf16.mxu0 %v2436
    %2602 = vmatpush1.bf16.msra.mxu0 %v2435
    %2603 = vmatprep.subr.bf16.mxu0 %v2440
    %2604 = vmatpush1.bf16.msra.mxu0 %v2439
    %2605 = vmatprep.subr.bf16.mxu0 %v2444
    %2606 = vmatpush1.bf16.msra.mxu0 %v2443
    %2607 = vmatprep.subr.bf16.mxu0 %v2448
    %2608 = vmatpush1.bf16.msra.mxu0 %v2447
    %2609 = vmatprep.subr.bf16.mxu0 %v2452
    %2610 = vmatpush1.bf16.msra.mxu0 %v2451
    %2611 = vmatprep.mubr.bf16.mxu0 %v2131
    %2612 = vmatmul.mubr.bf16.gmra.mrb[0].mxu0 %v2130
    %v2613 = vpop.f32.mrb[0].mxu0
    %v2614 = vadd.f32 %v2529, %v2613
    %v2615 = vpop.f32.mrb[0].mxu0
    %v2616 = vadd.f32 %v2533, %v2615
    %v2617 = vpop.f32.mrb[0].mxu0
    %v2618 = vpop.f32.mrb[0].mxu0
    %2619 = vdwg.mxu0
    %v2620 = vxor.u32 %v2573, 2147483648
    %v2621 = vmul.f32 %v2620, 1.442695
    %v2622 = vpow.pop %v2621
    %v2623 = vadd.f32 %v2622, 1.0
    %v2624 = vrcp.pop %v2623
    %v2625 = vmul.f32 1.0, %v2624
    %v2626 = vxor.u32 %v2575, 2147483648
    %v2627 = vmul.f32 %v2626, 1.442695
    %v2628 = vpow.pop %v2627
    %v2629 = vadd.f32 %v2628, 1.0
    %v2630 = vrcp.pop %v2629
    %v2631 = vmul.f32 1.0, %v2630
    %v2632 = vmul.f32 %v2625, %v2616
    %v2633 = vadd.f32 %v2614, %v2632
    %v2634 = vtanh.pop %v2633
    %v2635 = vsub.f32 1.0, %v2631
    %v2636 = vmul.f32 %v2635, %v2634
    %v2637 = vmul.f32 %v2631, %v2125
    %v2638 = vadd.f32 %v2636, %v2637
    %2639 = vst [vmem:[#allocation2 + $0x4] sm:$0x1] %v2638
    %s2640 = sld [smem:[#allocation4 + $0x5]]
    %s2641 = scalar_lea.vmem [#allocation5], %s2640
    %v2642 = vld [vmem:[%s2641] sm:$0x1]
    %v2643 = vpack.c.bf16 %v2642, %v2642
    %v2644 = vpack.c.bf16 %v2638, %v2638
    %v2645 = vld [vmem:[#allocation8] sm:$0xff]
    %v2646 = vld [vmem:[#allocation8 + $0x8] sm:$0xff]
    %v2647 = vld [vmem:[#allocation8 + $0x10] sm:$0xff]
    %v2648 = vld [vmem:[#allocation8 + $0x18] sm:$0xff]
    %v2649 = vld [vmem:[#allocation8 + $0x20] sm:$0xff]
    %v2650 = vld [vmem:[#allocation8 + $0x28] sm:$0xff]
    %v2651 = vld [vmem:[#allocation8 + $0x30] sm:$0xff]
    %v2652 = vld [vmem:[#allocation8 + $0x38] sm:$0xff]
    %v2653 = vld [vmem:[#allocation8 + $0x40] sm:$0xff]
    %v2654 = vld [vmem:[#allocation8 + $0x48] sm:$0xff]
    %v2655 = vld [vmem:[#allocation8 + $0x50] sm:$0xff]
    %v2656 = vld [vmem:[#allocation8 + $0x58] sm:$0xff]
    %v2657 = vld [vmem:[#allocation8 + $0x60] sm:$0xff]
    %v2658 = vld [vmem:[#allocation8 + $0x68] sm:$0xff]
    %v2659 = vld [vmem:[#allocation8 + $0x70] sm:$0xff]
    %v2660 = vld [vmem:[#allocation8 + $0x78] sm:$0xff]
    %v2661 = vld [vmem:[#allocation8 + $0x80] sm:$0xff]
    %v2662 = vld [vmem:[#allocation8 + $0x88] sm:$0xff]
    %v2663 = vld [vmem:[#allocation8 + $0x90] sm:$0xff]
    %v2664 = vld [vmem:[#allocation8 + $0x98] sm:$0xff]
    %v2665 = vld [vmem:[#allocation8 + $0xa0] sm:$0xff]
    %v2666 = vld [vmem:[#allocation8 + $0xa8] sm:$0xff]
    %v2667 = vld [vmem:[#allocation8 + $0xb0] sm:$0xff]
    %v2668 = vld [vmem:[#allocation8 + $0xb8] sm:$0xff]
    %v2669 = vld [vmem:[#allocation8 + $0xc0] sm:$0xff]
    %v2670 = vld [vmem:[#allocation8 + $0xc8] sm:$0xff]
    %v2671 = vld [vmem:[#allocation8 + $0xd0] sm:$0xff]
    %v2672 = vld [vmem:[#allocation8 + $0xd8] sm:$0xff]
    %v2673 = vld [vmem:[#allocation8 + $0xe0] sm:$0xff]
    %v2674 = vld [vmem:[#allocation8 + $0xe8] sm:$0xff]
    %v2675 = vld [vmem:[#allocation8 + $0xf0] sm:$0xff]
    %v2676 = vld [vmem:[#allocation8 + $0xf8] sm:$0xff]
    %v2677 = vld [vmem:[#allocation8 + $0x100] sm:$0xff]
    %v2678 = vld [vmem:[#allocation8 + $0x108] sm:$0xff]
    %v2679 = vld [vmem:[#allocation8 + $0x110] sm:$0xff]
    %v2680 = vld [vmem:[#allocation8 + $0x118] sm:$0xff]
    %v2681 = vld [vmem:[#allocation8 + $0x120] sm:$0xff]
    %v2682 = vld [vmem:[#allocation8 + $0x128] sm:$0xff]
    %v2683 = vld [vmem:[#allocation8 + $0x130] sm:$0xff]
    %v2684 = vld [vmem:[#allocation8 + $0x138] sm:$0xff]
    %v2685 = vld [vmem:[#allocation8 + $0x140] sm:$0xff]
    %v2686 = vld [vmem:[#allocation8 + $0x148] sm:$0xff]
    %v2687 = vld [vmem:[#allocation8 + $0x150] sm:$0xff]
    %v2688 = vld [vmem:[#allocation8 + $0x158] sm:$0xff]
    %v2689 = vld [vmem:[#allocation8 + $0x160] sm:$0xff]
    %v2690 = vld [vmem:[#allocation8 + $0x168] sm:$0xff]
    %v2691 = vld [vmem:[#allocation8 + $0x170] sm:$0xff]
    %v2692 = vld [vmem:[#allocation8 + $0x178] sm:$0xff]
    %v2693 = vld [vmem:[#allocation8 + $0x180] sm:$0xff]
    %v2694 = vld [vmem:[#allocation8 + $0x188] sm:$0xff]
    %v2695 = vld [vmem:[#allocation8 + $0x190] sm:$0xff]
    %v2696 = vld [vmem:[#allocation8 + $0x198] sm:$0xff]
    %v2697 = vld [vmem:[#allocation8 + $0x1a0] sm:$0xff]
    %v2698 = vld [vmem:[#allocation8 + $0x1a8] sm:$0xff]
    %v2699 = vld [vmem:[#allocation8 + $0x1b0] sm:$0xff]
    %v2700 = vld [vmem:[#allocation8 + $0x1b8] sm:$0xff]
    %v2701 = vld [vmem:[#allocation8 + $0x1c0] sm:$0xff]
    %v2702 = vld [vmem:[#allocation8 + $0x1c8] sm:$0xff]
    %v2703 = vld [vmem:[#allocation8 + $0x1d0] sm:$0xff]
    %v2704 = vld [vmem:[#allocation8 + $0x1d8] sm:$0xff]
    %v2705 = vld [vmem:[#allocation8 + $0x1e0] sm:$0xff]
    %v2706 = vld [vmem:[#allocation8 + $0x1e8] sm:$0xff]
    %v2707 = vld [vmem:[#allocation8 + $0x1f0] sm:$0xff]
    %v2708 = vld [vmem:[#allocation8 + $0x1f8] sm:$0xff]
    %v2709 = vld [vmem:[%s4] sm:$0xf]
    %v2774 = vunpack.c.l.b16 %v2645
    %v2775 = vunpack.c.h.b16 %v2645
    %v2776 = vunpack.c.l.b16 %v2646
    %v2777 = vunpack.c.h.b16 %v2646
    %v2778 = vunpack.c.l.b16 %v2647
    %v2779 = vunpack.c.h.b16 %v2647
    %v2780 = vunpack.c.l.b16 %v2648
    %v2781 = vunpack.c.h.b16 %v2648
    %v2782 = vunpack.c.l.b16 %v2649
    %v2783 = vunpack.c.h.b16 %v2649
    %v2784 = vunpack.c.l.b16 %v2650
    %v2785 = vunpack.c.h.b16 %v2650
    %v2786 = vunpack.c.l.b16 %v2651
    %v2787 = vunpack.c.h.b16 %v2651
    %v2788 = vunpack.c.l.b16 %v2652
    %v2789 = vunpack.c.h.b16 %v2652
    %v2790 = vunpack.c.l.b16 %v2653
    %v2791 = vunpack.c.h.b16 %v2653
    %v2792 = vunpack.c.l.b16 %v2654
    %v2793 = vunpack.c.h.b16 %v2654
    %v2794 = vunpack.c.l.b16 %v2655
    %v2795 = vunpack.c.h.b16 %v2655
    %v2796 = vunpack.c.l.b16 %v2656
    %v2797 = vunpack.c.h.b16 %v2656
    %v2798 = vunpack.c.l.b16 %v2657
    %v2799 = vunpack.c.h.b16 %v2657
    %v2800 = vunpack.c.l.b16 %v2658
    %v2801 = vunpack.c.h.b16 %v2658
    %v2802 = vunpack.c.l.b16 %v2659
    %v2803 = vunpack.c.h.b16 %v2659
    %v2804 = vunpack.c.l.b16 %v2660
    %v2805 = vunpack.c.h.b16 %v2660
    %v2806 = vunpack.c.l.b16 %v2661
    %v2807 = vunpack.c.h.b16 %v2661
    %v2808 = vunpack.c.l.b16 %v2662
    %v2809 = vunpack.c.h.b16 %v2662
    %v2810 = vunpack.c.l.b16 %v2663
    %v2811 = vunpack.c.h.b16 %v2663
    %v2812 = vunpack.c.l.b16 %v2664
    %v2813 = vunpack.c.h.b16 %v2664
    %v2814 = vunpack.c.l.b16 %v2665
    %v2815 = vunpack.c.h.b16 %v2665
    %v2816 = vunpack.c.l.b16 %v2666
    %v2817 = vunpack.c.h.b16 %v2666
    %v2818 = vunpack.c.l.b16 %v2667
    %v2819 = vunpack.c.h.b16 %v2667
    %v2820 = vunpack.c.l.b16 %v2668
    %v2821 = vunpack.c.h.b16 %v2668
    %v2822 = vunpack.c.l.b16 %v2669
    %v2823 = vunpack.c.h.b16 %v2669
    %v2824 = vunpack.c.l.b16 %v2670
    %v2825 = vunpack.c.h.b16 %v2670
    %v2826 = vunpack.c.l.b16 %v2671
    %v2827 = vunpack.c.h.b16 %v2671
    %v2828 = vunpack.c.l.b16 %v2672
    %v2829 = vunpack.c.h.b16 %v2672
    %v2830 = vunpack.c.l.b16 %v2673
    %v2831 = vunpack.c.h.b16 %v2673
    %v2832 = vunpack.c.l.b16 %v2674
    %v2833 = vunpack.c.h.b16 %v2674
    %v2834 = vunpack.c.l.b16 %v2675
    %v2835 = vunpack.c.h.b16 %v2675
    %v2836 = vunpack.c.l.b16 %v2676
    %v2837 = vunpack.c.h.b16 %v2676
    %v2838 = vunpack.c.l.b16 %v2677
    %v2839 = vunpack.c.h.b16 %v2677
    %v2840 = vunpack.c.l.b16 %v2678
    %v2841 = vunpack.c.h.b16 %v2678
    %v2842 = vunpack.c.l.b16 %v2679
    %v2843 = vunpack.c.h.b16 %v2679
    %v2844 = vunpack.c.l.b16 %v2680
    %v2845 = vunpack.c.h.b16 %v2680
    %v2846 = vunpack.c.l.b16 %v2681
    %v2847 = vunpack.c.h.b16 %v2681
    %v2848 = vunpack.c.l.b16 %v2682
    %v2849 = vunpack.c.h.b16 %v2682
    %v2850 = vunpack.c.l.b16 %v2683
    %v2851 = vunpack.c.h.b16 %v2683
    %v2852 = vunpack.c.l.b16 %v2684
    %v2853 = vunpack.c.h.b16 %v2684
    %v2854 = vunpack.c.l.b16 %v2685
    %v2855 = vunpack.c.h.b16 %v2685
    %v2856 = vunpack.c.l.b16 %v2686
    %v2857 = vunpack.c.h.b16 %v2686
    %v2858 = vunpack.c.l.b16 %v2687
    %v2859 = vunpack.c.h.b16 %v2687
    %v2860 = vunpack.c.l.b16 %v2688
    %v2861 = vunpack.c.h.b16 %v2688
    %v2862 = vunpack.c.l.b16 %v2689
    %v2863 = vunpack.c.h.b16 %v2689
    %v2864 = vunpack.c.l.b16 %v2690
    %v2865 = vunpack.c.h.b16 %v2690
    %v2866 = vunpack.c.l.b16 %v2691
    %v2867 = vunpack.c.h.b16 %v2691
    %v2868 = vunpack.c.l.b16 %v2692
    %v2869 = vunpack.c.h.b16 %v2692
    %v2870 = vunpack.c.l.b16 %v2693
    %v2871 = vunpack.c.h.b16 %v2693
    %v2872 = vunpack.c.l.b16 %v2694
    %v2873 = vunpack.c.h.b16 %v2694
    %v2874 = vunpack.c.l.b16 %v2695
    %v2875 = vunpack.c.h.b16 %v2695
    %v2876 = vunpack.c.l.b16 %v2696
    %v2877 = vunpack.c.h.b16 %v2696
    %v2878 = vunpack.c.l.b16 %v2697
    %v2879 = vunpack.c.h.b16 %v2697
    %v2880 = vunpack.c.l.b16 %v2698
    %v2881 = vunpack.c.h.b16 %v2698
    %v2882 = vunpack.c.l.b16 %v2699
    %v2883 = vunpack.c.h.b16 %v2699
    %v2884 = vunpack.c.l.b16 %v2700
    %v2885 = vunpack.c.h.b16 %v2700
    %v2886 = vunpack.c.l.b16 %v2701
    %v2887 = vunpack.c.h.b16 %v2701
    %v2888 = vunpack.c.l.b16 %v2702
    %v2889 = vunpack.c.h.b16 %v2702
    %v2890 = vunpack.c.l.b16 %v2703
    %v2891 = vunpack.c.h.b16 %v2703
    %v2892 = vunpack.c.l.b16 %v2704
    %v2893 = vunpack.c.h.b16 %v2704
    %v2894 = vunpack.c.l.b16 %v2705
    %v2895 = vunpack.c.h.b16 %v2705
    %v2896 = vunpack.c.l.b16 %v2706
    %v2897 = vunpack.c.h.b16 %v2706
    %v2898 = vunpack.c.l.b16 %v2707
    %v2899 = vunpack.c.h.b16 %v2707
    %v2900 = vunpack.c.l.b16 %v2708
    %v2901 = vunpack.c.h.b16 %v2708
    %v2902 = vpack.c.b16 %v2778, %v2774
    %v2903 = vpack.c.b16 %v2779, %v2775
    %v2904 = vpack.c.b16 %v2780, %v2776
    %v2905 = vpack.c.b16 %v2781, %v2777
    %v2906 = vpack.c.b16 %v2786, %v2782
    %v2907 = vpack.c.b16 %v2787, %v2783
    %v2908 = vpack.c.b16 %v2788, %v2784
    %v2909 = vpack.c.b16 %v2789, %v2785
    %v2910 = vpack.c.b16 %v2794, %v2790
    %v2911 = vpack.c.b16 %v2795, %v2791
    %v2912 = vpack.c.b16 %v2796, %v2792
    %v2913 = vpack.c.b16 %v2797, %v2793
    %v2914 = vpack.c.b16 %v2802, %v2798
    %v2915 = vpack.c.b16 %v2803, %v2799
    %v2916 = vpack.c.b16 %v2804, %v2800
    %v2917 = vpack.c.b16 %v2805, %v2801
    %v2918 = vpack.c.b16 %v2810, %v2806
    %v2919 = vpack.c.b16 %v2811, %v2807
    %v2920 = vpack.c.b16 %v2812, %v2808
    %v2921 = vpack.c.b16 %v2813, %v2809
    %v2922 = vpack.c.b16 %v2818, %v2814
    %v2923 = vpack.c.b16 %v2819, %v2815
    %v2924 = vpack.c.b16 %v2820, %v2816
    %v2925 = vpack.c.b16 %v2821, %v2817
    %v2926 = vpack.c.b16 %v2826, %v2822
    %v2927 = vpack.c.b16 %v2827, %v2823
    %v2928 = vpack.c.b16 %v2828, %v2824
    %v2929 = vpack.c.b16 %v2829, %v2825
    %v2930 = vpack.c.b16 %v2834, %v2830
    %v2931 = vpack.c.b16 %v2835, %v2831
    %v2932 = vpack.c.b16 %v2836, %v2832
    %v2933 = vpack.c.b16 %v2837, %v2833
    %v2934 = vpack.c.b16 %v2842, %v2838
    %v2935 = vpack.c.b16 %v2843, %v2839
    %v2936 = vpack.c.b16 %v2844, %v2840
    %v2937 = vpack.c.b16 %v2845, %v2841
    %v2938 = vpack.c.b16 %v2850, %v2846
    %v2939 = vpack.c.b16 %v2851, %v2847
    %v2940 = vpack.c.b16 %v2852, %v2848
    %v2941 = vpack.c.b16 %v2853, %v2849
    %v2942 = vpack.c.b16 %v2858, %v2854
    %v2943 = vpack.c.b16 %v2859, %v2855
    %v2944 = vpack.c.b16 %v2860, %v2856
    %v2945 = vpack.c.b16 %v2861, %v2857
    %v2946 = vpack.c.b16 %v2866, %v2862
    %v2947 = vpack.c.b16 %v2867, %v2863
    %v2948 = vpack.c.b16 %v2868, %v2864
    %v2949 = vpack.c.b16 %v2869, %v2865
    %v2950 = vpack.c.b16 %v2874, %v2870
    %v2951 = vpack.c.b16 %v2875, %v2871
    %v2952 = vpack.c.b16 %v2876, %v2872
    %v2953 = vpack.c.b16 %v2877, %v2873
    %v2954 = vpack.c.b16 %v2882, %v2878
    %v2955 = vpack.c.b16 %v2883, %v2879
    %v2956 = vpack.c.b16 %v2884, %v2880
    %v2957 = vpack.c.b16 %v2885, %v2881
    %v2958 = vpack.c.b16 %v2890, %v2886
    %v2959 = vpack.c.b16 %v2891, %v2887
    %v2960 = vpack.c.b16 %v2892, %v2888
    %v2961 = vpack.c.b16 %v2893, %v2889
    %v2962 = vpack.c.b16 %v2898, %v2894
    %v2963 = vpack.c.b16 %v2899, %v2895
    %v2964 = vpack.c.b16 %v2900, %v2896
    %v2965 = vpack.c.b16 %v2901, %v2897
    %v3031 = vlaneseq
    %v3032 = vshrl.u32 %v3031, 7
    %v3033 = vsub.s32 0, %v3032
    %v3034 = vrot.slane %v2709, %v3033
    %v3035 = vlaneseq
    %v3036 = vshrl.u32 %v3035, 7
    %v3037 = vsub.s32 1, %v3036
    %v3038 = vrot.slane %v2709, %v3037
    %v3039 = vlaneseq
    %v3040 = vshrl.u32 %v3039, 7
    %v3041 = vsub.s32 2, %v3040
    %v3042 = vrot.slane %v2709, %v3041
    %v3043 = vlaneseq
    %v3044 = vshrl.u32 %v3043, 7
    %v3045 = vsub.s32 3, %v3044
    %v3046 = vrot.slane %v2709, %v3045
    %3051 = vmatprep.subr.bf16.mxu0 %v2903
    %3052 = vmatpush1.bf16.msra.mxu0 %v2902
    %3053 = vmatprep.subr.bf16.mxu0 %v2907
    %3054 = vmatpush1.bf16.msra.mxu0 %v2906
    %3055 = vmatprep.subr.bf16.mxu0 %v2911
    %3056 = vmatpush1.bf16.msra.mxu0 %v2910
    %3057 = vmatprep.subr.bf16.mxu0 %v2915
    %3058 = vmatpush1.bf16.msra.mxu0 %v2914
    %3059 = vmatprep.subr.bf16.mxu0 %v2919
    %3060 = vmatpush1.bf16.msra.mxu0 %v2918
    %3061 = vmatprep.subr.bf16.mxu0 %v2923
    %3062 = vmatpush1.bf16.msra.mxu0 %v2922
    %3063 = vmatprep.subr.bf16.mxu0 %v2927
    %3064 = vmatpush1.bf16.msra.mxu0 %v2926
    %3065 = vmatprep.subr.bf16.mxu0 %v2931
    %3066 = vmatpush1.bf16.msra.mxu0 %v2930
    %3067 = vmatprep.subr.bf16.mxu0 %v2935
    %3068 = vmatpush1.bf16.msra.mxu0 %v2934
    %3069 = vmatprep.subr.bf16.mxu0 %v2939
    %3070 = vmatpush1.bf16.msra.mxu0 %v2938
    %3071 = vmatprep.subr.bf16.mxu0 %v2943
    %3072 = vmatpush1.bf16.msra.mxu0 %v2942
    %3073 = vmatprep.subr.bf16.mxu0 %v2947
    %3074 = vmatpush1.bf16.msra.mxu0 %v2946
    %3075 = vmatprep.subr.bf16.mxu0 %v2951
    %3076 = vmatpush1.bf16.msra.mxu0 %v2950
    %3077 = vmatprep.subr.bf16.mxu0 %v2955
    %3078 = vmatpush1.bf16.msra.mxu0 %v2954
    %3079 = vmatprep.subr.bf16.mxu0 %v2959
    %3080 = vmatpush1.bf16.msra.mxu0 %v2958
    %3081 = vmatprep.subr.bf16.mxu0 %v2963
    %3082 = vmatpush1.bf16.msra.mxu0 %v2962
    %3083 = vmatprep.mubr.bf16.mxu0 %v2644
    %3084 = vmatmul.mubr.bf16.gmra.mrb[0].mxu0 %v2643
    %v3085 = vpop.f32.mrb[0].mxu0
    %v3086 = vadd.f32 %v3034, %v3085
    %v3087 = vpop.f32.mrb[0].mxu0
    %v3088 = vadd.f32 %v3038, %v3087
    %v3089 = vpop.f32.mrb[0].mxu0
    %v3090 = vpop.f32.mrb[0].mxu0
    %3091 = vdwg.mxu0
    %3092 = vmatprep.subr.bf16.mxu0 %v2905
    %3093 = vmatpush1.bf16.msra.mxu0 %v2904
    %3094 = vmatprep.subr.bf16.mxu0 %v2909
    %3095 = vmatpush1.bf16.msra.mxu0 %v2908
    %3096 = vmatprep.subr.bf16.mxu0 %v2913
    %3097 = vmatpush1.bf16.msra.mxu0 %v2912
    %3098 = vmatprep.subr.bf16.mxu0 %v2917
    %3099 = vmatpush1.bf16.msra.mxu0 %v2916
    %3100 = vmatprep.subr.bf16.mxu0 %v2921
    %3101 = vmatpush1.bf16.msra.mxu0 %v2920
    %3102 = vmatprep.subr.bf16.mxu0 %v2925
    %3103 = vmatpush1.bf16.msra.mxu0 %v2924
    %3104 = vmatprep.subr.bf16.mxu0 %v2929
    %3105 = vmatpush1.bf16.msra.mxu0 %v2928
    %3106 = vmatprep.subr.bf16.mxu0 %v2933
    %3107 = vmatpush1.bf16.msra.mxu0 %v2932
    %3108 = vmatprep.subr.bf16.mxu0 %v2937
    %3109 = vmatpush1.bf16.msra.mxu0 %v2936
    %3110 = vmatprep.subr.bf16.mxu0 %v2941
    %3111 = vmatpush1.bf16.msra.mxu0 %v2940
    %3112 = vmatprep.subr.bf16.mxu0 %v2945
    %3113 = vmatpush1.bf16.msra.mxu0 %v2944
    %3114 = vmatprep.subr.bf16.mxu0 %v2949
    %3115 = vmatpush1.bf16.msra.mxu0 %v2948
    %3116 = vmatprep.subr.bf16.mxu0 %v2953
    %3117 = vmatpush1.bf16.msra.mxu0 %v2952
    %3118 = vmatprep.subr.bf16.mxu0 %v2957
    %3119 = vmatpush1.bf16.msra.mxu0 %v2956
    %3120 = vmatprep.subr.bf16.mxu0 %v2961
    %3121 = vmatpush1.bf16.msra.mxu0 %v2960
    %3122 = vmatprep.subr.bf16.mxu0 %v2965
    %3123 = vmatpush1.bf16.msra.mxu0 %v2964
    %3124 = vmatprep.mubr.bf16.mxu0 %v2644
    %3125 = vmatmul.mubr.bf16.gmra.mrb[0].mxu0 %v2643
    %v3126 = vpop.f32.mrb[0].mxu0
    %v3127 = vadd.f32 %v3042, %v3126
    %v3128 = vpop.f32.mrb[0].mxu0
    %v3129 = vadd.f32 %v3046, %v3128
    %v3130 = vpop.f32.mrb[0].mxu0
    %v3131 = vpop.f32.mrb[0].mxu0
    %3132 = vdwg.mxu0
    %v3133 = vxor.u32 %v3086, 2147483648
    %v3134 = vmul.f32 %v3133, 1.442695
    %v3135 = vpow.pop %v3134
    %v3136 = vadd.f32 %v3135, 1.0
    %v3137 = vrcp.pop %v3136
    %v3138 = vmul.f32 1.0, %v3137
    %v3139 = vxor.u32 %v3088, 2147483648
    %v3140 = vmul.f32 %v3139, 1.442695
    %v3141 = vpow.pop %v3140
    %v3142 = vadd.f32 %v3141, 1.0
    %v3143 = vrcp.pop %v3142
    %v3144 = vmul.f32 1.0, %v3143
    %v3145 = vmul.f32 %v3138, %v3129
    %v3146 = vadd.f32 %v3127, %v3145
    %v3147 = vtanh.pop %v3146
    %v3148 = vsub.f32 1.0, %v3144
    %v3149 = vmul.f32 %v3148, %v3147
    %v3150 = vmul.f32 %v3144, %v2638
    %v3151 = vadd.f32 %v3149, %v3150
    %3152 = vst [vmem:[#allocation2 + $0x5] sm:$0x1] %v3151
    %s3153 = sld [smem:[#allocation4 + $0x6]]
    %s3154 = scalar_lea.vmem [#allocation5], %s3153
    %v3155 = vld [vmem:[%s3154] sm:$0x1]
    %v3156 = vpack.c.bf16 %v3155, %v3155
    %v3157 = vpack.c.bf16 %v3151, %v3151
    %v3158 = vld [vmem:[#allocation8] sm:$0xff]
    %v3159 = vld [vmem:[#allocation8 + $0x8] sm:$0xff]
    %v3160 = vld [vmem:[#allocation8 + $0x10] sm:$0xff]
    %v3161 = vld [vmem:[#allocation8 + $0x18] sm:$0xff]
    %v3162 = vld [vmem:[#allocation8 + $0x20] sm:$0xff]
    %v3163 = vld [vmem:[#allocation8 + $0x28] sm:$0xff]
    %v3164 = vld [vmem:[#allocation8 + $0x30] sm:$0xff]
    %v3165 = vld [vmem:[#allocation8 + $0x38] sm:$0xff]
    %v3166 = vld [vmem:[#allocation8 + $0x40] sm:$0xff]
    %v3167 = vld [vmem:[#allocation8 + $0x48] sm:$0xff]
    %v3168 = vld [vmem:[#allocation8 + $0x50] sm:$0xff]
    %v3169 = vld [vmem:[#allocation8 + $0x58] sm:$0xff]
    %v3170 = vld [vmem:[#allocation8 + $0x60] sm:$0xff]
    %v3171 = vld [vmem:[#allocation8 + $0x68] sm:$0xff]
    %v3172 = vld [vmem:[#allocation8 + $0x70] sm:$0xff]
    %v3173 = vld [vmem:[#allocation8 + $0x78] sm:$0xff]
    %v3174 = vld [vmem:[#allocation8 + $0x80] sm:$0xff]
    %v3175 = vld [vmem:[#allocation8 + $0x88] sm:$0xff]
    %v3176 = vld [vmem:[#allocation8 + $0x90] sm:$0xff]
    %v3177 = vld [vmem:[#allocation8 + $0x98] sm:$0xff]
    %v3178 = vld [vmem:[#allocation8 + $0xa0] sm:$0xff]
    %v3179 = vld [vmem:[#allocation8 + $0xa8] sm:$0xff]
    %v3180 = vld [vmem:[#allocation8 + $0xb0] sm:$0xff]
    %v3181 = vld [vmem:[#allocation8 + $0xb8] sm:$0xff]
    %v3182 = vld [vmem:[#allocation8 + $0xc0] sm:$0xff]
    %v3183 = vld [vmem:[#allocation8 + $0xc8] sm:$0xff]
    %v3184 = vld [vmem:[#allocation8 + $0xd0] sm:$0xff]
    %v3185 = vld [vmem:[#allocation8 + $0xd8] sm:$0xff]
    %v3186 = vld [vmem:[#allocation8 + $0xe0] sm:$0xff]
    %v3187 = vld [vmem:[#allocation8 + $0xe8] sm:$0xff]
    %v3188 = vld [vmem:[#allocation8 + $0xf0] sm:$0xff]
    %v3189 = vld [vmem:[#allocation8 + $0xf8] sm:$0xff]
    %v3190 = vld [vmem:[#allocation8 + $0x100] sm:$0xff]
    %v3191 = vld [vmem:[#allocation8 + $0x108] sm:$0xff]
    %v3192 = vld [vmem:[#allocation8 + $0x110] sm:$0xff]
    %v3193 = vld [vmem:[#allocation8 + $0x118] sm:$0xff]
    %v3194 = vld [vmem:[#allocation8 + $0x120] sm:$0xff]
    %v3195 = vld [vmem:[#allocation8 + $0x128] sm:$0xff]
    %v3196 = vld [vmem:[#allocation8 + $0x130] sm:$0xff]
    %v3197 = vld [vmem:[#allocation8 + $0x138] sm:$0xff]
    %v3198 = vld [vmem:[#allocation8 + $0x140] sm:$0xff]
    %v3199 = vld [vmem:[#allocation8 + $0x148] sm:$0xff]
    %v3200 = vld [vmem:[#allocation8 + $0x150] sm:$0xff]
    %v3201 = vld [vmem:[#allocation8 + $0x158] sm:$0xff]
    %v3202 = vld [vmem:[#allocation8 + $0x160] sm:$0xff]
    %v3203 = vld [vmem:[#allocation8 + $0x168] sm:$0xff]
    %v3204 = vld [vmem:[#allocation8 + $0x170] sm:$0xff]
    %v3205 = vld [vmem:[#allocation8 + $0x178] sm:$0xff]
    %v3206 = vld [vmem:[#allocation8 + $0x180] sm:$0xff]
    %v3207 = vld [vmem:[#allocation8 + $0x188] sm:$0xff]
    %v3208 = vld [vmem:[#allocation8 + $0x190] sm:$0xff]
    %v3209 = vld [vmem:[#allocation8 + $0x198] sm:$0xff]
    %v3210 = vld [vmem:[#allocation8 + $0x1a0] sm:$0xff]
    %v3211 = vld [vmem:[#allocation8 + $0x1a8] sm:$0xff]
    %v3212 = vld [vmem:[#allocation8 + $0x1b0] sm:$0xff]
    %v3213 = vld [vmem:[#allocation8 + $0x1b8] sm:$0xff]
    %v3214 = vld [vmem:[#allocation8 + $0x1c0] sm:$0xff]
    %v3215 = vld [vmem:[#allocation8 + $0x1c8] sm:$0xff]
    %v3216 = vld [vmem:[#allocation8 + $0x1d0] sm:$0xff]
    %v3217 = vld [vmem:[#allocation8 + $0x1d8] sm:$0xff]
    %v3218 = vld [vmem:[#allocation8 + $0x1e0] sm:$0xff]
    %v3219 = vld [vmem:[#allocation8 + $0x1e8] sm:$0xff]
    %v3220 = vld [vmem:[#allocation8 + $0x1f0] sm:$0xff]
    %v3221 = vld [vmem:[#allocation8 + $0x1f8] sm:$0xff]
    %v3222 = vld [vmem:[%s4] sm:$0xf]
    %v3287 = vunpack.c.l.b16 %v3158
    %v3288 = vunpack.c.h.b16 %v3158
    %v3289 = vunpack.c.l.b16 %v3159
    %v3290 = vunpack.c.h.b16 %v3159
    %v3291 = vunpack.c.l.b16 %v3160
    %v3292 = vunpack.c.h.b16 %v3160
    %v3293 = vunpack.c.l.b16 %v3161
    %v3294 = vunpack.c.h.b16 %v3161
    %v3295 = vunpack.c.l.b16 %v3162
    %v3296 = vunpack.c.h.b16 %v3162
    %v3297 = vunpack.c.l.b16 %v3163
    %v3298 = vunpack.c.h.b16 %v3163
    %v3299 = vunpack.c.l.b16 %v3164
    %v3300 = vunpack.c.h.b16 %v3164
    %v3301 = vunpack.c.l.b16 %v3165
    %v3302 = vunpack.c.h.b16 %v3165
    %v3303 = vunpack.c.l.b16 %v3166
    %v3304 = vunpack.c.h.b16 %v3166
    %v3305 = vunpack.c.l.b16 %v3167
    %v3306 = vunpack.c.h.b16 %v3167
    %v3307 = vunpack.c.l.b16 %v3168
    %v3308 = vunpack.c.h.b16 %v3168
    %v3309 = vunpack.c.l.b16 %v3169
    %v3310 = vunpack.c.h.b16 %v3169
    %v3311 = vunpack.c.l.b16 %v3170
    %v3312 = vunpack.c.h.b16 %v3170
    %v3313 = vunpack.c.l.b16 %v3171
    %v3314 = vunpack.c.h.b16 %v3171
    %v3315 = vunpack.c.l.b16 %v3172
    %v3316 = vunpack.c.h.b16 %v3172
    %v3317 = vunpack.c.l.b16 %v3173
    %v3318 = vunpack.c.h.b16 %v3173
    %v3319 = vunpack.c.l.b16 %v3174
    %v3320 = vunpack.c.h.b16 %v3174
    %v3321 = vunpack.c.l.b16 %v3175
    %v3322 = vunpack.c.h.b16 %v3175
    %v3323 = vunpack.c.l.b16 %v3176
    %v3324 = vunpack.c.h.b16 %v3176
    %v3325 = vunpack.c.l.b16 %v3177
    %v3326 = vunpack.c.h.b16 %v3177
    %v3327 = vunpack.c.l.b16 %v3178
    %v3328 = vunpack.c.h.b16 %v3178
    %v3329 = vunpack.c.l.b16 %v3179
    %v3330 = vunpack.c.h.b16 %v3179
    %v3331 = vunpack.c.l.b16 %v3180
    %v3332 = vunpack.c.h.b16 %v3180
    %v3333 = vunpack.c.l.b16 %v3181
    %v3334 = vunpack.c.h.b16 %v3181
    %v3335 = vunpack.c.l.b16 %v3182
    %v3336 = vunpack.c.h.b16 %v3182
    %v3337 = vunpack.c.l.b16 %v3183
    %v3338 = vunpack.c.h.b16 %v3183
    %v3339 = vunpack.c.l.b16 %v3184
    %v3340 = vunpack.c.h.b16 %v3184
    %v3341 = vunpack.c.l.b16 %v3185
    %v3342 = vunpack.c.h.b16 %v3185
    %v3343 = vunpack.c.l.b16 %v3186
    %v3344 = vunpack.c.h.b16 %v3186
    %v3345 = vunpack.c.l.b16 %v3187
    %v3346 = vunpack.c.h.b16 %v3187
    %v3347 = vunpack.c.l.b16 %v3188
    %v3348 = vunpack.c.h.b16 %v3188
    %v3349 = vunpack.c.l.b16 %v3189
    %v3350 = vunpack.c.h.b16 %v3189
    %v3351 = vunpack.c.l.b16 %v3190
    %v3352 = vunpack.c.h.b16 %v3190
    %v3353 = vunpack.c.l.b16 %v3191
    %v3354 = vunpack.c.h.b16 %v3191
    %v3355 = vunpack.c.l.b16 %v3192
    %v3356 = vunpack.c.h.b16 %v3192
    %v3357 = vunpack.c.l.b16 %v3193
    %v3358 = vunpack.c.h.b16 %v3193
    %v3359 = vunpack.c.l.b16 %v3194
    %v3360 = vunpack.c.h.b16 %v3194
    %v3361 = vunpack.c.l.b16 %v3195
    %v3362 = vunpack.c.h.b16 %v3195
    %v3363 = vunpack.c.l.b16 %v3196
    %v3364 = vunpack.c.h.b16 %v3196
    %v3365 = vunpack.c.l.b16 %v3197
    %v3366 = vunpack.c.h.b16 %v3197
    %v3367 = vunpack.c.l.b16 %v3198
    %v3368 = vunpack.c.h.b16 %v3198
    %v3369 = vunpack.c.l.b16 %v3199
    %v3370 = vunpack.c.h.b16 %v3199
    %v3371 = vunpack.c.l.b16 %v3200
    %v3372 = vunpack.c.h.b16 %v3200
    %v3373 = vunpack.c.l.b16 %v3201
    %v3374 = vunpack.c.h.b16 %v3201
    %v3375 = vunpack.c.l.b16 %v3202
    %v3376 = vunpack.c.h.b16 %v3202
    %v3377 = vunpack.c.l.b16 %v3203
    %v3378 = vunpack.c.h.b16 %v3203
    %v3379 = vunpack.c.l.b16 %v3204
    %v3380 = vunpack.c.h.b16 %v3204
    %v3381 = vunpack.c.l.b16 %v3205
    %v3382 = vunpack.c.h.b16 %v3205
    %v3383 = vunpack.c.l.b16 %v3206
    %v3384 = vunpack.c.h.b16 %v3206
    %v3385 = vunpack.c.l.b16 %v3207
    %v3386 = vunpack.c.h.b16 %v3207
    %v3387 = vunpack.c.l.b16 %v3208
    %v3388 = vunpack.c.h.b16 %v3208
    %v3389 = vunpack.c.l.b16 %v3209
    %v3390 = vunpack.c.h.b16 %v3209
    %v3391 = vunpack.c.l.b16 %v3210
    %v3392 = vunpack.c.h.b16 %v3210
    %v3393 = vunpack.c.l.b16 %v3211
    %v3394 = vunpack.c.h.b16 %v3211
    %v3395 = vunpack.c.l.b16 %v3212
    %v3396 = vunpack.c.h.b16 %v3212
    %v3397 = vunpack.c.l.b16 %v3213
    %v3398 = vunpack.c.h.b16 %v3213
    %v3399 = vunpack.c.l.b16 %v3214
    %v3400 = vunpack.c.h.b16 %v3214
    %v3401 = vunpack.c.l.b16 %v3215
    %v3402 = vunpack.c.h.b16 %v3215
    %v3403 = vunpack.c.l.b16 %v3216
    %v3404 = vunpack.c.h.b16 %v3216
    %v3405 = vunpack.c.l.b16 %v3217
    %v3406 = vunpack.c.h.b16 %v3217
    %v3407 = vunpack.c.l.b16 %v3218
    %v3408 = vunpack.c.h.b16 %v3218
    %v3409 = vunpack.c.l.b16 %v3219
    %v3410 = vunpack.c.h.b16 %v3219
    %v3411 = vunpack.c.l.b16 %v3220
    %v3412 = vunpack.c.h.b16 %v3220
    %v3413 = vunpack.c.l.b16 %v3221
    %v3414 = vunpack.c.h.b16 %v3221
    %v3415 = vpack.c.b16 %v3291, %v3287
    %v3416 = vpack.c.b16 %v3292, %v3288
    %v3417 = vpack.c.b16 %v3293, %v3289
    %v3418 = vpack.c.b16 %v3294, %v3290
    %v3419 = vpack.c.b16 %v3299, %v3295
    %v3420 = vpack.c.b16 %v3300, %v3296
    %v3421 = vpack.c.b16 %v3301, %v3297
    %v3422 = vpack.c.b16 %v3302, %v3298
    %v3423 = vpack.c.b16 %v3307, %v3303
    %v3424 = vpack.c.b16 %v3308, %v3304
    %v3425 = vpack.c.b16 %v3309, %v3305
    %v3426 = vpack.c.b16 %v3310, %v3306
    %v3427 = vpack.c.b16 %v3315, %v3311
    %v3428 = vpack.c.b16 %v3316, %v3312
    %v3429 = vpack.c.b16 %v3317, %v3313
    %v3430 = vpack.c.b16 %v3318, %v3314
    %v3431 = vpack.c.b16 %v3323, %v3319
    %v3432 = vpack.c.b16 %v3324, %v3320
    %v3433 = vpack.c.b16 %v3325, %v3321
    %v3434 = vpack.c.b16 %v3326, %v3322
    %v3435 = vpack.c.b16 %v3331, %v3327
    %v3436 = vpack.c.b16 %v3332, %v3328
    %v3437 = vpack.c.b16 %v3333, %v3329
    %v3438 = vpack.c.b16 %v3334, %v3330
    %v3439 = vpack.c.b16 %v3339, %v3335
    %v3440 = vpack.c.b16 %v3340, %v3336
    %v3441 = vpack.c.b16 %v3341, %v3337
    %v3442 = vpack.c.b16 %v3342, %v3338
    %v3443 = vpack.c.b16 %v3347, %v3343
    %v3444 = vpack.c.b16 %v3348, %v3344
    %v3445 = vpack.c.b16 %v3349, %v3345
    %v3446 = vpack.c.b16 %v3350, %v3346
    %v3447 = vpack.c.b16 %v3355, %v3351
    %v3448 = vpack.c.b16 %v3356, %v3352
    %v3449 = vpack.c.b16 %v3357, %v3353
    %v3450 = vpack.c.b16 %v3358, %v3354
    %v3451 = vpack.c.b16 %v3363, %v3359
    %v3452 = vpack.c.b16 %v3364, %v3360
    %v3453 = vpack.c.b16 %v3365, %v3361
    %v3454 = vpack.c.b16 %v3366, %v3362
    %v3455 = vpack.c.b16 %v3371, %v3367
    %v3456 = vpack.c.b16 %v3372, %v3368
    %v3457 = vpack.c.b16 %v3373, %v3369
    %v3458 = vpack.c.b16 %v3374, %v3370
    %v3459 = vpack.c.b16 %v3379, %v3375
    %v3460 = vpack.c.b16 %v3380, %v3376
    %v3461 = vpack.c.b16 %v3381, %v3377
    %v3462 = vpack.c.b16 %v3382, %v3378
    %v3463 = vpack.c.b16 %v3387, %v3383
    %v3464 = vpack.c.b16 %v3388, %v3384
    %v3465 = vpack.c.b16 %v3389, %v3385
    %v3466 = vpack.c.b16 %v3390, %v3386
    %v3467 = vpack.c.b16 %v3395, %v3391
    %v3468 = vpack.c.b16 %v3396, %v3392
    %v3469 = vpack.c.b16 %v3397, %v3393
    %v3470 = vpack.c.b16 %v3398, %v3394
    %v3471 = vpack.c.b16 %v3403, %v3399
    %v3472 = vpack.c.b16 %v3404, %v3400
    %v3473 = vpack.c.b16 %v3405, %v3401
    %v3474 = vpack.c.b16 %v3406, %v3402
    %v3475 = vpack.c.b16 %v3411, %v3407
    %v3476 = vpack.c.b16 %v3412, %v3408
    %v3477 = vpack.c.b16 %v3413, %v3409
    %v3478 = vpack.c.b16 %v3414, %v3410
    %v3544 = vlaneseq
    %v3545 = vshrl.u32 %v3544, 7
    %v3546 = vsub.s32 0, %v3545
    %v3547 = vrot.slane %v3222, %v3546
    %v3548 = vlaneseq
    %v3549 = vshrl.u32 %v3548, 7
    %v3550 = vsub.s32 1, %v3549
    %v3551 = vrot.slane %v3222, %v3550
    %v3552 = vlaneseq
    %v3553 = vshrl.u32 %v3552, 7
    %v3554 = vsub.s32 2, %v3553
    %v3555 = vrot.slane %v3222, %v3554
    %v3556 = vlaneseq
    %v3557 = vshrl.u32 %v3556, 7
    %v3558 = vsub.s32 3, %v3557
    %v3559 = vrot.slane %v3222, %v3558
    %3564 = vmatprep.subr.bf16.mxu0 %v3416
    %3565 = vmatpush1.bf16.msra.mxu0 %v3415
    %3566 = vmatprep.subr.bf16.mxu0 %v3420
    %3567 = vmatpush1.bf16.msra.mxu0 %v3419
    %3568 = vmatprep.subr.bf16.mxu0 %v3424
    %3569 = vmatpush1.bf16.msra.mxu0 %v3423
    %3570 = vmatprep.subr.bf16.mxu0 %v3428
    %3571 = vmatpush1.bf16.msra.mxu0 %v3427
    %3572 = vmatprep.subr.bf16.mxu0 %v3432
    %3573 = vmatpush1.bf16.msra.mxu0 %v3431
    %3574 = vmatprep.subr.bf16.mxu0 %v3436
    %3575 = vmatpush1.bf16.msra.mxu0 %v3435
    %3576 = vmatprep.subr.bf16.mxu0 %v3440
    %3577 = vmatpush1.bf16.msra.mxu0 %v3439
    %3578 = vmatprep.subr.bf16.mxu0 %v3444
    %3579 = vmatpush1.bf16.msra.mxu0 %v3443
    %3580 = vmatprep.subr.bf16.mxu0 %v3448
    %3581 = vmatpush1.bf16.msra.mxu0 %v3447
    %3582 = vmatprep.subr.bf16.mxu0 %v3452
    %3583 = vmatpush1.bf16.msra.mxu0 %v3451
    %3584 = vmatprep.subr.bf16.mxu0 %v3456
    %3585 = vmatpush1.bf16.msra.mxu0 %v3455
    %3586 = vmatprep.subr.bf16.mxu0 %v3460
    %3587 = vmatpush1.bf16.msra.mxu0 %v3459
    %3588 = vmatprep.subr.bf16.mxu0 %v3464
    %3589 = vmatpush1.bf16.msra.mxu0 %v3463
    %3590 = vmatprep.subr.bf16.mxu0 %v3468
    %3591 = vmatpush1.bf16.msra.mxu0 %v3467
    %3592 = vmatprep.subr.bf16.mxu0 %v3472
    %3593 = vmatpush1.bf16.msra.mxu0 %v3471
    %3594 = vmatprep.subr.bf16.mxu0 %v3476
    %3595 = vmatpush1.bf16.msra.mxu0 %v3475
    %3596 = vmatprep.mubr.bf16.mxu0 %v3157
    %3597 = vmatmul.mubr.bf16.gmra.mrb[0].mxu0 %v3156
    %v3598 = vpop.f32.mrb[0].mxu0
    %v3599 = vadd.f32 %v3547, %v3598
    %v3600 = vpop.f32.mrb[0].mxu0
    %v3601 = vadd.f32 %v3551, %v3600
    %v3602 = vpop.f32.mrb[0].mxu0
    %v3603 = vpop.f32.mrb[0].mxu0
    %3604 = vdwg.mxu0
    %3605 = vmatprep.subr.bf16.mxu0 %v3418
    %3606 = vmatpush1.bf16.msra.mxu0 %v3417
    %3607 = vmatprep.subr.bf16.mxu0 %v3422
    %3608 = vmatpush1.bf16.msra.mxu0 %v3421
    %3609 = vmatprep.subr.bf16.mxu0 %v3426
    %3610 = vmatpush1.bf16.msra.mxu0 %v3425
    %3611 = vmatprep.subr.bf16.mxu0 %v3430
    %3612 = vmatpush1.bf16.msra.mxu0 %v3429
    %3613 = vmatprep.subr.bf16.mxu0 %v3434
    %3614 = vmatpush1.bf16.msra.mxu0 %v3433
    %3615 = vmatprep.subr.bf16.mxu0 %v3438
    %3616 = vmatpush1.bf16.msra.mxu0 %v3437
    %3617 = vmatprep.subr.bf16.mxu0 %v3442
    %3618 = vmatpush1.bf16.msra.mxu0 %v3441
    %3619 = vmatprep.subr.bf16.mxu0 %v3446
    %3620 = vmatpush1.bf16.msra.mxu0 %v3445
    %3621 = vmatprep.subr.bf16.mxu0 %v3450
    %3622 = vmatpush1.bf16.msra.mxu0 %v3449
    %3623 = vmatprep.subr.bf16.mxu0 %v3454
    %3624 = vmatpush1.bf16.msra.mxu0 %v3453
    %3625 = vmatprep.subr.bf16.mxu0 %v3458
    %3626 = vmatpush1.bf16.msra.mxu0 %v3457
    %3627 = vmatprep.subr.bf16.mxu0 %v3462
    %3628 = vmatpush1.bf16.msra.mxu0 %v3461
    %3629 = vmatprep.subr.bf16.mxu0 %v3466
    %3630 = vmatpush1.bf16.msra.mxu0 %v3465
    %3631 = vmatprep.subr.bf16.mxu0 %v3470
    %3632 = vmatpush1.bf16.msra.mxu0 %v3469
    %3633 = vmatprep.subr.bf16.mxu0 %v3474
    %3634 = vmatpush1.bf16.msra.mxu0 %v3473
    %3635 = vmatprep.subr.bf16.mxu0 %v3478
    %3636 = vmatpush1.bf16.msra.mxu0 %v3477
    %3637 = vmatprep.mubr.bf16.mxu0 %v3157
    %3638 = vmatmul.mubr.bf16.gmra.mrb[0].mxu0 %v3156
    %v3639 = vpop.f32.mrb[0].mxu0
    %v3640 = vadd.f32 %v3555, %v3639
    %v3641 = vpop.f32.mrb[0].mxu0
    %v3642 = vadd.f32 %v3559, %v3641
    %v3643 = vpop.f32.mrb[0].mxu0
    %v3644 = vpop.f32.mrb[0].mxu0
    %3645 = vdwg.mxu0
    %v3646 = vxor.u32 %v3599, 2147483648
    %v3647 = vmul.f32 %v3646, 1.442695
    %v3648 = vpow.pop %v3647
    %v3649 = vadd.f32 %v3648, 1.0
    %v3650 = vrcp.pop %v3649
    %v3651 = vmul.f32 1.0, %v3650
    %v3652 = vxor.u32 %v3601, 2147483648
    %v3653 = vmul.f32 %v3652, 1.442695
    %v3654 = vpow.pop %v3653
    %v3655 = vadd.f32 %v3654, 1.0
    %v3656 = vrcp.pop %v3655
    %v3657 = vmul.f32 1.0, %v3656
    %v3658 = vmul.f32 %v3651, %v3642
    %v3659 = vadd.f32 %v3640, %v3658
    %v3660 = vtanh.pop %v3659
    %v3661 = vsub.f32 1.0, %v3657
    %v3662 = vmul.f32 %v3661, %v3660
    %v3663 = vmul.f32 %v3657, %v3151
    %v3664 = vadd.f32 %v3662, %v3663
    %3665 = vst [vmem:[#allocation2 + $0x6] sm:$0x1] %v3664
    %s3666 = sld [smem:[#allocation4 + $0x7]]
    %s3667 = scalar_lea.vmem [#allocation5], %s3666
    %v3668 = vld [vmem:[%s3667] sm:$0x1]
    %v3669 = vpack.c.bf16 %v3668, %v3668
    %v3670 = vpack.c.bf16 %v3664, %v3664
    %v3671 = vld [vmem:[#allocation8] sm:$0xff]
    %v3672 = vld [vmem:[#allocation8 + $0x8] sm:$0xff]
    %v3673 = vld [vmem:[#allocation8 + $0x10] sm:$0xff]
    %v3674 = vld [vmem:[#allocation8 + $0x18] sm:$0xff]
    %v3675 = vld [vmem:[#allocation8 + $0x20] sm:$0xff]
    %v3676 = vld [vmem:[#allocation8 + $0x28] sm:$0xff]
    %v3677 = vld [vmem:[#allocation8 + $0x30] sm:$0xff]
    %v3678 = vld [vmem:[#allocation8 + $0x38] sm:$0xff]
    %v3679 = vld [vmem:[#allocation8 + $0x40] sm:$0xff]
    %v3680 = vld [vmem:[#allocation8 + $0x48] sm:$0xff]
    %v3681 = vld [vmem:[#allocation8 + $0x50] sm:$0xff]
    %v3682 = vld [vmem:[#allocation8 + $0x58] sm:$0xff]
    %v3683 = vld [vmem:[#allocation8 + $0x60] sm:$0xff]
    %v3684 = vld [vmem:[#allocation8 + $0x68] sm:$0xff]
    %v3685 = vld [vmem:[#allocation8 + $0x70] sm:$0xff]
    %v3686 = vld [vmem:[#allocation8 + $0x78] sm:$0xff]
    %v3687 = vld [vmem:[#allocation8 + $0x80] sm:$0xff]
    %v3688 = vld [vmem:[#allocation8 + $0x88] sm:$0xff]
    %v3689 = vld [vmem:[#allocation8 + $0x90] sm:$0xff]
    %v3690 = vld [vmem:[#allocation8 + $0x98] sm:$0xff]
    %v3691 = vld [vmem:[#allocation8 + $0xa0] sm:$0xff]
    %v3692 = vld [vmem:[#allocation8 + $0xa8] sm:$0xff]
    %v3693 = vld [vmem:[#allocation8 + $0xb0] sm:$0xff]
    %v3694 = vld [vmem:[#allocation8 + $0xb8] sm:$0xff]
    %v3695 = vld [vmem:[#allocation8 + $0xc0] sm:$0xff]
    %v3696 = vld [vmem:[#allocation8 + $0xc8] sm:$0xff]
    %v3697 = vld [vmem:[#allocation8 + $0xd0] sm:$0xff]
    %v3698 = vld [vmem:[#allocation8 + $0xd8] sm:$0xff]
    %v3699 = vld [vmem:[#allocation8 + $0xe0] sm:$0xff]
    %v3700 = vld [vmem:[#allocation8 + $0xe8] sm:$0xff]
    %v3701 = vld [vmem:[#allocation8 + $0xf0] sm:$0xff]
    %v3702 = vld [vmem:[#allocation8 + $0xf8] sm:$0xff]
    %v3703 = vld [vmem:[#allocation8 + $0x100] sm:$0xff]
    %v3704 = vld [vmem:[#allocation8 + $0x108] sm:$0xff]
    %v3705 = vld [vmem:[#allocation8 + $0x110] sm:$0xff]
    %v3706 = vld [vmem:[#allocation8 + $0x118] sm:$0xff]
    %v3707 = vld [vmem:[#allocation8 + $0x120] sm:$0xff]
    %v3708 = vld [vmem:[#allocation8 + $0x128] sm:$0xff]
    %v3709 = vld [vmem:[#allocation8 + $0x130] sm:$0xff]
    %v3710 = vld [vmem:[#allocation8 + $0x138] sm:$0xff]
    %v3711 = vld [vmem:[#allocation8 + $0x140] sm:$0xff]
    %v3712 = vld [vmem:[#allocation8 + $0x148] sm:$0xff]
    %v3713 = vld [vmem:[#allocation8 + $0x150] sm:$0xff]
    %v3714 = vld [vmem:[#allocation8 + $0x158] sm:$0xff]
    %v3715 = vld [vmem:[#allocation8 + $0x160] sm:$0xff]
    %v3716 = vld [vmem:[#allocation8 + $0x168] sm:$0xff]
    %v3717 = vld [vmem:[#allocation8 + $0x170] sm:$0xff]
    %v3718 = vld [vmem:[#allocation8 + $0x178] sm:$0xff]
    %v3719 = vld [vmem:[#allocation8 + $0x180] sm:$0xff]
    %v3720 = vld [vmem:[#allocation8 + $0x188] sm:$0xff]
    %v3721 = vld [vmem:[#allocation8 + $0x190] sm:$0xff]
    %v3722 = vld [vmem:[#allocation8 + $0x198] sm:$0xff]
    %v3723 = vld [vmem:[#allocation8 + $0x1a0] sm:$0xff]
    %v3724 = vld [vmem:[#allocation8 + $0x1a8] sm:$0xff]
    %v3725 = vld [vmem:[#allocation8 + $0x1b0] sm:$0xff]
    %v3726 = vld [vmem:[#allocation8 + $0x1b8] sm:$0xff]
    %v3727 = vld [vmem:[#allocation8 + $0x1c0] sm:$0xff]
    %v3728 = vld [vmem:[#allocation8 + $0x1c8] sm:$0xff]
    %v3729 = vld [vmem:[#allocation8 + $0x1d0] sm:$0xff]
    %v3730 = vld [vmem:[#allocation8 + $0x1d8] sm:$0xff]
    %v3731 = vld [vmem:[#allocation8 + $0x1e0] sm:$0xff]
    %v3732 = vld [vmem:[#allocation8 + $0x1e8] sm:$0xff]
    %v3733 = vld [vmem:[#allocation8 + $0x1f0] sm:$0xff]
    %v3734 = vld [vmem:[#allocation8 + $0x1f8] sm:$0xff]
    %v3735 = vld [vmem:[%s4] sm:$0xf]
    %v3800 = vunpack.c.l.b16 %v3671
    %v3801 = vunpack.c.h.b16 %v3671
    %v3802 = vunpack.c.l.b16 %v3672
    %v3803 = vunpack.c.h.b16 %v3672
    %v3804 = vunpack.c.l.b16 %v3673
    %v3805 = vunpack.c.h.b16 %v3673
    %v3806 = vunpack.c.l.b16 %v3674
    %v3807 = vunpack.c.h.b16 %v3674
    %v3808 = vunpack.c.l.b16 %v3675
    %v3809 = vunpack.c.h.b16 %v3675
    %v3810 = vunpack.c.l.b16 %v3676
    %v3811 = vunpack.c.h.b16 %v3676
    %v3812 = vunpack.c.l.b16 %v3677
    %v3813 = vunpack.c.h.b16 %v3677
    %v3814 = vunpack.c.l.b16 %v3678
    %v3815 = vunpack.c.h.b16 %v3678
    %v3816 = vunpack.c.l.b16 %v3679
    %v3817 = vunpack.c.h.b16 %v3679
    %v3818 = vunpack.c.l.b16 %v3680
    %v3819 = vunpack.c.h.b16 %v3680
    %v3820 = vunpack.c.l.b16 %v3681
    %v3821 = vunpack.c.h.b16 %v3681
    %v3822 = vunpack.c.l.b16 %v3682
    %v3823 = vunpack.c.h.b16 %v3682
    %v3824 = vunpack.c.l.b16 %v3683
    %v3825 = vunpack.c.h.b16 %v3683
    %v3826 = vunpack.c.l.b16 %v3684
    %v3827 = vunpack.c.h.b16 %v3684
    %v3828 = vunpack.c.l.b16 %v3685
    %v3829 = vunpack.c.h.b16 %v3685
    %v3830 = vunpack.c.l.b16 %v3686
    %v3831 = vunpack.c.h.b16 %v3686
    %v3832 = vunpack.c.l.b16 %v3687
    %v3833 = vunpack.c.h.b16 %v3687
    %v3834 = vunpack.c.l.b16 %v3688
    %v3835 = vunpack.c.h.b16 %v3688
    %v3836 = vunpack.c.l.b16 %v3689
    %v3837 = vunpack.c.h.b16 %v3689
    %v3838 = vunpack.c.l.b16 %v3690
    %v3839 = vunpack.c.h.b16 %v3690
    %v3840 = vunpack.c.l.b16 %v3691
    %v3841 = vunpack.c.h.b16 %v3691
    %v3842 = vunpack.c.l.b16 %v3692
    %v3843 = vunpack.c.h.b16 %v3692
    %v3844 = vunpack.c.l.b16 %v3693
    %v3845 = vunpack.c.h.b16 %v3693
    %v3846 = vunpack.c.l.b16 %v3694
    %v3847 = vunpack.c.h.b16 %v3694
    %v3848 = vunpack.c.l.b16 %v3695
    %v3849 = vunpack.c.h.b16 %v3695
    %v3850 = vunpack.c.l.b16 %v3696
    %v3851 = vunpack.c.h.b16 %v3696
    %v3852 = vunpack.c.l.b16 %v3697
    %v3853 = vunpack.c.h.b16 %v3697
    %v3854 = vunpack.c.l.b16 %v3698
    %v3855 = vunpack.c.h.b16 %v3698
    %v3856 = vunpack.c.l.b16 %v3699
    %v3857 = vunpack.c.h.b16 %v3699
    %v3858 = vunpack.c.l.b16 %v3700
    %v3859 = vunpack.c.h.b16 %v3700
    %v3860 = vunpack.c.l.b16 %v3701
    %v3861 = vunpack.c.h.b16 %v3701
    %v3862 = vunpack.c.l.b16 %v3702
    %v3863 = vunpack.c.h.b16 %v3702
    %v3864 = vunpack.c.l.b16 %v3703
    %v3865 = vunpack.c.h.b16 %v3703
    %v3866 = vunpack.c.l.b16 %v3704
    %v3867 = vunpack.c.h.b16 %v3704
    %v3868 = vunpack.c.l.b16 %v3705
    %v3869 = vunpack.c.h.b16 %v3705
    %v3870 = vunpack.c.l.b16 %v3706
    %v3871 = vunpack.c.h.b16 %v3706
    %v3872 = vunpack.c.l.b16 %v3707
    %v3873 = vunpack.c.h.b16 %v3707
    %v3874 = vunpack.c.l.b16 %v3708
    %v3875 = vunpack.c.h.b16 %v3708
    %v3876 = vunpack.c.l.b16 %v3709
    %v3877 = vunpack.c.h.b16 %v3709
    %v3878 = vunpack.c.l.b16 %v3710
    %v3879 = vunpack.c.h.b16 %v3710
    %v3880 = vunpack.c.l.b16 %v3711
    %v3881 = vunpack.c.h.b16 %v3711
    %v3882 = vunpack.c.l.b16 %v3712
    %v3883 = vunpack.c.h.b16 %v3712
    %v3884 = vunpack.c.l.b16 %v3713
    %v3885 = vunpack.c.h.b16 %v3713
    %v3886 = vunpack.c.l.b16 %v3714
    %v3887 = vunpack.c.h.b16 %v3714
    %v3888 = vunpack.c.l.b16 %v3715
    %v3889 = vunpack.c.h.b16 %v3715
    %v3890 = vunpack.c.l.b16 %v3716
    %v3891 = vunpack.c.h.b16 %v3716
    %v3892 = vunpack.c.l.b16 %v3717
    %v3893 = vunpack.c.h.b16 %v3717
    %v3894 = vunpack.c.l.b16 %v3718
    %v3895 = vunpack.c.h.b16 %v3718
    %v3896 = vunpack.c.l.b16 %v3719
    %v3897 = vunpack.c.h.b16 %v3719
    %v3898 = vunpack.c.l.b16 %v3720
    %v3899 = vunpack.c.h.b16 %v3720
    %v3900 = vunpack.c.l.b16 %v3721
    %v3901 = vunpack.c.h.b16 %v3721
    %v3902 = vunpack.c.l.b16 %v3722
    %v3903 = vunpack.c.h.b16 %v3722
    %v3904 = vunpack.c.l.b16 %v3723
    %v3905 = vunpack.c.h.b16 %v3723
    %v3906 = vunpack.c.l.b16 %v3724
    %v3907 = vunpack.c.h.b16 %v3724
    %v3908 = vunpack.c.l.b16 %v3725
    %v3909 = vunpack.c.h.b16 %v3725
    %v3910 = vunpack.c.l.b16 %v3726
    %v3911 = vunpack.c.h.b16 %v3726
    %v3912 = vunpack.c.l.b16 %v3727
    %v3913 = vunpack.c.h.b16 %v3727
    %v3914 = vunpack.c.l.b16 %v3728
    %v3915 = vunpack.c.h.b16 %v3728
    %v3916 = vunpack.c.l.b16 %v3729
    %v3917 = vunpack.c.h.b16 %v3729
    %v3918 = vunpack.c.l.b16 %v3730
    %v3919 = vunpack.c.h.b16 %v3730
    %v3920 = vunpack.c.l.b16 %v3731
    %v3921 = vunpack.c.h.b16 %v3731
    %v3922 = vunpack.c.l.b16 %v3732
    %v3923 = vunpack.c.h.b16 %v3732
    %v3924 = vunpack.c.l.b16 %v3733
    %v3925 = vunpack.c.h.b16 %v3733
    %v3926 = vunpack.c.l.b16 %v3734
    %v3927 = vunpack.c.h.b16 %v3734
    %v3928 = vpack.c.b16 %v3804, %v3800
    %v3929 = vpack.c.b16 %v3805, %v3801
    %v3930 = vpack.c.b16 %v3806, %v3802
    %v3931 = vpack.c.b16 %v3807, %v3803
    %v3932 = vpack.c.b16 %v3812, %v3808
    %v3933 = vpack.c.b16 %v3813, %v3809
    %v3934 = vpack.c.b16 %v3814, %v3810
    %v3935 = vpack.c.b16 %v3815, %v3811
    %v3936 = vpack.c.b16 %v3820, %v3816
    %v3937 = vpack.c.b16 %v3821, %v3817
    %v3938 = vpack.c.b16 %v3822, %v3818
    %v3939 = vpack.c.b16 %v3823, %v3819
    %v3940 = vpack.c.b16 %v3828, %v3824
    %v3941 = vpack.c.b16 %v3829, %v3825
    %v3942 = vpack.c.b16 %v3830, %v3826
    %v3943 = vpack.c.b16 %v3831, %v3827
    %v3944 = vpack.c.b16 %v3836, %v3832
    %v3945 = vpack.c.b16 %v3837, %v3833
    %v3946 = vpack.c.b16 %v3838, %v3834
    %v3947 = vpack.c.b16 %v3839, %v3835
    %v3948 = vpack.c.b16 %v3844, %v3840
    %v3949 = vpack.c.b16 %v3845, %v3841
    %v3950 = vpack.c.b16 %v3846, %v3842
    %v3951 = vpack.c.b16 %v3847, %v3843
    %v3952 = vpack.c.b16 %v3852, %v3848
    %v3953 = vpack.c.b16 %v3853, %v3849
    %v3954 = vpack.c.b16 %v3854, %v3850
    %v3955 = vpack.c.b16 %v3855, %v3851
    %v3956 = vpack.c.b16 %v3860, %v3856
    %v3957 = vpack.c.b16 %v3861, %v3857
    %v3958 = vpack.c.b16 %v3862, %v3858
    %v3959 = vpack.c.b16 %v3863, %v3859
    %v3960 = vpack.c.b16 %v3868, %v3864
    %v3961 = vpack.c.b16 %v3869, %v3865
    %v3962 = vpack.c.b16 %v3870, %v3866
    %v3963 = vpack.c.b16 %v3871, %v3867
    %v3964 = vpack.c.b16 %v3876, %v3872
    %v3965 = vpack.c.b16 %v3877, %v3873
    %v3966 = vpack.c.b16 %v3878, %v3874
    %v3967 = vpack.c.b16 %v3879, %v3875
    %v3968 = vpack.c.b16 %v3884, %v3880
    %v3969 = vpack.c.b16 %v3885, %v3881
    %v3970 = vpack.c.b16 %v3886, %v3882
    %v3971 = vpack.c.b16 %v3887, %v3883
    %v3972 = vpack.c.b16 %v3892, %v3888
    %v3973 = vpack.c.b16 %v3893, %v3889
    %v3974 = vpack.c.b16 %v3894, %v3890
    %v3975 = vpack.c.b16 %v3895, %v3891
    %v3976 = vpack.c.b16 %v3900, %v3896
    %v3977 = vpack.c.b16 %v3901, %v3897
    %v3978 = vpack.c.b16 %v3902, %v3898
    %v3979 = vpack.c.b16 %v3903, %v3899
    %v3980 = vpack.c.b16 %v3908, %v3904
    %v3981 = vpack.c.b16 %v3909, %v3905
    %v3982 = vpack.c.b16 %v3910, %v3906
    %v3983 = vpack.c.b16 %v3911, %v3907
    %v3984 = vpack.c.b16 %v3916, %v3912
    %v3985 = vpack.c.b16 %v3917, %v3913
    %v3986 = vpack.c.b16 %v3918, %v3914
    %v3987 = vpack.c.b16 %v3919, %v3915
    %v3988 = vpack.c.b16 %v3924, %v3920
    %v3989 = vpack.c.b16 %v3925, %v3921
    %v3990 = vpack.c.b16 %v3926, %v3922
    %v3991 = vpack.c.b16 %v3927, %v3923
    %v4057 = vlaneseq
    %v4058 = vshrl.u32 %v4057, 7
    %v4059 = vsub.s32 0, %v4058
    %v4060 = vrot.slane %v3735, %v4059
    %v4061 = vlaneseq
    %v4062 = vshrl.u32 %v4061, 7
    %v4063 = vsub.s32 1, %v4062
    %v4064 = vrot.slane %v3735, %v4063
    %v4065 = vlaneseq
    %v4066 = vshrl.u32 %v4065, 7
    %v4067 = vsub.s32 2, %v4066
    %v4068 = vrot.slane %v3735, %v4067
    %v4069 = vlaneseq
    %v4070 = vshrl.u32 %v4069, 7
    %v4071 = vsub.s32 3, %v4070
    %v4072 = vrot.slane %v3735, %v4071
    %4077 = vmatprep.subr.bf16.mxu0 %v3929
    %4078 = vmatpush1.bf16.msra.mxu0 %v3928
    %4079 = vmatprep.subr.bf16.mxu0 %v3933
    %4080 = vmatpush1.bf16.msra.mxu0 %v3932
    %4081 = vmatprep.subr.bf16.mxu0 %v3937
    %4082 = vmatpush1.bf16.msra.mxu0 %v3936
    %4083 = vmatprep.subr.bf16.mxu0 %v3941
    %4084 = vmatpush1.bf16.msra.mxu0 %v3940
    %4085 = vmatprep.subr.bf16.mxu0 %v3945
    %4086 = vmatpush1.bf16.msra.mxu0 %v3944
    %4087 = vmatprep.subr.bf16.mxu0 %v3949
    %4088 = vmatpush1.bf16.msra.mxu0 %v3948
    %4089 = vmatprep.subr.bf16.mxu0 %v3953
    %4090 = vmatpush1.bf16.msra.mxu0 %v3952
    %4091 = vmatprep.subr.bf16.mxu0 %v3957
    %4092 = vmatpush1.bf16.msra.mxu0 %v3956
    %4093 = vmatprep.subr.bf16.mxu0 %v3961
    %4094 = vmatpush1.bf16.msra.mxu0 %v3960
    %4095 = vmatprep.subr.bf16.mxu0 %v3965
    %4096 = vmatpush1.bf16.msra.mxu0 %v3964
    %4097 = vmatprep.subr.bf16.mxu0 %v3969
    %4098 = vmatpush1.bf16.msra.mxu0 %v3968
    %4099 = vmatprep.subr.bf16.mxu0 %v3973
    %4100 = vmatpush1.bf16.msra.mxu0 %v3972
    %4101 = vmatprep.subr.bf16.mxu0 %v3977
    %4102 = vmatpush1.bf16.msra.mxu0 %v3976
    %4103 = vmatprep.subr.bf16.mxu0 %v3981
    %4104 = vmatpush1.bf16.msra.mxu0 %v3980
    %4105 = vmatprep.subr.bf16.mxu0 %v3985
    %4106 = vmatpush1.bf16.msra.mxu0 %v3984
    %4107 = vmatprep.subr.bf16.mxu0 %v3989
    %4108 = vmatpush1.bf16.msra.mxu0 %v3988
    %4109 = vmatprep.mubr.bf16.mxu0 %v3670
    %4110 = vmatmul.mubr.bf16.gmra.mrb[0].mxu0 %v3669
    %v4111 = vpop.f32.mrb[0].mxu0
    %v4112 = vadd.f32 %v4060, %v4111
    %v4113 = vpop.f32.mrb[0].mxu0
    %v4114 = vadd.f32 %v4064, %v4113
    %v4115 = vpop.f32.mrb[0].mxu0
    %v4116 = vpop.f32.mrb[0].mxu0
    %4117 = vdwg.mxu0
    %4118 = vmatprep.subr.bf16.mxu0 %v3931
    %4119 = vmatpush1.bf16.msra.mxu0 %v3930
    %4120 = vmatprep.subr.bf16.mxu0 %v3935
    %4121 = vmatpush1.bf16.msra.mxu0 %v3934
    %4122 = vmatprep.subr.bf16.mxu0 %v3939
    %4123 = vmatpush1.bf16.msra.mxu0 %v3938
    %4124 = vmatprep.subr.bf16.mxu0 %v3943
    %4125 = vmatpush1.bf16.msra.mxu0 %v3942
    %4126 = vmatprep.subr.bf16.mxu0 %v3947
    %4127 = vmatpush1.bf16.msra.mxu0 %v3946
    %4128 = vmatprep.subr.bf16.mxu0 %v3951
    %4129 = vmatpush1.bf16.msra.mxu0 %v3950
    %4130 = vmatprep.subr.bf16.mxu0 %v3955
    %4131 = vmatpush1.bf16.msra.mxu0 %v3954
    %4132 = vmatprep.subr.bf16.mxu0 %v3959
    %4133 = vmatpush1.bf16.msra.mxu0 %v3958
    %4134 = vmatprep.subr.bf16.mxu0 %v3963
    %4135 = vmatpush1.bf16.msra.mxu0 %v3962
    %4136 = vmatprep.subr.bf16.mxu0 %v3967
    %4137 = vmatpush1.bf16.msra.mxu0 %v3966
    %4138 = vmatprep.subr.bf16.mxu0 %v3971
    %4139 = vmatpush1.bf16.msra.mxu0 %v3970
    %4140 = vmatprep.subr.bf16.mxu0 %v3975
    %4141 = vmatpush1.bf16.msra.mxu0 %v3974
    %4142 = vmatprep.subr.bf16.mxu0 %v3979
    %4143 = vmatpush1.bf16.msra.mxu0 %v3978
    %4144 = vmatprep.subr.bf16.mxu0 %v3983
    %4145 = vmatpush1.bf16.msra.mxu0 %v3982
    %4146 = vmatprep.subr.bf16.mxu0 %v3987
    %4147 = vmatpush1.bf16.msra.mxu0 %v3986
    %4148 = vmatprep.subr.bf16.mxu0 %v3991
    %4149 = vmatpush1.bf16.msra.mxu0 %v3990
    %4150 = vmatprep.mubr.bf16.mxu0 %v3670
    %4151 = vmatmul.mubr.bf16.gmra.mrb[0].mxu0 %v3669
    %v4152 = vpop.f32.mrb[0].mxu0
    %v4153 = vadd.f32 %v4068, %v4152
    %v4154 = vpop.f32.mrb[0].mxu0
    %v4155 = vadd.f32 %v4072, %v4154
    %v4156 = vpop.f32.mrb[0].mxu0
    %v4157 = vpop.f32.mrb[0].mxu0
    %4158 = vdwg.mxu0
    %v4159 = vxor.u32 %v4112, 2147483648
    %v4160 = vmul.f32 %v4159, 1.442695
    %v4161 = vpow.pop %v4160
    %v4162 = vadd.f32 %v4161, 1.0
    %v4163 = vrcp.pop %v4162
    %v4164 = vmul.f32 1.0, %v4163
    %v4165 = vxor.u32 %v4114, 2147483648
    %v4166 = vmul.f32 %v4165, 1.442695
    %v4167 = vpow.pop %v4166
    %v4168 = vadd.f32 %v4167, 1.0
    %v4169 = vrcp.pop %v4168
    %v4170 = vmul.f32 1.0, %v4169
    %v4171 = vmul.f32 %v4164, %v4155
    %v4172 = vadd.f32 %v4153, %v4171
    %v4173 = vtanh.pop %v4172
    %v4174 = vsub.f32 1.0, %v4170
    %v4175 = vmul.f32 %v4174, %v4173
    %v4176 = vmul.f32 %v4170, %v3664
    %v4177 = vadd.f32 %v4175, %v4176
    %4178 = vst [vmem:[#allocation2 + $0x7] sm:$0x1] %v4177
    %4179 = vst [vmem:[#allocation12] sm:$0x1] %v4177
    %v4180 = vld [vmem:[#allocation2] sm:$0xff]
    %v4181 = vpack.c.bf16 %v4180, %v4180
    %v4182 = vld [vmem:[#allocation10] sm:$0xff]
    %v4183 = vld [vmem:[#allocation10 + $0x8] sm:$0xff]
    %v4184 = vld [vmem:[#allocation10 + $0x10] sm:$0xff]
    %v4185 = vld [vmem:[#allocation10 + $0x18] sm:$0xff]
    %v4186 = vld [vmem:[#allocation10 + $0x20] sm:$0xff]
    %v4187 = vld [vmem:[#allocation10 + $0x28] sm:$0xff]
    %v4188 = vld [vmem:[#allocation10 + $0x30] sm:$0xff]
    %v4189 = vld [vmem:[#allocation10 + $0x38] sm:$0xff]
    %v4190 = vld [vmem:[#allocation10 + $0x40] sm:$0xff]
    %v4191 = vld [vmem:[#allocation10 + $0x48] sm:$0xff]
    %v4192 = vld [vmem:[#allocation10 + $0x50] sm:$0xff]
    %v4193 = vld [vmem:[#allocation10 + $0x58] sm:$0xff]
    %v4194 = vld [vmem:[#allocation10 + $0x60] sm:$0xff]
    %v4195 = vld [vmem:[#allocation10 + $0x68] sm:$0xff]
    %v4196 = vld [vmem:[#allocation10 + $0x70] sm:$0xff]
    %v4197 = vld [vmem:[#allocation10 + $0x78] sm:$0xff]
    %v4198 = vld [vmem:[%s6] sm:$0x3]
    %v4200 = vlaneseq
    %v4201 = vshrl.u32 %v4200, 7
    %v4202 = vsub.s32 0, %v4201
    %v4203 = vrot.slane %v4198, %v4202
    %v4204 = vlaneseq
    %v4205 = vshrl.u32 %v4204, 7
    %v4206 = vsub.s32 1, %v4205
    %v4207 = vrot.slane %v4198, %v4206
    %v4226 = vunpack.c.l.b16 %v4182
    %v4227 = vunpack.c.h.b16 %v4182
    %v4228 = vunpack.c.l.b16 %v4183
    %v4229 = vunpack.c.h.b16 %v4183
    %v4230 = vunpack.c.l.b16 %v4184
    %v4231 = vunpack.c.h.b16 %v4184
    %v4232 = vunpack.c.l.b16 %v4185
    %v4233 = vunpack.c.h.b16 %v4185
    %v4234 = vunpack.c.l.b16 %v4186
    %v4235 = vunpack.c.h.b16 %v4186
    %v4236 = vunpack.c.l.b16 %v4187
    %v4237 = vunpack.c.h.b16 %v4187
    %v4238 = vunpack.c.l.b16 %v4188
    %v4239 = vunpack.c.h.b16 %v4188
    %v4240 = vunpack.c.l.b16 %v4189
    %v4241 = vunpack.c.h.b16 %v4189
    %v4242 = vunpack.c.l.b16 %v4190
    %v4243 = vunpack.c.h.b16 %v4190
    %v4244 = vunpack.c.l.b16 %v4191
    %v4245 = vunpack.c.h.b16 %v4191
    %v4246 = vunpack.c.l.b16 %v4192
    %v4247 = vunpack.c.h.b16 %v4192
    %v4248 = vunpack.c.l.b16 %v4193
    %v4249 = vunpack.c.h.b16 %v4193
    %v4250 = vunpack.c.l.b16 %v4194
    %v4251 = vunpack.c.h.b16 %v4194
    %v4252 = vunpack.c.l.b16 %v4195
    %v4253 = vunpack.c.h.b16 %v4195
    %v4254 = vunpack.c.l.b16 %v4196
    %v4255 = vunpack.c.h.b16 %v4196
    %v4256 = vunpack.c.l.b16 %v4197
    %v4257 = vunpack.c.h.b16 %v4197
    %v4258 = vpack.c.b16 %v4228, %v4226
    %v4259 = vpack.c.b16 %v4229, %v4227
    %v4260 = vpack.c.b16 %v4232, %v4230
    %v4261 = vpack.c.b16 %v4233, %v4231
    %v4262 = vpack.c.b16 %v4236, %v4234
    %v4263 = vpack.c.b16 %v4237, %v4235
    %v4264 = vpack.c.b16 %v4240, %v4238
    %v4265 = vpack.c.b16 %v4241, %v4239
    %v4266 = vpack.c.b16 %v4244, %v4242
    %v4267 = vpack.c.b16 %v4245, %v4243
    %v4268 = vpack.c.b16 %v4248, %v4246
    %v4269 = vpack.c.b16 %v4249, %v4247
    %v4270 = vpack.c.b16 %v4252, %v4250
    %v4271 = vpack.c.b16 %v4253, %v4251
    %v4272 = vpack.c.b16 %v4256, %v4254
    %v4273 = vpack.c.b16 %v4257, %v4255
    %4290 = vmatprep.subr.bf16.mxu0 %v4259
    %4291 = vmatpush1.bf16.msra.mxu0 %v4258
    %4292 = vmatprep.subr.bf16.mxu0 %v4261
    %4293 = vmatpush1.bf16.msra.mxu0 %v4260
    %4294 = vmatprep.subr.bf16.mxu0 %v4263
    %4295 = vmatpush1.bf16.msra.mxu0 %v4262
    %4296 = vmatprep.subr.bf16.mxu0 %v4265
    %4297 = vmatpush1.bf16.msra.mxu0 %v4264
    %4298 = vmatprep.subr.bf16.mxu0 %v4267
    %4299 = vmatpush1.bf16.msra.mxu0 %v4266
    %4300 = vmatprep.subr.bf16.mxu0 %v4269
    %4301 = vmatpush1.bf16.msra.mxu0 %v4268
    %4302 = vmatprep.subr.bf16.mxu0 %v4271
    %4303 = vmatpush1.bf16.msra.mxu0 %v4270
    %4304 = vmatprep.subr.bf16.mxu0 %v4273
    %4305 = vmatpush1.bf16.msra.mxu0 %v4272
    %4306 = vmatprep.subr.bf16.mxu0 0
    %4307 = vmatpush1.bf16.msra.mxu0 0
    %4308 = vmatprep.subr.bf16.mxu0 0
    %4309 = vmatpush1.bf16.msra.mxu0 0
    %4310 = vmatprep.subr.bf16.mxu0 0
    %4311 = vmatpush1.bf16.msra.mxu0 0
    %4312 = vmatprep.subr.bf16.mxu0 0
    %4313 = vmatpush1.bf16.msra.mxu0 0
    %4314 = vmatprep.subr.bf16.mxu0 0
    %4315 = vmatpush1.bf16.msra.mxu0 0
    %4316 = vmatprep.subr.bf16.mxu0 0
    %4317 = vmatpush1.bf16.msra.mxu0 0
    %4318 = vmatprep.subr.bf16.mxu0 0
    %4319 = vmatpush1.bf16.msra.mxu0 0
    %4320 = vmatprep.subr.bf16.mxu0 0
    %4321 = vmatpush1.bf16.msra.mxu0 0
    %4322 = vmatprep.mubr.bf16.mxu0 0
    %4323 = vmatmul.mubr.bf16.gmra.mrb[0].mxu0 %v4181
    %v4324 = vpop.f32.mrb[0].mxu0
    %v4325 = vadd.f32 %v4203, %v4324
    %v4326 = vpop.f32.mrb[0].mxu0
    %v4327 = vadd.f32 %v4207, %v4326
    %v4328 = vpop.f32.mrb[0].mxu0
    %v4329 = vpop.f32.mrb[0].mxu0
    %4330 = vdwg.mxu0
    %v4331 = vmax.f32 %v4325, %v4327
    %4332 = vmax.xlane.f32.xlu0 %v4331
    %v4333 = vpop.xlane.xlu0 %4332
    %v4334 = vsub.f32 %v4325, %v4333
    %v4335 = vsub.f32 %v4327, %v4333
    %v4336 = vmul.f32 %v4334, 1.442695
    %v4337 = vpow.pop %v4336
    %v4338 = vmul.f32 %v4335, 1.442695
    %v4339 = vpow.pop %v4338
    %v4340 = vadd.f32 %v4337, %v4339
    %4341 = vadd.xlane.f32.xlu0 %v4340
    %v4342 = vpop.xlane.xlu0 %4341
    %v4343 = vlog2.pop %v4342
    %v4344 = vmul.f32 %v4343, 0.6931472
    %v4345 = vsub.f32 %v4334, %v4344
    %v4346 = vsub.f32 %v4335, %v4344
    %4347 = vst [vmem:[#allocation11] sm:$0xff] %v4345
    %4348 = vst [vmem:[#allocation11 + $0x8] sm:$0xff] %v4346
    // Predicated region
    $region38: #{tpu_custom_call.1} parent=1 // pred_check
      _
    $region39: #{tpu_custom_call.1} parent=1 // pred_check_branch
      %4350 = sbr.rel (0) target = $region41
    $region40: #{tpu_custom_call.1} parent=1 // pred_region
      %s4352 = ssub.s32 256, 256
      %4353 = vsyncadd [#allocation7], %s4352
      %s4355 = sshll.u32 [#allocation11], 4
      %s4356 = int_to_ptr.vmem [resolvable:$true] %s4355
      %4358 = dma.vmem_to_hbm [thread:$0]  %s4356, 256, %s7, [#allocation7]
    $region41: #{tpu_custom_call.1} parent=1 // pred_fallthru
      _
    // Predicated region
    $region42: #{tpu_custom_call.1} parent=1 // pred_check
      _
    $region43: #{tpu_custom_call.1} parent=1 // pred_check_branch
      %4360 = sbr.rel (0) target = $region45
    $region44: #{tpu_custom_call.1} parent=1 // pred_region
      %s4362 = ssub.s32 16, 16
      %4363 = vsyncadd [#allocation13], %s4362
      %s4365 = sshll.u32 [#allocation12], 4
      %s4366 = int_to_ptr.vmem [resolvable:$true] %s4365
      %4368 = dma.vmem_to_hbm [thread:$0]  %s4366, 16, %s8, [#allocation13]
    $region45: #{tpu_custom_call.1} parent=1 // pred_fallthru
      _
    // Predicated region
    $region46: #{tpu_custom_call.1} parent=1 // pred_check
      _
    $region47: #{tpu_custom_call.1} parent=1 // pred_check_branch
      %4370 = sbr.rel (0) target = $region49
    $region48: #{tpu_custom_call.1} parent=1 // pred_region
      %4371 = dma.done [#allocation7], 256
    $region49: #{tpu_custom_call.1} parent=1 // pred_fallthru
      _
    // Predicated region
    $region50: #{tpu_custom_call.1} parent=1 // pred_check
      _
    $region51: #{tpu_custom_call.1} parent=1 // pred_check_branch
      %4373 = sbr.rel (0) target = $region53
    $region52: #{tpu_custom_call.1} parent=1 // pred_region
      %4374 = dma.done [#allocation13], 16
    $region53: #{tpu_custom_call.1} parent=1 // pred_fallthru
      _
    %4375 = vsyncpa [#allocation6], 1
    %4376 = vsyncpa [#allocation9], 1
    %4377 = vsyncpa [#allocation7], 1
    %4378 = vsyncpa [#allocation13], 1

</llo_original>
